<compile_context>
chip_gen: v7x
topology: tpu7x:2x2x1
jax: 0.10.0
libtpu: 0.0.40
codegen_flags: <defaults>
</compile_context>

<pallas_src>
import functools

import jax
import jax.numpy as jnp
from jax import lax
from jax.experimental import pallas as pl
from jax.experimental.pallas import tpu as pltpu


# -----------------------------------------------------------------------------
# Tile helpers: tiles must be (8, 128)-aligned in the last two dims OR equal the
# full array extent.  Small demo shapes fall back to full-extent blocks.
# -----------------------------------------------------------------------------
def _pick_row_tile(n, pref):
    """Sublane-axis tile: multiple of 8 dividing n; prefer >= 2 tiles (2-TC chips)."""
    cands = [t for t in (pref, 1024, 512, 256, 128, 64, 32, 16, 8)
             if t <= n and n % t == 0]
    if not cands:
        return n
    for t in cands:                 # first candidate that still yields >= 2 tiles
        if n // t >= 2:
            return t
    return cands[0]


def _pick_lane_tile(n, pref):
    """Lane-axis tile: multiple of 128 that divides n, else full extent."""
    for t in (pref, 2048, 1024, 512, 256, 128):
        if t <= n and n % t == 0:
            return t
    return n


def _gconv_tile_prefs():
    """VMEM-capacity-aware tile preferences for the aggregation kernel."""
    try:
        vmem = pltpu.get_tpu_info().vmem_capacity_bytes
    except Exception:               # not queryable -> assume the small (v7x) budget
        vmem = 64 << 20
    if vmem >= (100 << 20):         # v5e / v6e: 128 MiB VMEM -> bigger streaming tiles
        return 512, 2048
    return 256, 1024                # v7x: 64 MiB VMEM


# -----------------------------------------------------------------------------
# Kernel 1: fused per-rating message precompute (K-tiled).
#   M_wide = X_src @ W_wide,  W_wide : (in_dim, R*out_pad)  -> bf16 output.
# -----------------------------------------------------------------------------
def _messages_kernel(x_ref, w_ref, out_ref, acc_ref):
    k = pl.program_id(1)

    @pl.when(k == 0)
    def _():
        acc_ref[...] = jnp.zeros_like(acc_ref)

    acc_ref[...] += jnp.dot(x_ref[...], w_ref[...], preferred_element_type=jnp.float32)

    @pl.when(k == pl.num_programs(1) - 1)
    def _():
        out_ref[...] = acc_ref[...].astype(out_ref.dtype)


def fused_messages(x_src, w_wide, out_dtype=jnp.bfloat16):
    """x_src: (Nsrc, in_dim) f32, w_wide: (in_dim, R*out_pad) f32 -> (Nsrc, R*out_pad)."""
    n_src, in_dim = x_src.shape
    rn = w_wide.shape[1]                       # multiple of 128 (out padded)
    ts = _pick_row_tile(n_src, 512)
    tk = _pick_lane_tile(in_dim, 512)          # K-tiled: one-hot in_dim can be huge
    return pl.pallas_call(
        _messages_kernel,
        out_shape=jax.ShapeDtypeStruct((n_src, rn), out_dtype),
        grid_spec=pltpu.PrefetchScalarGridSpec(
            num_scalar_prefetch=0,
            grid=(n_src // ts, in_dim // tk),
            in_specs=[
                pl.BlockSpec((ts, tk), lambda s, k: (s, k)),
                pl.BlockSpec((tk, rn), lambda s, k: (k, 0)),
            ],
            out_specs=pl.BlockSpec((ts, rn), lambda s, k: (s, 0)),
            scratch_shapes=[pltpu.VMEM((ts, rn), jnp.float32)],
        ),
        compiler_params=pltpu.CompilerParams(
            dimension_semantics=("parallel", "arbitrary")),
    )(x_src, w_wide)


# -----------------------------------------------------------------------------
# Kernel 2: tiled graph-conv aggregation (embedding already folded into msgs).
#   grid = (row tiles [parallel], R, K tiles)
#   acc += A_bf16[r, i-tile, k-tile] @ M_bf16[k-tile, r-stripe]     (f32 acc)
#   finalize: z = acc * (1/d)   (norm='left', accum='sum', activation=None)
#   Messages stay in the wide (Nsrc, R*out_pad) layout; rating r selects the
#   128*-wide column stripe, so no HBM transpose is ever needed.
# -----------------------------------------------------------------------------
def _gconv_agg_kernel(a_ref, m_ref, invd_ref, out_ref, acc_ref):
    r = pl.program_id(1)
    k = pl.program_id(2)

    @pl.when((r == 0) & (k == 0))
    def _():
        acc_ref[...] = jnp.zeros_like(acc_ref)

    # bf16 x bf16 MXU matmul, f32 accumulation (adjacency is 0/1 -> bf16 exact).
    acc_ref[...] += jnp.dot(a_ref[0], m_ref[...], preferred_element_type=jnp.float32)

    @pl.when((r == pl.num_programs(1) - 1) & (k == pl.num_programs(2) - 1))
    def _():
        # reciprocal-multiply: 1/d precomputed in the wrapper.
        out_ref[...] = acc_ref[...] * invd_ref[...]


def gconv_agg(a_bf16, msgs_wide, inv_d, out_pad, tm_pref, tk_pref):
    """a_bf16: (R, Ndst, Nsrc) bf16 (0/1 edges), msgs_wide: (Nsrc, R*out_pad) bf16,
    inv_d: (Ndst, 1) f32 -> z: (Ndst, out_pad) f32 (padding columns exactly 0)."""
    R, n_dst, n_src = a_bf16.shape
    tm = _pick_row_tile(n_dst, tm_pref)
    tk = _pick_lane_tile(n_src, tk_pref)
    return pl.pallas_call(
        _gconv_agg_kernel,
        out_shape=jax.ShapeDtypeStruct((n_dst, out_pad), jnp.float32),
        grid_spec=pltpu.PrefetchScalarGridSpec(
            num_scalar_prefetch=0,
            grid=(n_dst // tm, R, n_src // tk),
            in_specs=[
                pl.BlockSpec((1, tm, tk), lambda i, r, k: (r, i, k)),
                pl.BlockSpec((tk, out_pad), lambda i, r, k: (k, r)),
                pl.BlockSpec((tm, 1), lambda i, r, k: (i, 0)),
            ],
            out_specs=pl.BlockSpec((tm, out_pad), lambda i, r, k: (i, 0)),
            scratch_shapes=[pltpu.VMEM((tm, out_pad), jnp.float32)],
        ),
        compiler_params=pltpu.CompilerParams(
            dimension_semantics=("parallel", "arbitrary", "arbitrary")),
    )(a_bf16, msgs_wide, inv_d)


# -----------------------------------------------------------------------------
# Kernel 3: fused bilinear decoder + softmax over ratings (streamed).
#   grid = (U tiles [parallel], V tiles [arbitrary, innermost]).
#   At V-tile 0:  T_r = z_u_tile @ Q_r  -> VMEM scratch, reused across V tiles.
#   Pass 1: s_r -> logits_ref[r], running max m.
#   Pass 2: e_r = exp(s_r - m) -> probs_ref[r], running sum tot.
#   Pass 3: probs_ref[r] *= 1/tot.
#   Only ~2-3 (tu,tv) tiles are live at any point -> no mass vreg spilling.
# -----------------------------------------------------------------------------
def _make_decoder_softmax_kernel(R):
    def kernel(zu_ref, zv_ref, q_ref, logits_ref, probs_ref, t_ref):
        j = pl.program_id(1)

        @pl.when(j == 0)
        def _():
            zu = zu_ref[...]                                       # (TU, Dp)
            for r in range(R):
                t_ref[r] = jnp.dot(zu, q_ref[r], preferred_element_type=jnp.float32)

        zv = zv_ref[...]                                           # (TV, Dp)

        # Pass 1: logits + running max.
        m = None
        for r in range(R):
            s = lax.dot_general(t_ref[r], zv,
                                dimension_numbers=(((1,), (1,)), ((), ())),
                                preferred_element_type=jnp.float32)  # (TU, TV)
            logits_ref[r] = s
            m = s if m is None else jnp.maximum(m, s)

        # Pass 2: exponentials + running sum (read logits back from VMEM).
        tot = None
        for r in range(R):
            e = jnp.exp(logits_ref[r] - m)
            probs_ref[r] = e
            tot = e if tot is None else tot + e

        # Pass 3: normalize (one reciprocal, R multiplies).
        inv = pl.reciprocal(tot, approx=False)
        for r in range(R):
            probs_ref[r] = probs_ref[r] * inv

    return kernel


def bilinear_decode_softmax(z_u, z_v, q_pad, tu_pref=128, tv_pref=256):
    """z_u: (U, Dp), z_v: (V, Dp), q_pad: (R, Dp, Dp) -> (logits, probs), each (R, U, V).
    TODO(synk): if the caller only consumes probs (or logits), emit a single
    output (or bf16 logits) to halve the decoder's dominant HBM write traffic."""
    U, Dp = z_u.shape
    V = z_v.shape[0]
    R = q_pad.shape[0]
    tu = _pick_row_tile(U, tu_pref)
    tv = _pick_lane_tile(V, tv_pref)
    return pl.pallas_call(
        _make_decoder_softmax_kernel(R),
        out_shape=(jax.ShapeDtypeStruct((R, U, V), jnp.float32),
                   jax.ShapeDtypeStruct((R, U, V), jnp.float32)),
        grid_spec=pltpu.PrefetchScalarGridSpec(
            num_scalar_prefetch=0,
            grid=(U // tu, V // tv),
            in_specs=[
                pl.BlockSpec((tu, Dp), lambda i, j: (i, 0)),
                pl.BlockSpec((tv, Dp), lambda i, j: (j, 0)),
                pl.BlockSpec((R, Dp, Dp), lambda i, j: (0, 0, 0)),
            ],
            out_specs=(
                pl.BlockSpec((R, tu, tv), lambda i, j: (0, i, j)),
                pl.BlockSpec((R, tu, tv), lambda i, j: (0, i, j)),
            ),
            scratch_shapes=[pltpu.VMEM((R, tu, Dp), jnp.float32)],
        ),
        compiler_params=pltpu.CompilerParams(
            dimension_semantics=("parallel", "arbitrary")),
    )(z_u, z_v, q_pad)


# -----------------------------------------------------------------------------
# Module wrapper
# -----------------------------------------------------------------------------
class GraphConvMatrixCompletionPallas:
    def __init__(self, u_num, v_num, in_dim, ins_dim, hid_dim, out_dim,
                 num_of_ratings, num_bases, key):
        self.u_num, self.v_num = u_num, v_num
        self.in_dim, self.ins_dim = in_dim, ins_dim
        self.hid_dim, self.out_dim = hid_dim, out_dim
        self.R = num_of_ratings
        # lane-dense padded output dim (exact: padded weight columns are zero)
        self.out_pad = max(128, ((out_dim + 127) // 128) * 128)
        self.tm_pref, self.tk_pref = _gconv_tile_prefs()
        # TODO(synk): num_bases / w_sharing basis decomposition not exercised
        # (module default w_sharing=False -> independent per-rating weights).
        k1, k2, k3 = jax.random.split(key, 3)
        self.params = {
            # per-rating GConv weights (shared between user and item messages, GC-MC style)
            "w_gc": 0.1 * jax.random.normal(k1, (self.R, in_dim, hid_dim), jnp.float32),
            # dense embedding weight (hid -> out), shared for u and v
            "w_emb": 0.1 * jax.random.normal(k2, (hid_dim, out_dim), jnp.float32),
            # per-rating bilinear decoder matrices
            "q": 0.1 * jax.random.normal(k3, (self.R, out_dim, out_dim), jnp.float32),
        }

    @functools.partial(jax.jit, static_argnums=0)
    def forward(self, x_u, x_v, a_u, a_v, d_u, d_v, h_u, h_v):
        p = self.params
        R, out_dim, in_dim, out_pad = self.R, self.out_dim, self.in_dim, self.out_pad

        # --- Fold EmbeddingLayer into the GConv weights and zero-pad the output
        # dim to a lane-dense multiple of 128.  Exact because the module defaults
        # are activation=None, bias=False, dropout=0 (unfold if that changes). ---
        w_fold = jnp.einsum("rih,ho->rio", p["w_gc"], p["w_emb"])            # (R, in, out)
        w_fold = jnp.pad(w_fold, ((0, 0), (0, 0), (0, out_pad - out_dim)))   # (R, in, out_pad)
        w_wide = jnp.transpose(w_fold, (1, 0, 2)).reshape(in_dim, R * out_pad)

        # --- Per-rating messages: one wide K-tiled matmul each, kept in the wide
        # (Nsrc, R*out_pad) layout (no HBM transpose) and shipped as bf16. ---
        m_v = fused_messages(x_v, w_wide)          # (v_num, R*out_pad) bf16
        m_u = fused_messages(x_u, w_wide)          # (u_num, R*out_pad) bf16

        inv_du = (1.0 / d_u).astype(jnp.float32)
        inv_dv = (1.0 / d_v).astype(jnp.float32)

        # Adjacency should already arrive in bf16 from the data pipeline (exact
        # for 0/1 edges; weighted edges would need f32 -> keep them f32 upstream).
        a_u_bf = a_u if a_u.dtype == jnp.bfloat16 else a_u.astype(jnp.bfloat16)
        a_v_bf = a_v if a_v.dtype == jnp.bfloat16 else a_v.astype(jnp.bfloat16)

        # --- GraphCovLayer + EmbeddingLayer (folded): tiled bf16xbf16 aggregation ---
        z_u = gconv_agg(a_u_bf, m_v, inv_du, out_pad, self.tm_pref, self.tk_pref)
        z_v = gconv_agg(a_v_bf, m_u, inv_dv, out_pad, self.tm_pref, self.tk_pref)

        # --- BilinearDecoder + rating softmax (fused, streamed softmax) ---
        q_pad = jnp.pad(p["q"], ((0, 0), (0, out_pad - out_dim), (0, out_pad - out_dim)))
        logits, probs = bilinear_decode_softmax(z_u, z_v, q_pad)   # (R, u_num, v_num) x2
        # TODO(synk): exact return convention of BilinearDecoder is not in the
        # provided snippet; (logits, per-rating softmax) returned as (h_u, h_v).
        return logits, probs


def _reference_forward(params, x_u, x_v, a_u, a_v, d_u, d_v):
    """Pure-jnp f32 reference for correctness checking."""
    w_gc, w_emb, q = params["w_gc"], params["w_emb"], params["q"]
    h_u = jnp.einsum("ruv,vd,rdh->uh", a_u, x_v, w_gc) / d_u
    h_v = jnp.einsum("rvu,ud,rdh->vh", a_v, x_u, w_gc) / d_v
    z_u, z_v = h_u @ w_emb, h_v @ w_emb
    logits = jnp.einsum("ud,rde,ve->ruv", z_u, q, z_v)
    return logits, jax.nn.softmax(logits, axis=0)


if __name__ == "__main__":
    # Small, self-consistent shapes
    u_num, v_num = 8, 16
    in_dim, ins_dim, hid_dim, out_dim = 32, 8, 32, 16
    R, num_bases = 5, 2

    key = jax.random.PRNGKey(0)
    k_mod, k_xu, k_xv, k_a = jax.random.split(key, 4)

    model = GraphConvMatrixCompletionPallas(
        u_num, v_num, in_dim, ins_dim, hid_dim, out_dim, R, num_bases, k_mod)

    x_u = jax.random.normal(k_xu, (u_num, in_dim), jnp.float32)
    x_v = jax.random.normal(k_xv, (v_num, in_dim), jnp.float32)

    # per-rating bipartite adjacencies (users x items), stored bf16 in the
    # "data pipeline" (exact for 0/1 edges) and the transposed view
    a_u = (jax.random.uniform(k_a, (R, u_num, v_num)) < 0.3).astype(jnp.bfloat16)
    a_v = jnp.transpose(a_u, (0, 2, 1))
    a_u_f32 = a_u.astype(jnp.float32)
    a_v_f32 = a_v.astype(jnp.float32)

    # left-normalization degrees (min 1 to avoid div-by-zero)
    d_u = jnp.maximum(a_u_f32.sum(axis=(0, 2)), 1.0)[:, None]   # (u_num, 1)
    d_v = jnp.maximum(a_v_f32.sum(axis=(0, 2)), 1.0)[:, None]   # (v_num, 1)

    h_u0 = jnp.zeros((u_num, hid_dim), jnp.float32)
    h_v0 = jnp.zeros((v_num, hid_dim), jnp.float32)

    logits, probs = model.forward(x_u, x_v, a_u, a_v, d_u, d_v, h_u0, h_v0)
    jax.block_until_ready((logits, probs))

    ref_logits, ref_probs = _reference_forward(model.params, x_u, x_v,
                                               a_u_f32, a_v_f32, d_u, d_v)
    # messages are shipped to the aggregation in bf16 -> allow mixed-precision tolerance
    assert jnp.allclose(logits, ref_logits, atol=2e-2, rtol=2e-2)
    assert jnp.allclose(probs, ref_probs, atol=2e-2, rtol=2e-2)

    print("KERNEL_OK")
</pallas_src>

<mosaic_0001>
module attributes {stable_mosaic.version = 11 : i64} {
  func.func @_messages_kernel(%arg0: i32, %arg1: i32, %arg2: memref<8x32xf32, #tpu.memory_space<vmem>>, %arg3: memref<32x640xf32, #tpu.memory_space<vmem>>, %arg4: memref<8x640xbf16, #tpu.memory_space<vmem>>, %arg5: memref<8x640xf32, #tpu.memory_space<vmem>>) attributes {dimension_semantics = [#tpu.dimension_semantics<parallel>, #tpu.dimension_semantics<arbitrary>], iteration_bounds = array<i64: 1, 1>, scalar_prefetch = 0 : i64, scratch_operands = 1 : i64, tpu.core_type = #tpu.core_type<tc>, window_params = [{transform_indices = @transform_0, window_bounds = array<i64: 8, 32>}, {transform_indices = @transform_1, window_bounds = array<i64: 32, 640>}, {transform_indices = @transform_2, window_bounds = array<i64: 8, 640>}]} {
    %c0_i32 = arith.constant 0 : i32
    %0 = arith.cmpi eq, %arg1, %c0_i32 : i32
    %1 = arith.extui %0 : i1 to i32
    %c0_i32_0 = arith.constant 0 : i32
    %2 = arith.cmpi ne, %1, %c0_i32_0 : i32
    scf.if %2 {
      %cst_10 = arith.constant 0.000000e+00 : f32
      %12 = vector.broadcast %cst_10 : f32 to vector<8x640xf32>
      %c0_11 = arith.constant 0 : index
      %c0_12 = arith.constant 0 : index
      %13 = vector.load %arg5[%c0_11, %c0_12] : memref<8x640xf32, #tpu.memory_space<vmem>>, vector<8x640xf32>
      tpu.vector_store %arg5[%c0_11, %c0_12], %12 {strides = array<i32>} : memref<8x640xf32, #tpu.memory_space<vmem>>, vector<8x640xf32>,
    } else {
    }
    %c0 = arith.constant 0 : index
    %c0_1 = arith.constant 0 : index
    %3 = vector.load %arg5[%c0, %c0_1] : memref<8x640xf32, #tpu.memory_space<vmem>>, vector<8x640xf32>
    %c0_2 = arith.constant 0 : index
    %c0_3 = arith.constant 0 : index
    %4 = vector.load %arg2[%c0_2, %c0_3] : memref<8x32xf32, #tpu.memory_space<vmem>>, vector<8x32xf32>
    %c0_4 = arith.constant 0 : index
    %c0_5 = arith.constant 0 : index
    %5 = vector.load %arg3[%c0_4, %c0_5] : memref<32x640xf32, #tpu.memory_space<vmem>>, vector<32x640xf32>
    %cst = arith.constant dense<0.000000e+00> : vector<8x640xf32>
    %6 = tpu.matmul %4, %5, %cst {dimension_numbers = #tpu.dot_dimension_numbers<[1], [0], [0], [1], [0, 0, 1, 1], [], []>} : vector<8x32xf32>, vector<32x640xf32>, vector<8x640xf32> -> vector<8x640xf32>
    %7 = arith.addf %3, %6 : vector<8x640xf32>
    %c0_6 = arith.constant 0 : index
    %c0_7 = arith.constant 0 : index
    %8 = vector.load %arg5[%c0_6, %c0_7] : memref<8x640xf32, #tpu.memory_space<vmem>>, vector<8x640xf32>
    tpu.vector_store %arg5[%c0_6, %c0_7], %7 {strides = array<i32>} : memref<8x640xf32, #tpu.memory_space<vmem>>, vector<8x640xf32>,
    %c0_i32_8 = arith.constant 0 : i32
    %9 = arith.cmpi eq, %arg1, %c0_i32_8 : i32
    %10 = arith.extui %9 : i1 to i32
    %c0_i32_9 = arith.constant 0 : i32
    %11 = arith.cmpi ne, %10, %c0_i32_9 : i32
    scf.if %11 {
      %c0_10 = arith.constant 0 : index
      %c0_11 = arith.constant 0 : index
      %12 = vector.load %arg5[%c0_10, %c0_11] : memref<8x640xf32, #tpu.memory_space<vmem>>, vector<8x640xf32>
      %13 = arith.truncf %12 : vector<8x640xf32> to vector<8x640xbf16>
      %c0_12 = arith.constant 0 : index
      %c0_13 = arith.constant 0 : index
      %14 = vector.load %arg4[%c0_12, %c0_13] : memref<8x640xbf16, #tpu.memory_space<vmem>>, vector<8x640xbf16>
      tpu.vector_store %arg4[%c0_12, %c0_13], %13 {strides = array<i32>} : memref<8x640xbf16, #tpu.memory_space<vmem>>, vector<8x640xbf16>,
    } else {
    }
    return
  }
  func.func @transform_0(%arg0: i32, %arg1: i32) -> (i32, i32) {
    %c0_i32 = arith.constant 0 : i32
    return %arg0, %arg1 : i32, i32
  }
  func.func @transform_1(%arg0: i32, %arg1: i32) -> (i32, i32) {
    %c0_i32 = arith.constant 0 : i32
    %c0_i32_0 = arith.constant 0 : i32
    return %arg1, %c0_i32 : i32, i32
  }
  func.func @transform_2(%arg0: i32, %arg1: i32) -> (i32, i32) {
    %c0_i32 = arith.constant 0 : i32
    %c0_i32_0 = arith.constant 0 : i32
    return %arg0, %c0_i32 : i32, i32
  }
}

module attributes {stable_mosaic.version = 11 : i64} {
  func.func @_gconv_agg_kernel(%arg0: i32, %arg1: i32, %arg2: i32, %arg3: memref<1x8x16xbf16, #tpu.memory_space<vmem>>, %arg4: memref<16x128xbf16, #tpu.memory_space<vmem>>, %arg5: memref<8x1xf32, #tpu.memory_space<vmem>>, %arg6: memref<8x128xf32, #tpu.memory_space<vmem>>, %arg7: memref<8x128xf32, #tpu.memory_space<vmem>>) attributes {dimension_semantics = [#tpu.dimension_semantics<parallel>, #tpu.dimension_semantics<arbitrary>, #tpu.dimension_semantics<arbitrary>], iteration_bounds = array<i64: 1, 5, 1>, scalar_prefetch = 0 : i64, scratch_operands = 1 : i64, tpu.core_type = #tpu.core_type<tc>, window_params = [{transform_indices = @transform_0, window_bounds = array<i64: 1, 8, 16>}, {transform_indices = @transform_1, window_bounds = array<i64: 16, 128>}, {transform_indices = @transform_2, window_bounds = array<i64: 8, 1>}, {transform_indices = @transform_3, window_bounds = array<i64: 8, 128>}]} {
    %c0_i32 = arith.constant 0 : i32
    %0 = arith.cmpi eq, %arg1, %c0_i32 : i32
    %c0_i32_0 = arith.constant 0 : i32
    %1 = arith.cmpi eq, %arg2, %c0_i32_0 : i32
    %2 = arith.andi %0, %1 : i1
    %3 = arith.extui %2 : i1 to i32
    %c0_i32_1 = arith.constant 0 : i32
    %4 = arith.cmpi ne, %3, %c0_i32_1 : i32
    scf.if %4 {
      %cst_12 = arith.constant 0.000000e+00 : f32
      %17 = vector.broadcast %cst_12 : f32 to vector<8x128xf32>
      %c0_13 = arith.constant 0 : index
      %c0_14 = arith.constant 0 : index
      %18 = vector.load %arg7[%c0_13, %c0_14] : memref<8x128xf32, #tpu.memory_space<vmem>>, vector<8x128xf32>
      tpu.vector_store %arg7[%c0_13, %c0_14], %17 {strides = array<i32>} : memref<8x128xf32, #tpu.memory_space<vmem>>, vector<8x128xf32>,
    } else {
    }
    %c0 = arith.constant 0 : index
    %c0_2 = arith.constant 0 : index
    %5 = vector.load %arg7[%c0, %c0_2] : memref<8x128xf32, #tpu.memory_space<vmem>>, vector<8x128xf32>
    %c0_3 = arith.constant 0 : index
    %c0_4 = arith.constant 0 : index
    %c0_5 = arith.constant 0 : index
    %6 = vector.load %arg3[%c0_3, %c0_4, %c0_5] : memref<1x8x16xbf16, #tpu.memory_space<vmem>>, vector<1x8x16xbf16>
    %7 = vector.shape_cast %6 : vector<1x8x16xbf16> to vector<8x16xbf16>
    %c0_6 = arith.constant 0 : index
    %c0_7 = arith.constant 0 : index
    %8 = vector.load %arg4[%c0_6, %c0_7] : memref<16x128xbf16, #tpu.memory_space<vmem>>, vector<16x128xbf16>
    %cst = arith.constant dense<0.000000e+00> : vector<8x128xf32>
    %9 = tpu.matmul %7, %8, %cst {dimension_numbers = #tpu.dot_dimension_numbers<[1], [0], [0], [1], [0, 0, 1, 1], [], []>} : vector<8x16xbf16>, vector<16x128xbf16>, vector<8x128xf32> -> vector<8x128xf32>
    %10 = arith.addf %5, %9 : vector<8x128xf32>
    %c0_8 = arith.constant 0 : index
    %c0_9 = arith.constant 0 : index
    %11 = vector.load %arg7[%c0_8, %c0_9] : memref<8x128xf32, #tpu.memory_space<vmem>>, vector<8x128xf32>
    tpu.vector_store %arg7[%c0_8, %c0_9], %10 {strides = array<i32>} : memref<8x128xf32, #tpu.memory_space<vmem>>, vector<8x128xf32>,
    %c4_i32 = arith.constant 4 : i32
    %12 = arith.cmpi eq, %arg1, %c4_i32 : i32
    %c0_i32_10 = arith.constant 0 : i32
    %13 = arith.cmpi eq, %arg2, %c0_i32_10 : i32
    %14 = arith.andi %12, %13 : i1
    %15 = arith.extui %14 : i1 to i32
    %c0_i32_11 = arith.constant 0 : i32
    %16 = arith.cmpi ne, %15, %c0_i32_11 : i32
    scf.if %16 {
      %c0_12 = arith.constant 0 : index
      %c0_13 = arith.constant 0 : index
      %17 = vector.load %arg7[%c0_12, %c0_13] : memref<8x128xf32, #tpu.memory_space<vmem>>, vector<8x128xf32>
      %c0_14 = arith.constant 0 : index
      %c0_15 = arith.constant 0 : index
      %18 = vector.load %arg5[%c0_14, %c0_15] : memref<8x1xf32, #tpu.memory_space<vmem>>, vector<8x1xf32>
      %19 = vector.broadcast %18 : vector<8x1xf32> to vector<8x128xf32>
      %20 = arith.mulf %17, %19 : vector<8x128xf32>
      %c0_16 = arith.constant 0 : index
      %c0_17 = arith.constant 0 : index
      %21 = vector.load %arg6[%c0_16, %c0_17] : memref<8x128xf32, #tpu.memory_space<vmem>>, vector<8x128xf32>
      tpu.vector_store %arg6[%c0_16, %c0_17], %20 {strides = array<i32>} : memref<8x128xf32, #tpu.memory_space<vmem>>, vector<8x128xf32>,
    } else {
    }
    return
  }
  func.func @transform_0(%arg0: i32, %arg1: i32, %arg2: i32) -> (i32, i32, i32) {
    %c0_i32 = arith.constant 0 : i32
    return %arg1, %arg0, %arg2 : i32, i32, i32
  }
  func.func @transform_1(%arg0: i32, %arg1: i32, %arg2: i32) -> (i32, i32) {
    %c0_i32 = arith.constant 0 : i32
    return %arg2, %arg1 : i32, i32
  }
  func.func @transform_2(%arg0: i32, %arg1: i32, %arg2: i32) -> (i32, i32) {
    %c0_i32 = arith.constant 0 : i32
    %c0_i32_0 = arith.constant 0 : i32
    return %arg0, %c0_i32 : i32, i32
  }
  func.func @transform_3(%arg0: i32, %arg1: i32, %arg2: i32) -> (i32, i32) {
    %c0_i32 = arith.constant 0 : i32
    %c0_i32_0 = arith.constant 0 : i32
    return %arg0, %c0_i32 : i32, i32
  }
}

module attributes {stable_mosaic.version = 11 : i64} {
  func.func @_messages_kernel(%arg0: i32, %arg1: i32, %arg2: memref<8x32xf32, #tpu.memory_space<vmem>>, %arg3: memref<32x640xf32, #tpu.memory_space<vmem>>, %arg4: memref<8x640xbf16, #tpu.memory_space<vmem>>, %arg5: memref<8x640xf32, #tpu.memory_space<vmem>>) attributes {dimension_semantics = [#tpu.dimension_semantics<parallel>, #tpu.dimension_semantics<arbitrary>], iteration_bounds = array<i64: 2, 1>, scalar_prefetch = 0 : i64, scratch_operands = 1 : i64, tpu.core_type = #tpu.core_type<tc>, window_params = [{transform_indices = @transform_0, window_bounds = array<i64: 8, 32>}, {transform_indices = @transform_1, window_bounds = array<i64: 32, 640>}, {transform_indices = @transform_2, window_bounds = array<i64: 8, 640>}]} {
    %c0_i32 = arith.constant 0 : i32
    %0 = arith.cmpi eq, %arg1, %c0_i32 : i32
    %1 = arith.extui %0 : i1 to i32
    %c0_i32_0 = arith.constant 0 : i32
    %2 = arith.cmpi ne, %1, %c0_i32_0 : i32
    scf.if %2 {
      %cst_10 = arith.constant 0.000000e+00 : f32
      %12 = vector.broadcast %cst_10 : f32 to vector<8x640xf32>
      %c0_11 = arith.constant 0 : index
      %c0_12 = arith.constant 0 : index
      %13 = vector.load %arg5[%c0_11, %c0_12] : memref<8x640xf32, #tpu.memory_space<vmem>>, vector<8x640xf32>
      tpu.vector_store %arg5[%c0_11, %c0_12], %12 {strides = array<i32>} : memref<8x640xf32, #tpu.memory_space<vmem>>, vector<8x640xf32>,
    } else {
    }
    %c0 = arith.constant 0 : index
    %c0_1 = arith.constant 0 : index
    %3 = vector.load %arg5[%c0, %c0_1] : memref<8x640xf32, #tpu.memory_space<vmem>>, vector<8x640xf32>
    %c0_2 = arith.constant 0 : index
    %c0_3 = arith.constant 0 : index
    %4 = vector.load %arg2[%c0_2, %c0_3] : memref<8x32xf32, #tpu.memory_space<vmem>>, vector<8x32xf32>
    %c0_4 = arith.constant 0 : index
    %c0_5 = arith.constant 0 : index
    %5 = vector.load %arg3[%c0_4, %c0_5] : memref<32x640xf32, #tpu.memory_space<vmem>>, vector<32x640xf32>
    %cst = arith.constant dense<0.000000e+00> : vector<8x640xf32>
    %6 = tpu.matmul %4, %5, %cst {dimension_numbers = #tpu.dot_dimension_numbers<[1], [0], [0], [1], [0, 0, 1, 1], [], []>} : vector<8x32xf32>, vector<32x640xf32>, vector<8x640xf32> -> vector<8x640xf32>
    %7 = arith.addf %3, %6 : vector<8x640xf32>
    %c0_6 = arith.constant 0 : index
    %c0_7 = arith.constant 0 : index
    %8 = vector.load %arg5[%c0_6, %c0_7] : memref<8x640xf32, #tpu.memory_space<vmem>>, vector<8x640xf32>
    tpu.vector_store %arg5[%c0_6, %c0_7], %7 {strides = array<i32>} : memref<8x640xf32, #tpu.memory_space<vmem>>, vector<8x640xf32>,
    %c0_i32_8 = arith.constant 0 : i32
    %9 = arith.cmpi eq, %arg1, %c0_i32_8 : i32
    %10 = arith.extui %9 : i1 to i32
    %c0_i32_9 = arith.constant 0 : i32
    %11 = arith.cmpi ne, %10, %c0_i32_9 : i32
    scf.if %11 {
      %c0_10 = arith.constant 0 : index
      %c0_11 = arith.constant 0 : index
      %12 = vector.load %arg5[%c0_10, %c0_11] : memref<8x640xf32, #tpu.memory_space<vmem>>, vector<8x640xf32>
      %13 = arith.truncf %12 : vector<8x640xf32> to vector<8x640xbf16>
      %c0_12 = arith.constant 0 : index
      %c0_13 = arith.constant 0 : index
      %14 = vector.load %arg4[%c0_12, %c0_13] : memref<8x640xbf16, #tpu.memory_space<vmem>>, vector<8x640xbf16>
      tpu.vector_store %arg4[%c0_12, %c0_13], %13 {strides = array<i32>} : memref<8x640xbf16, #tpu.memory_space<vmem>>, vector<8x640xbf16>,
    } else {
    }
    return
  }
  func.func @transform_0(%arg0: i32, %arg1: i32) -> (i32, i32) {
    %c0_i32 = arith.constant 0 : i32
    return %arg0, %arg1 : i32, i32
  }
  func.func @transform_1(%arg0: i32, %arg1: i32) -> (i32, i32) {
    %c0_i32 = arith.constant 0 : i32
    %c0_i32_0 = arith.constant 0 : i32
    return %arg1, %c0_i32 : i32, i32
  }
  func.func @transform_2(%arg0: i32, %arg1: i32) -> (i32, i32) {
    %c0_i32 = arith.constant 0 : i32
    %c0_i32_0 = arith.constant 0 : i32
    return %arg0, %c0_i32 : i32, i32
  }
}

module attributes {stable_mosaic.version = 11 : i64} {
  func.func @_gconv_agg_kernel(%arg0: i32, %arg1: i32, %arg2: i32, %arg3: memref<1x8x8xbf16, #tpu.memory_space<vmem>>, %arg4: memref<8x128xbf16, #tpu.memory_space<vmem>>, %arg5: memref<8x1xf32, #tpu.memory_space<vmem>>, %arg6: memref<8x128xf32, #tpu.memory_space<vmem>>, %arg7: memref<8x128xf32, #tpu.memory_space<vmem>>) attributes {dimension_semantics = [#tpu.dimension_semantics<parallel>, #tpu.dimension_semantics<arbitrary>, #tpu.dimension_semantics<arbitrary>], iteration_bounds = array<i64: 2, 5, 1>, scalar_prefetch = 0 : i64, scratch_operands = 1 : i64, tpu.core_type = #tpu.core_type<tc>, window_params = [{transform_indices = @transform_0, window_bounds = array<i64: 1, 8, 8>}, {transform_indices = @transform_1, window_bounds = array<i64: 8, 128>}, {transform_indices = @transform_2, window_bounds = array<i64: 8, 1>}, {transform_indices = @transform_3, window_bounds = array<i64: 8, 128>}]} {
    %c0_i32 = arith.constant 0 : i32
    %0 = arith.cmpi eq, %arg1, %c0_i32 : i32
    %c0_i32_0 = arith.constant 0 : i32
    %1 = arith.cmpi eq, %arg2, %c0_i32_0 : i32
    %2 = arith.andi %0, %1 : i1
    %3 = arith.extui %2 : i1 to i32
    %c0_i32_1 = arith.constant 0 : i32
    %4 = arith.cmpi ne, %3, %c0_i32_1 : i32
    scf.if %4 {
      %cst_12 = arith.constant 0.000000e+00 : f32
      %17 = vector.broadcast %cst_12 : f32 to vector<8x128xf32>
      %c0_13 = arith.constant 0 : index
      %c0_14 = arith.constant 0 : index
      %18 = vector.load %arg7[%c0_13, %c0_14] : memref<8x128xf32, #tpu.memory_space<vmem>>, vector<8x128xf32>
      tpu.vector_store %arg7[%c0_13, %c0_14], %17 {strides = array<i32>} : memref<8x128xf32, #tpu.memory_space<vmem>>, vector<8x128xf32>,
    } else {
    }
    %c0 = arith.constant 0 : index
    %c0_2 = arith.constant 0 : index
    %5 = vector.load %arg7[%c0, %c0_2] : memref<8x128xf32, #tpu.memory_space<vmem>>, vector<8x128xf32>
    %c0_3 = arith.constant 0 : index
    %c0_4 = arith.constant 0 : index
    %c0_5 = arith.constant 0 : index
    %6 = vector.load %arg3[%c0_3, %c0_4, %c0_5] : memref<1x8x8xbf16, #tpu.memory_space<vmem>>, vector<1x8x8xbf16>
    %7 = vector.shape_cast %6 : vector<1x8x8xbf16> to vector<8x8xbf16>
    %c0_6 = arith.constant 0 : index
    %c0_7 = arith.constant 0 : index
    %8 = vector.load %arg4[%c0_6, %c0_7] : memref<8x128xbf16, #tpu.memory_space<vmem>>, vector<8x128xbf16>
    %cst = arith.constant dense<0.000000e+00> : vector<8x128xf32>
    %9 = tpu.matmul %7, %8, %cst {dimension_numbers = #tpu.dot_dimension_numbers<[1], [0], [0], [1], [0, 0, 1, 1], [], []>} : vector<8x8xbf16>, vector<8x128xbf16>, vector<8x128xf32> -> vector<8x128xf32>
    %10 = arith.addf %5, %9 : vector<8x128xf32>
    %c0_8 = arith.constant 0 : index
    %c0_9 = arith.constant 0 : index
    %11 = vector.load %arg7[%c0_8, %c0_9] : memref<8x128xf32, #tpu.memory_space<vmem>>, vector<8x128xf32>
    tpu.vector_store %arg7[%c0_8, %c0_9], %10 {strides = array<i32>} : memref<8x128xf32, #tpu.memory_space<vmem>>, vector<8x128xf32>,
    %c4_i32 = arith.constant 4 : i32
    %12 = arith.cmpi eq, %arg1, %c4_i32 : i32
    %c0_i32_10 = arith.constant 0 : i32
    %13 = arith.cmpi eq, %arg2, %c0_i32_10 : i32
    %14 = arith.andi %12, %13 : i1
    %15 = arith.extui %14 : i1 to i32
    %c0_i32_11 = arith.constant 0 : i32
    %16 = arith.cmpi ne, %15, %c0_i32_11 : i32
    scf.if %16 {
      %c0_12 = arith.constant 0 : index
      %c0_13 = arith.constant 0 : index
      %17 = vector.load %arg7[%c0_12, %c0_13] : memref<8x128xf32, #tpu.memory_space<vmem>>, vector<8x128xf32>
      %c0_14 = arith.constant 0 : index
      %c0_15 = arith.constant 0 : index
      %18 = vector.load %arg5[%c0_14, %c0_15] : memref<8x1xf32, #tpu.memory_space<vmem>>, vector<8x1xf32>
      %19 = vector.broadcast %18 : vector<8x1xf32> to vector<8x128xf32>
      %20 = arith.mulf %17, %19 : vector<8x128xf32>
      %c0_16 = arith.constant 0 : index
      %c0_17 = arith.constant 0 : index
      %21 = vector.load %arg6[%c0_16, %c0_17] : memref<8x128xf32, #tpu.memory_space<vmem>>, vector<8x128xf32>
      tpu.vector_store %arg6[%c0_16, %c0_17], %20 {strides = array<i32>} : memref<8x128xf32, #tpu.memory_space<vmem>>, vector<8x128xf32>,
    } else {
    }
    return
  }
  func.func @transform_0(%arg0: i32, %arg1: i32, %arg2: i32) -> (i32, i32, i32) {
    %c0_i32 = arith.constant 0 : i32
    return %arg1, %arg0, %arg2 : i32, i32, i32
  }
  func.func @transform_1(%arg0: i32, %arg1: i32, %arg2: i32) -> (i32, i32) {
    %c0_i32 = arith.constant 0 : i32
    return %arg2, %arg1 : i32, i32
  }
  func.func @transform_2(%arg0: i32, %arg1: i32, %arg2: i32) -> (i32, i32) {
    %c0_i32 = arith.constant 0 : i32
    %c0_i32_0 = arith.constant 0 : i32
    return %arg0, %c0_i32 : i32, i32
  }
  func.func @transform_3(%arg0: i32, %arg1: i32, %arg2: i32) -> (i32, i32) {
    %c0_i32 = arith.constant 0 : i32
    %c0_i32_0 = arith.constant 0 : i32
    return %arg0, %c0_i32 : i32, i32
  }
}

module attributes {stable_mosaic.version = 11 : i64} {
  func.func @kernel(%arg0: i32, %arg1: i32, %arg2: memref<8x128xf32, #tpu.memory_space<vmem>>, %arg3: memref<16x128xf32, #tpu.memory_space<vmem>>, %arg4: memref<5x128x128xf32, #tpu.memory_space<vmem>>, %arg5: memref<5x8x16xf32, #tpu.memory_space<vmem>>, %arg6: memref<5x8x16xf32, #tpu.memory_space<vmem>>, %arg7: memref<5x8x128xf32, #tpu.memory_space<vmem>>) attributes {dimension_semantics = [#tpu.dimension_semantics<parallel>, #tpu.dimension_semantics<arbitrary>], iteration_bounds = array<i64: 1, 1>, scalar_prefetch = 0 : i64, scratch_operands = 1 : i64, tpu.core_type = #tpu.core_type<tc>, window_params = [{transform_indices = @transform_0, window_bounds = array<i64: 8, 128>}, {transform_indices = @transform_1, window_bounds = array<i64: 16, 128>}, {pipeline_mode = #tpu.pipeline_mode<synchronous>, transform_indices = @transform_2, window_bounds = array<i64: 5, 128, 128>}, {transform_indices = @transform_3, window_bounds = array<i64: 5, 8, 16>}, {transform_indices = @transform_4, window_bounds = array<i64: 5, 8, 16>}]} {
    %c0_i32 = arith.constant 0 : i32
    %0 = arith.cmpi eq, %arg1, %c0_i32 : i32
    %1 = arith.extui %0 : i1 to i32
    %c0_i32_0 = arith.constant 0 : i32
    %2 = arith.cmpi ne, %1, %c0_i32_0 : i32
    scf.if %2 {
      %c0_92 = arith.constant 0 : index
      %c0_93 = arith.constant 0 : index
      %108 = vector.load %arg2[%c0_92, %c0_93] : memref<8x128xf32, #tpu.memory_space<vmem>>, vector<8x128xf32>
      %c0_94 = arith.constant 0 : index
      %c0_95 = arith.constant 0 : index
      %c0_96 = arith.constant 0 : index
      %109 = vector.load %arg4[%c0_94, %c0_95, %c0_96] : memref<5x128x128xf32, #tpu.memory_space<vmem>>, vector<1x128x128xf32>
      %110 = vector.shape_cast %109 : vector<1x128x128xf32> to vector<128x128xf32>
      %cst_97 = arith.constant dense<0.000000e+00> : vector<8x128xf32>
      %111 = tpu.matmul %108, %110, %cst_97 {dimension_numbers = #tpu.dot_dimension_numbers<[1], [0], [0], [1], [0, 0, 1, 1], [], []>} : vector<8x128xf32>, vector<128x128xf32>, vector<8x128xf32> -> vector<8x128xf32>
      %c0_98 = arith.constant 0 : index
      %c0_99 = arith.constant 0 : index
      %c0_100 = arith.constant 0 : index
      %112 = vector.load %arg7[%c0_98, %c0_99, %c0_100] : memref<5x8x128xf32, #tpu.memory_space<vmem>>, vector<1x8x128xf32>
      %113 = vector.shape_cast %112 : vector<1x8x128xf32> to vector<8x128xf32>
      %114 = vector.shape_cast %111 : vector<8x128xf32> to vector<1x8x128xf32>
      tpu.vector_store %arg7[%c0_98, %c0_99, %c0_100], %114 {strides = array<i32>} : memref<5x8x128xf32, #tpu.memory_space<vmem>>, vector<1x8x128xf32>,
      %c1_101 = arith.constant 1 : index
      %c0_102 = arith.constant 0 : index
      %c0_103 = arith.constant 0 : index
      %115 = vector.load %arg4[%c1_101, %c0_102, %c0_103] : memref<5x128x128xf32, #tpu.memory_space<vmem>>, vector<1x128x128xf32>
      %116 = vector.shape_cast %115 : vector<1x128x128xf32> to vector<128x128xf32>
      %cst_104 = arith.constant dense<0.000000e+00> : vector<8x128xf32>
      %117 = tpu.matmul %108, %116, %cst_104 {dimension_numbers = #tpu.dot_dimension_numbers<[1], [0], [0], [1], [0, 0, 1, 1], [], []>} : vector<8x128xf32>, vector<128x128xf32>, vector<8x128xf32> -> vector<8x128xf32>
      %c1_105 = arith.constant 1 : index
      %c0_106 = arith.constant 0 : index
      %c0_107 = arith.constant 0 : index
      %118 = vector.load %arg7[%c1_105, %c0_106, %c0_107] : memref<5x8x128xf32, #tpu.memory_space<vmem>>, vector<1x8x128xf32>
      %119 = vector.shape_cast %118 : vector<1x8x128xf32> to vector<8x128xf32>
      %120 = vector.shape_cast %117 : vector<8x128xf32> to vector<1x8x128xf32>
      tpu.vector_store %arg7[%c1_105, %c0_106, %c0_107], %120 {strides = array<i32>} : memref<5x8x128xf32, #tpu.memory_space<vmem>>, vector<1x8x128xf32>,
      %c2_108 = arith.constant 2 : index
      %c0_109 = arith.constant 0 : index
      %c0_110 = arith.constant 0 : index
      %121 = vector.load %arg4[%c2_108, %c0_109, %c0_110] : memref<5x128x128xf32, #tpu.memory_space<vmem>>, vector<1x128x128xf32>
      %122 = vector.shape_cast %121 : vector<1x128x128xf32> to vector<128x128xf32>
      %cst_111 = arith.constant dense<0.000000e+00> : vector<8x128xf32>
      %123 = tpu.matmul %108, %122, %cst_111 {dimension_numbers = #tpu.dot_dimension_numbers<[1], [0], [0], [1], [0, 0, 1, 1], [], []>} : vector<8x128xf32>, vector<128x128xf32>, vector<8x128xf32> -> vector<8x128xf32>
      %c2_112 = arith.constant 2 : index
      %c0_113 = arith.constant 0 : index
      %c0_114 = arith.constant 0 : index
      %124 = vector.load %arg7[%c2_112, %c0_113, %c0_114] : memref<5x8x128xf32, #tpu.memory_space<vmem>>, vector<1x8x128xf32>
      %125 = vector.shape_cast %124 : vector<1x8x128xf32> to vector<8x128xf32>
      %126 = vector.shape_cast %123 : vector<8x128xf32> to vector<1x8x128xf32>
      tpu.vector_store %arg7[%c2_112, %c0_113, %c0_114], %126 {strides = array<i32>} : memref<5x8x128xf32, #tpu.memory_space<vmem>>, vector<1x8x128xf32>,
      %c3_115 = arith.constant 3 : index
      %c0_116 = arith.constant 0 : index
      %c0_117 = arith.constant 0 : index
      %127 = vector.load %arg4[%c3_115, %c0_116, %c0_117] : memref<5x128x128xf32, #tpu.memory_space<vmem>>, vector<1x128x128xf32>
      %128 = vector.shape_cast %127 : vector<1x128x128xf32> to vector<128x128xf32>
      %cst_118 = arith.constant dense<0.000000e+00> : vector<8x128xf32>
      %129 = tpu.matmul %108, %128, %cst_118 {dimension_numbers = #tpu.dot_dimension_numbers<[1], [0], [0], [1], [0, 0, 1, 1], [], []>} : vector<8x128xf32>, vector<128x128xf32>, vector<8x128xf32> -> vector<8x128xf32>
      %c3_119 = arith.constant 3 : index
      %c0_120 = arith.constant 0 : index
      %c0_121 = arith.constant 0 : index
      %130 = vector.load %arg7[%c3_119, %c0_120, %c0_121] : memref<5x8x128xf32, #tpu.memory_space<vmem>>, vector<1x8x128xf32>
      %131 = vector.shape_cast %130 : vector<1x8x128xf32> to vector<8x128xf32>
      %132 = vector.shape_cast %129 : vector<8x128xf32> to vector<1x8x128xf32>
      tpu.vector_store %arg7[%c3_119, %c0_120, %c0_121], %132 {strides = array<i32>} : memref<5x8x128xf32, #tpu.memory_space<vmem>>, vector<1x8x128xf32>,
      %c4_122 = arith.constant 4 : index
      %c0_123 = arith.constant 0 : index
      %c0_124 = arith.constant 0 : index
      %133 = vector.load %arg4[%c4_122, %c0_123, %c0_124] : memref<5x128x128xf32, #tpu.memory_space<vmem>>, vector<1x128x128xf32>
      %134 = vector.shape_cast %133 : vector<1x128x128xf32> to vector<128x128xf32>
      %cst_125 = arith.constant dense<0.000000e+00> : vector<8x128xf32>
      %135 = tpu.matmul %108, %134, %cst_125 {dimension_numbers = #tpu.dot_dimension_numbers<[1], [0], [0], [1], [0, 0, 1, 1], [], []>} : vector<8x128xf32>, vector<128x128xf32>, vector<8x128xf32> -> vector<8x128xf32>
      %c4_126 = arith.constant 4 : index
      %c0_127 = arith.constant 0 : index
      %c0_128 = arith.constant 0 : index
      %136 = vector.load %arg7[%c4_126, %c0_127, %c0_128] : memref<5x8x128xf32, #tpu.memory_space<vmem>>, vector<1x8x128xf32>
      %137 = vector.shape_cast %136 : vector<1x8x128xf32> to vector<8x128xf32>
      %138 = vector.shape_cast %135 : vector<8x128xf32> to vector<1x8x128xf32>
      tpu.vector_store %arg7[%c4_126, %c0_127, %c0_128], %138 {strides = array<i32>} : memref<5x8x128xf32, #tpu.memory_space<vmem>>, vector<1x8x128xf32>,
    } else {
    }
    %c0 = arith.constant 0 : index
    %c0_1 = arith.constant 0 : index
    %3 = vector.load %arg3[%c0, %c0_1] : memref<16x128xf32, #tpu.memory_space<vmem>>, vector<16x128xf32>
    %c0_2 = arith.constant 0 : index
    %c0_3 = arith.constant 0 : index
    %c0_4 = arith.constant 0 : index
    %4 = vector.load %arg7[%c0_2, %c0_3, %c0_4] : memref<5x8x128xf32, #tpu.memory_space<vmem>>, vector<1x8x128xf32>
    %5 = vector.shape_cast %4 : vector<1x8x128xf32> to vector<8x128xf32>
    %cst = arith.constant dense<0.000000e+00> : vector<8x16xf32>
    %6 = tpu.matmul %5, %3, %cst {dimension_numbers = #tpu.dot_dimension_numbers<[1], [1], [0], [0], [0, 0, 1, 0], [], []>} : vector<8x128xf32>, vector<16x128xf32>, vector<8x16xf32> -> vector<8x16xf32>
    %c0_5 = arith.constant 0 : index
    %c0_6 = arith.constant 0 : index
    %c0_7 = arith.constant 0 : index
    %7 = vector.load %arg5[%c0_5, %c0_6, %c0_7] : memref<5x8x16xf32, #tpu.memory_space<vmem>>, vector<1x8x16xf32>
    %8 = vector.shape_cast %7 : vector<1x8x16xf32> to vector<8x16xf32>
    %9 = vector.shape_cast %6 : vector<8x16xf32> to vector<1x8x16xf32>
    tpu.vector_store %arg5[%c0_5, %c0_6, %c0_7], %9 {strides = array<i32>} : memref<5x8x16xf32, #tpu.memory_space<vmem>>, vector<1x8x16xf32>,
    %c1 = arith.constant 1 : index
    %c0_8 = arith.constant 0 : index
    %c0_9 = arith.constant 0 : index
    %10 = vector.load %arg7[%c1, %c0_8, %c0_9] : memref<5x8x128xf32, #tpu.memory_space<vmem>>, vector<1x8x128xf32>
    %11 = vector.shape_cast %10 : vector<1x8x128xf32> to vector<8x128xf32>
    %cst_10 = arith.constant dense<0.000000e+00> : vector<8x16xf32>
    %12 = tpu.matmul %11, %3, %cst_10 {dimension_numbers = #tpu.dot_dimension_numbers<[1], [1], [0], [0], [0, 0, 1, 0], [], []>} : vector<8x128xf32>, vector<16x128xf32>, vector<8x16xf32> -> vector<8x16xf32>
    %c1_11 = arith.constant 1 : index
    %c0_12 = arith.constant 0 : index
    %c0_13 = arith.constant 0 : index
    %13 = vector.load %arg5[%c1_11, %c0_12, %c0_13] : memref<5x8x16xf32, #tpu.memory_space<vmem>>, vector<1x8x16xf32>
    %14 = vector.shape_cast %13 : vector<1x8x16xf32> to vector<8x16xf32>
    %15 = vector.shape_cast %12 : vector<8x16xf32> to vector<1x8x16xf32>
    tpu.vector_store %arg5[%c1_11, %c0_12, %c0_13], %15 {strides = array<i32>} : memref<5x8x16xf32, #tpu.memory_space<vmem>>, vector<1x8x16xf32>,
    %16 = arith.maximumf %6, %12 : vector<8x16xf32>
    %c2 = arith.constant 2 : index
    %c0_14 = arith.constant 0 : index
    %c0_15 = arith.constant 0 : index
    %17 = vector.load %arg7[%c2, %c0_14, %c0_15] : memref<5x8x128xf32, #tpu.memory_space<vmem>>, vector<1x8x128xf32>
    %18 = vector.shape_cast %17 : vector<1x8x128xf32> to vector<8x128xf32>
    %cst_16 = arith.constant dense<0.000000e+00> : vector<8x16xf32>
    %19 = tpu.matmul %18, %3, %cst_16 {dimension_numbers = #tpu.dot_dimension_numbers<[1], [1], [0], [0], [0, 0, 1, 0], [], []>} : vector<8x128xf32>, vector<16x128xf32>, vector<8x16xf32> -> vector<8x16xf32>
    %c2_17 = arith.constant 2 : index
    %c0_18 = arith.constant 0 : index
    %c0_19 = arith.constant 0 : index
    %20 = vector.load %arg5[%c2_17, %c0_18, %c0_19] : memref<5x8x16xf32, #tpu.memory_space<vmem>>, vector<1x8x16xf32>
    %21 = vector.shape_cast %20 : vector<1x8x16xf32> to vector<8x16xf32>
    %22 = vector.shape_cast %19 : vector<8x16xf32> to vector<1x8x16xf32>
    tpu.vector_store %arg5[%c2_17, %c0_18, %c0_19], %22 {strides = array<i32>} : memref<5x8x16xf32, #tpu.memory_space<vmem>>, vector<1x8x16xf32>,
    %23 = arith.maximumf %16, %19 : vector<8x16xf32>
    %c3 = arith.constant 3 : index
    %c0_20 = arith.constant 0 : index
    %c0_21 = arith.constant 0 : index
    %24 = vector.load %arg7[%c3, %c0_20, %c0_21] : memref<5x8x128xf32, #tpu.memory_space<vmem>>, vector<1x8x128xf32>
    %25 = vector.shape_cast %24 : vector<1x8x128xf32> to vector<8x128xf32>
    %cst_22 = arith.constant dense<0.000000e+00> : vector<8x16xf32>
    %26 = tpu.matmul %25, %3, %cst_22 {dimension_numbers = #tpu.dot_dimension_numbers<[1], [1], [0], [0], [0, 0, 1, 0], [], []>} : vector<8x128xf32>, vector<16x128xf32>, vector<8x16xf32> -> vector<8x16xf32>
    %c3_23 = arith.constant 3 : index
    %c0_24 = arith.constant 0 : index
    %c0_25 = arith.constant 0 : index
    %27 = vector.load %arg5[%c3_23, %c0_24, %c0_25] : memref<5x8x16xf32, #tpu.memory_space<vmem>>, vector<1x8x16xf32>
    %28 = vector.shape_cast %27 : vector<1x8x16xf32> to vector<8x16xf32>
    %29 = vector.shape_cast %26 : vector<8x16xf32> to vector<1x8x16xf32>
    tpu.vector_store %arg5[%c3_23, %c0_24, %c0_25], %29 {strides = array<i32>} : memref<5x8x16xf32, #tpu.memory_space<vmem>>, vector<1x8x16xf32>,
    %30 = arith.maximumf %23, %26 : vector<8x16xf32>
    %c4 = arith.constant 4 : index
    %c0_26 = arith.constant 0 : index
    %c0_27 = arith.constant 0 : index
    %31 = vector.load %arg7[%c4, %c0_26, %c0_27] : memref<5x8x128xf32, #tpu.memory_space<vmem>>, vector<1x8x128xf32>
    %32 = vector.shape_cast %31 : vector<1x8x128xf32> to vector<8x128xf32>
    %cst_28 = arith.constant dense<0.000000e+00> : vector<8x16xf32>
    %33 = tpu.matmul %32, %3, %cst_28 {dimension_numbers = #tpu.dot_dimension_numbers<[1], [1], [0], [0], [0, 0, 1, 0], [], []>} : vector<8x128xf32>, vector<16x128xf32>, vector<8x16xf32> -> vector<8x16xf32>
    %c4_29 = arith.constant 4 : index
    %c0_30 = arith.constant 0 : index
    %c0_31 = arith.constant 0 : index
    %34 = vector.load %arg5[%c4_29, %c0_30, %c0_31] : memref<5x8x16xf32, #tpu.memory_space<vmem>>, vector<1x8x16xf32>
    %35 = vector.shape_cast %34 : vector<1x8x16xf32> to vector<8x16xf32>
    %36 = vector.shape_cast %33 : vector<8x16xf32> to vector<1x8x16xf32>
    tpu.vector_store %arg5[%c4_29, %c0_30, %c0_31], %36 {strides = array<i32>} : memref<5x8x16xf32, #tpu.memory_space<vmem>>, vector<1x8x16xf32>,
    %37 = arith.maximumf %30, %33 : vector<8x16xf32>
    %c0_32 = arith.constant 0 : index
    %c0_33 = arith.constant 0 : index
    %c0_34 = arith.constant 0 : index
    %38 = vector.load %arg5[%c0_32, %c0_33, %c0_34] : memref<5x8x16xf32, #tpu.memory_space<vmem>>, vector<1x8x16xf32>
    %39 = vector.shape_cast %38 : vector<1x8x16xf32> to vector<8x16xf32>
    %40 = arith.subf %39, %37 : vector<8x16xf32>
    %41 = math.exp %40 : vector<8x16xf32>
    %c0_35 = arith.constant 0 : index
    %c0_36 = arith.constant 0 : index
    %c0_37 = arith.constant 0 : index
    %42 = vector.load %arg6[%c0_35, %c0_36, %c0_37] : memref<5x8x16xf32, #tpu.memory_space<vmem>>, vector<1x8x16xf32>
    %43 = vector.shape_cast %42 : vector<1x8x16xf32> to vector<8x16xf32>
    %44 = vector.shape_cast %41 : vector<8x16xf32> to vector<1x8x16xf32>
    tpu.vector_store %arg6[%c0_35, %c0_36, %c0_37], %44 {strides = array<i32>} : memref<5x8x16xf32, #tpu.memory_space<vmem>>, vector<1x8x16xf32>,
    %c1_38 = arith.constant 1 : index
    %c0_39 = arith.constant 0 : index
    %c0_40 = arith.constant 0 : index
    %45 = vector.load %arg5[%c1_38, %c0_39, %c0_40] : memref<5x8x16xf32, #tpu.memory_space<vmem>>, vector<1x8x16xf32>
    %46 = vector.shape_cast %45 : vector<1x8x16xf32> to vector<8x16xf32>
    %47 = arith.subf %46, %37 : vector<8x16xf32>
    %48 = math.exp %47 : vector<8x16xf32>
    %c1_41 = arith.constant 1 : index
    %c0_42 = arith.constant 0 : index
    %c0_43 = arith.constant 0 : index
    %49 = vector.load %arg6[%c1_41, %c0_42, %c0_43] : memref<5x8x16xf32, #tpu.memory_space<vmem>>, vector<1x8x16xf32>
    %50 = vector.shape_cast %49 : vector<1x8x16xf32> to vector<8x16xf32>
    %51 = vector.shape_cast %48 : vector<8x16xf32> to vector<1x8x16xf32>
    tpu.vector_store %arg6[%c1_41, %c0_42, %c0_43], %51 {strides = array<i32>} : memref<5x8x16xf32, #tpu.memory_space<vmem>>, vector<1x8x16xf32>,
    %52 = arith.addf %41, %48 : vector<8x16xf32>
    %c2_44 = arith.constant 2 : index
    %c0_45 = arith.constant 0 : index
    %c0_46 = arith.constant 0 : index
    %53 = vector.load %arg5[%c2_44, %c0_45, %c0_46] : memref<5x8x16xf32, #tpu.memory_space<vmem>>, vector<1x8x16xf32>
    %54 = vector.shape_cast %53 : vector<1x8x16xf32> to vector<8x16xf32>
    %55 = arith.subf %54, %37 : vector<8x16xf32>
    %56 = math.exp %55 : vector<8x16xf32>
    %c2_47 = arith.constant 2 : index
    %c0_48 = arith.constant 0 : index
    %c0_49 = arith.constant 0 : index
    %57 = vector.load %arg6[%c2_47, %c0_48, %c0_49] : memref<5x8x16xf32, #tpu.memory_space<vmem>>, vector<1x8x16xf32>
    %58 = vector.shape_cast %57 : vector<1x8x16xf32> to vector<8x16xf32>
    %59 = vector.shape_cast %56 : vector<8x16xf32> to vector<1x8x16xf32>
    tpu.vector_store %arg6[%c2_47, %c0_48, %c0_49], %59 {strides = array<i32>} : memref<5x8x16xf32, #tpu.memory_space<vmem>>, vector<1x8x16xf32>,
    %60 = arith.addf %52, %56 : vector<8x16xf32>
    %c3_50 = arith.constant 3 : index
    %c0_51 = arith.constant 0 : index
    %c0_52 = arith.constant 0 : index
    %61 = vector.load %arg5[%c3_50, %c0_51, %c0_52] : memref<5x8x16xf32, #tpu.memory_space<vmem>>, vector<1x8x16xf32>
    %62 = vector.shape_cast %61 : vector<1x8x16xf32> to vector<8x16xf32>
    %63 = arith.subf %62, %37 : vector<8x16xf32>
    %64 = math.exp %63 : vector<8x16xf32>
    %c3_53 = arith.constant 3 : index
    %c0_54 = arith.constant 0 : index
    %c0_55 = arith.constant 0 : index
    %65 = vector.load %arg6[%c3_53, %c0_54, %c0_55] : memref<5x8x16xf32, #tpu.memory_space<vmem>>, vector<1x8x16xf32>
    %66 = vector.shape_cast %65 : vector<1x8x16xf32> to vector<8x16xf32>
    %67 = vector.shape_cast %64 : vector<8x16xf32> to vector<1x8x16xf32>
    tpu.vector_store %arg6[%c3_53, %c0_54, %c0_55], %67 {strides = array<i32>} : memref<5x8x16xf32, #tpu.memory_space<vmem>>, vector<1x8x16xf32>,
    %68 = arith.addf %60, %64 : vector<8x16xf32>
    %c4_56 = arith.constant 4 : index
    %c0_57 = arith.constant 0 : index
    %c0_58 = arith.constant 0 : index
    %69 = vector.load %arg5[%c4_56, %c0_57, %c0_58] : memref<5x8x16xf32, #tpu.memory_space<vmem>>, vector<1x8x16xf32>
    %70 = vector.shape_cast %69 : vector<1x8x16xf32> to vector<8x16xf32>
    %71 = arith.subf %70, %37 : vector<8x16xf32>
    %72 = math.exp %71 : vector<8x16xf32>
    %c4_59 = arith.constant 4 : index
    %c0_60 = arith.constant 0 : index
    %c0_61 = arith.constant 0 : index
    %73 = vector.load %arg6[%c4_59, %c0_60, %c0_61] : memref<5x8x16xf32, #tpu.memory_space<vmem>>, vector<1x8x16xf32>
    %74 = vector.shape_cast %73 : vector<1x8x16xf32> to vector<8x16xf32>
    %75 = vector.shape_cast %72 : vector<8x16xf32> to vector<1x8x16xf32>
    tpu.vector_store %arg6[%c4_59, %c0_60, %c0_61], %75 {strides = array<i32>} : memref<5x8x16xf32, #tpu.memory_space<vmem>>, vector<1x8x16xf32>,
    %76 = arith.addf %68, %72 : vector<8x16xf32>
    %77 = tpu.reciprocal %76 : vector<8x16xf32> -> vector<8x16xf32>
    %c0_62 = arith.constant 0 : index
    %c0_63 = arith.constant 0 : index
    %c0_64 = arith.constant 0 : index
    %78 = vector.load %arg6[%c0_62, %c0_63, %c0_64] : memref<5x8x16xf32, #tpu.memory_space<vmem>>, vector<1x8x16xf32>
    %79 = vector.shape_cast %78 : vector<1x8x16xf32> to vector<8x16xf32>
    %80 = arith.mulf %79, %77 : vector<8x16xf32>
    %c0_65 = arith.constant 0 : index
    %c0_66 = arith.constant 0 : index
    %c0_67 = arith.constant 0 : index
    %81 = vector.load %arg6[%c0_65, %c0_66, %c0_67] : memref<5x8x16xf32, #tpu.memory_space<vmem>>, vector<1x8x16xf32>
    %82 = vector.shape_cast %81 : vector<1x8x16xf32> to vector<8x16xf32>
    %83 = vector.shape_cast %80 : vector<8x16xf32> to vector<1x8x16xf32>
    tpu.vector_store %arg6[%c0_65, %c0_66, %c0_67], %83 {strides = array<i32>} : memref<5x8x16xf32, #tpu.memory_space<vmem>>, vector<1x8x16xf32>,
    %c1_68 = arith.constant 1 : index
    %c0_69 = arith.constant 0 : index
    %c0_70 = arith.constant 0 : index
    %84 = vector.load %arg6[%c1_68, %c0_69, %c0_70] : memref<5x8x16xf32, #tpu.memory_space<vmem>>, vector<1x8x16xf32>
    %85 = vector.shape_cast %84 : vector<1x8x16xf32> to vector<8x16xf32>
    %86 = arith.mulf %85, %77 : vector<8x16xf32>
    %c1_71 = arith.constant 1 : index
    %c0_72 = arith.constant 0 : index
    %c0_73 = arith.constant 0 : index
    %87 = vector.load %arg6[%c1_71, %c0_72, %c0_73] : memref<5x8x16xf32, #tpu.memory_space<vmem>>, vector<1x8x16xf32>
    %88 = vector.shape_cast %87 : vector<1x8x16xf32> to vector<8x16xf32>
    %89 = vector.shape_cast %86 : vector<8x16xf32> to vector<1x8x16xf32>
    tpu.vector_store %arg6[%c1_71, %c0_72, %c0_73], %89 {strides = array<i32>} : memref<5x8x16xf32, #tpu.memory_space<vmem>>, vector<1x8x16xf32>,
    %c2_74 = arith.constant 2 : index
    %c0_75 = arith.constant 0 : index
    %c0_76 = arith.constant 0 : index
    %90 = vector.load %arg6[%c2_74, %c0_75, %c0_76] : memref<5x8x16xf32, #tpu.memory_space<vmem>>, vector<1x8x16xf32>
    %91 = vector.shape_cast %90 : vector<1x8x16xf32> to vector<8x16xf32>
    %92 = arith.mulf %91, %77 : vector<8x16xf32>
    %c2_77 = arith.constant 2 : index
    %c0_78 = arith.constant 0 : index
    %c0_79 = arith.constant 0 : index
    %93 = vector.load %arg6[%c2_77, %c0_78, %c0_79] : memref<5x8x16xf32, #tpu.memory_space<vmem>>, vector<1x8x16xf32>
    %94 = vector.shape_cast %93 : vector<1x8x16xf32> to vector<8x16xf32>
    %95 = vector.shape_cast %92 : vector<8x16xf32> to vector<1x8x16xf32>
    tpu.vector_store %arg6[%c2_77, %c0_78, %c0_79], %95 {strides = array<i32>} : memref<5x8x16xf32, #tpu.memory_space<vmem>>, vector<1x8x16xf32>,
    %c3_80 = arith.constant 3 : index
    %c0_81 = arith.constant 0 : index
    %c0_82 = arith.constant 0 : index
    %96 = vector.load %arg6[%c3_80, %c0_81, %c0_82] : memref<5x8x16xf32, #tpu.memory_space<vmem>>, vector<1x8x16xf32>
    %97 = vector.shape_cast %96 : vector<1x8x16xf32> to vector<8x16xf32>
    %98 = arith.mulf %97, %77 : vector<8x16xf32>
    %c3_83 = arith.constant 3 : index
    %c0_84 = arith.constant 0 : index
    %c0_85 = arith.constant 0 : index
    %99 = vector.load %arg6[%c3_83, %c0_84, %c0_85] : memref<5x8x16xf32, #tpu.memory_space<vmem>>, vector<1x8x16xf32>
    %100 = vector.shape_cast %99 : vector<1x8x16xf32> to vector<8x16xf32>
    %101 = vector.shape_cast %98 : vector<8x16xf32> to vector<1x8x16xf32>
    tpu.vector_store %arg6[%c3_83, %c0_84, %c0_85], %101 {strides = array<i32>} : memref<5x8x16xf32, #tpu.memory_space<vmem>>, vector<1x8x16xf32>,
    %c4_86 = arith.constant 4 : index
    %c0_87 = arith.constant 0 : index
    %c0_88 = arith.constant 0 : index
    %102 = vector.load %arg6[%c4_86, %c0_87, %c0_88] : memref<5x8x16xf32, #tpu.memory_space<vmem>>, vector<1x8x16xf32>
    %103 = vector.shape_cast %102 : vector<1x8x16xf32> to vector<8x16xf32>
    %104 = arith.mulf %103, %77 : vector<8x16xf32>
    %c4_89 = arith.constant 4 : index
    %c0_90 = arith.constant 0 : index
    %c0_91 = arith.constant 0 : index
    %105 = vector.load %arg6[%c4_89, %c0_90, %c0_91] : memref<5x8x16xf32, #tpu.memory_space<vmem>>, vector<1x8x16xf32>
    %106 = vector.shape_cast %105 : vector<1x8x16xf32> to vector<8x16xf32>
    %107 = vector.shape_cast %104 : vector<8x16xf32> to vector<1x8x16xf32>
    tpu.vector_store %arg6[%c4_89, %c0_90, %c0_91], %107 {strides = array<i32>} : memref<5x8x16xf32, #tpu.memory_space<vmem>>, vector<1x8x16xf32>,
    return
  }
  func.func @transform_0(%arg0: i32, %arg1: i32) -> (i32, i32) {
    %c0_i32 = arith.constant 0 : i32
    %c0_i32_0 = arith.constant 0 : i32
    return %arg0, %c0_i32 : i32, i32
  }
  func.func @transform_1(%arg0: i32, %arg1: i32) -> (i32, i32) {
    %c0_i32 = arith.constant 0 : i32
    %c0_i32_0 = arith.constant 0 : i32
    return %arg1, %c0_i32 : i32, i32
  }
  func.func @transform_2(%arg0: i32, %arg1: i32) -> (i32, i32, i32) {
    %c0_i32 = arith.constant 0 : i32
    %c0_i32_0 = arith.constant 0 : i32
    %c0_i32_1 = arith.constant 0 : i32
    %c0_i32_2 = arith.constant 0 : i32
    return %c0_i32, %c0_i32_0, %c0_i32_1 : i32, i32, i32
  }
  func.func @transform_3(%arg0: i32, %arg1: i32) -> (i32, i32, i32) {
    %c0_i32 = arith.constant 0 : i32
    %c0_i32_0 = arith.constant 0 : i32
    return %c0_i32, %arg0, %arg1 : i32, i32, i32
  }
  func.func @transform_4(%arg0: i32, %arg1: i32) -> (i32, i32, i32) {
    %c0_i32 = arith.constant 0 : i32
    %c0_i32_0 = arith.constant 0 : i32
    return %c0_i32, %arg0, %arg1 : i32, i32, i32
  }
}

</mosaic_0001>

<llo_original>
// kernel: forward.7
$region0: #{forward.7}
  #allocation0 [shape = 'u32[]', space=smem, size = 0x4, offset = 0x4, fixed_abs, tag = 'smem constant byte address 0x4 - core index']
  #allocation1 [shape = 'u32[144,128]{1,0:T(1,128)}', space=vmem, size = 0x12000, scoped, tag = 'internal scratch']
  #allocation2 [shape = 'f32[8,128]{1,0:T(8,128)}', space=vmem, size = 0x1000, scoped, tag = 'scratch operand']
  %s0 = inlined_call_operand.hbm [shape: bf16[5,8,16], index: 0, kind: input, shape index: {}]
  %s1 = inlined_call_operand.vmem [shape: bf16[16,640], index: 1, kind: input, shape index: {}]
  %s2 = inlined_call_operand.vmem [shape: f32[8,1], index: 2, kind: input, shape index: {}]
  %s3 = inlined_call_operand.vmem [shape: f32[8,128], index: 3, kind: output, shape index: {}]
  %s4 = sld [smem:[#allocation0]]
  $region98: #{forward.7} parent=0
    _
  %s6 = ssub.s32 1, %s4
  %s7 = scalar_select 0, %s6, %s4
  $region1: #{forward.7} parent=0
    #allocation3 [shape = 'u8[4096]{0}', space=vmem, size = 0x1000, scoped, tag = 'input window, operand 0']
    #allocation4 [shape = 's32[2]{0}', space=sflag, size = 0x8, scoped, tag = 'scoped memory for forward.7']
    #allocation5 [shape = 'u8[8192]{0}', space=vmem, size = 0x2000, scoped, tag = 'input window, operand 1']
    %8 = vsyncpa [#allocation4], 0
    %s9 = scalar_lea.sflag [#allocation4], 1
    %10 = vsyncpa %s9, 0
    loop: start=0, step=1, limit=7
    $region2: #{forward.7} parent=1 // loop_pre_header
      _
    $region3: #{forward.7} parent=1 // loop_header
      %s12 = sphi 0, %s16
      %p13 = scmp.ge.s32.totalorder %s12, 7
      %s19 = sphi 0, %s38
      %s20 = sphi 0, %s34
      %s21 = sphi 0, %s30
      %s22 = sphi 0, %s19
      %s23 = sphi 0, %s20
      %s24 = sphi 0, %s21
      %s25 = sphi 0, %s22
      %s26 = sphi 0, %s23
      %s27 = sphi 0, %s24
      %s45 = sphi 0, %s47
      %s48 = sphi 0, %s45
      %s49 = sphi 0, %s48
      %s65 = sphi 0, %s49
      %s73 = sphi 0, %s75
      %s76 = sphi 0, %s73
      %s77 = sphi 0, %s76
      %s93 = sphi 0, %s77
      %s99 = sphi 0, %s101
      %s102 = sphi 0, %s99
      %s103 = sphi 0, %s102
      %s119 = sphi 0, %s103
      %s125 = sphi 0, %s127
      %s128 = sphi 0, %s125
      %s129 = sphi 0, %s128
      %s145 = sphi 0, %s129
    $region4: #{forward.7} parent=1 // loop_header_branch
      %15 = sbr.rel (%p13) target = $region8
    $region5: #{forward.7} parent=1 // loop_body
      %s17 = ssub.s32 %s12, 1
      %s18 = ssub.s32 %s12, 2
      %s28 = sadd.s32 1, %s21
      %p29 = scmp.ge.s32.totalorder %s28, 1
      %s30 = scalar_select %p29, 0, %s28
      %s31 = sadd.s32 1, %s20
      %s32 = scalar_select %p29, %s31, %s20
      %p33 = scmp.ge.s32.totalorder %s32, 5
      %s34 = scalar_select %p33, 0, %s32
      %s35 = sadd.s32 1, %s19
      %s36 = scalar_select %p33, %s35, %s19
      %p37 = scmp.ge.s32.totalorder %s36, 1
      %s38 = scalar_select %p37, 0, %s36
      %s39 = ssub.s32 %s20, %s34
      %s40 = ssub.s32 %s19, %s38
      %s41 = sor.u32 %s39, %s40
      %s42 = ssub.s32 %s21, %s30
      %s43 = sor.u32 %s41, %s42
      %p44 = scmp.eq.s32.totalorder %s43, 0
      %s46 = sadd.s32 %s45, 1
      %s47 = scalar_select %p44, %s45, %s46
      %p50 = pneg %p44
      %p51 = scmp.eq.s32.totalorder %s12, 4
      %p52 = por %p50, %p51
      %p53 = scmp.ne.s32.totalorder %s45, %s48
      %p54 = scmp.eq.s32.totalorder %s12, 0
      %p55 = por %p53, %p54
      %p56 = scmp.ne.s32.totalorder %s45, %s48
      %p57 = scmp.eq.s32.totalorder %s17, 4
      %p58 = por %p56, %p57
      %p59 = scmp.ne.s32.totalorder %s48, %s49
      %p60 = scmp.eq.s32.totalorder %s17, 0
      %p61 = por %p59, %p60
      %p62 = scmp.ne.s32.totalorder %s48, %s49
      %p63 = scmp.eq.s32.totalorder %s18, 4
      %p64 = por %p62, %p63
      %p66 = scmp.ne.s32.totalorder %s49, %s65
      %p67 = scmp.eq.s32.totalorder %s18, 0
      %p68 = por %p66, %p67
      %s69 = ssub.s32 %s21, %s30
      %s70 = ssub.s32 %s20, %s34
      %s71 = sor.u32 %s69, %s70
      %p72 = scmp.eq.s32.totalorder %s71, 0
      %s74 = sadd.s32 %s73, 1
      %s75 = scalar_select %p72, %s73, %s74
      %p78 = pneg %p72
      %p79 = scmp.eq.s32.totalorder %s12, 4
      %p80 = por %p78, %p79
      %p81 = scmp.ne.s32.totalorder %s73, %s76
      %p82 = scmp.eq.s32.totalorder %s12, 0
      %p83 = por %p81, %p82
      %p84 = scmp.ne.s32.totalorder %s73, %s76
      %p85 = scmp.eq.s32.totalorder %s17, 4
      %p86 = por %p84, %p85
      %p87 = scmp.ne.s32.totalorder %s76, %s77
      %p88 = scmp.eq.s32.totalorder %s17, 0
      %p89 = por %p87, %p88
      %p90 = scmp.ne.s32.totalorder %s76, %s77
      %p91 = scmp.eq.s32.totalorder %s18, 4
      %p92 = por %p90, %p91
      %p94 = scmp.ne.s32.totalorder %s77, %s93
      %p95 = scmp.eq.s32.totalorder %s18, 0
      %p96 = por %p94, %p95
      %s97 = ssub.s32 %s19, %s38
      %p98 = scmp.eq.s32.totalorder %s97, 0
      %s100 = sadd.s32 %s99, 1
      %s101 = scalar_select %p98, %s99, %s100
      %p104 = pneg %p98
      %p105 = scmp.eq.s32.totalorder %s12, 4
      %p106 = por %p104, %p105
      %p107 = scmp.ne.s32.totalorder %s99, %s102
      %p108 = scmp.eq.s32.totalorder %s12, 0
      %p109 = por %p107, %p108
      %p110 = scmp.ne.s32.totalorder %s99, %s102
      %p111 = scmp.eq.s32.totalorder %s17, 4
      %p112 = por %p110, %p111
      %p113 = scmp.ne.s32.totalorder %s102, %s103
      %p114 = scmp.eq.s32.totalorder %s17, 0
      %p115 = por %p113, %p114
      %p116 = scmp.ne.s32.totalorder %s102, %s103
      %p117 = scmp.eq.s32.totalorder %s18, 4
      %p118 = por %p116, %p117
      %p120 = scmp.ne.s32.totalorder %s103, %s119
      %p121 = scmp.eq.s32.totalorder %s18, 0
      %p122 = por %p120, %p121
      %s123 = ssub.s32 %s19, %s38
      %p124 = scmp.eq.s32.totalorder %s123, 0
      %s126 = sadd.s32 %s125, 1
      %s127 = scalar_select %p124, %s125, %s126
      %p130 = pneg %p124
      %p131 = scmp.eq.s32.totalorder %s12, 4
      %p132 = por %p130, %p131
      %p133 = scmp.ne.s32.totalorder %s125, %s128
      %p134 = scmp.eq.s32.totalorder %s12, 0
      %p135 = por %p133, %p134
      %p136 = scmp.ne.s32.totalorder %s125, %s128
      %p137 = scmp.eq.s32.totalorder %s17, 4
      %p138 = por %p136, %p137
      %p139 = scmp.ne.s32.totalorder %s128, %s129
      %p140 = scmp.eq.s32.totalorder %s17, 0
      %p141 = por %p139, %p140
      %p142 = scmp.ne.s32.totalorder %s128, %s129
      %p143 = scmp.eq.s32.totalorder %s18, 4
      %p144 = por %p142, %p143
      %p146 = scmp.ne.s32.totalorder %s129, %s145
      %p147 = scmp.eq.s32.totalorder %s18, 0
      %p148 = por %p146, %p147
      %p149 = scmp.le.s32.totalorder 1, %s12
      %p150 = scmp.lt.s32.totalorder %s12, 6
      %p151 = pnand %p149, %p150
      %p152 = pneg %p151
      // Predicated region
      $region9: #{forward.7} parent=5 // pred_check
        _
      $region10: #{forward.7} parent=5 // pred_check_branch
        %154 = sbr.rel (%p151) target = $region12
      $region11: #{forward.7} parent=5 // pred_region
        %s155 = ssub.s32 %s12, 1
        // Predicated region
        $region13: #{forward.7} parent=11 // pred_check
          %p156 = pneg %p115
        $region14: #{forward.7} parent=11 // pred_check_branch
          %158 = sbr.rel (%p156) target = $region16
        $region15: #{forward.7} parent=11 // pred_region
          %p159 = scmp.lt.s32.totalorder %s22, 0
          %s160 = scalar_select %p159, %s22, 0
          %s161 = smul.addr %s160, 8
          %s162 = scalar_lea.vmem %s2, %s161
        $region16: #{forward.7} parent=11 // pred_fallthru
          _
      $region12: #{forward.7} parent=5 // pred_fallthru
        _
      %p163 = scmp.lt.s32.totalorder %s12, 5
      // Predicated region
      $region17: #{forward.7} parent=5 // pred_check
        %p164 = pneg %p163
      $region18: #{forward.7} parent=5 // pred_check_branch
        %166 = sbr.rel (%p164) target = $region20
      $region19: #{forward.7} parent=5 // pred_region
        // Predicated region
        $region21: #{forward.7} parent=19 // pred_check
          %p167 = pneg %p55
        $region22: #{forward.7} parent=19 // pred_check_branch
          %169 = sbr.rel (%p167) target = $region24
        $region23: #{forward.7} parent=19 // pred_region
          %s170 = sand.u32 %s45, 1
          %s171 = scalar_lea.sflag [#allocation4], %s170
          %s172 = sand.u32 %s45, 1
          %s173 = smul.addr %s172, 4
          %s174 = scalar_lea.vmem [#allocation3], %s173
          %s176 = ssub.s32 64, 64
          %177 = vsyncadd %s171, %s176
          %s178 = sadd.s32 %s21, %s19
          %s179 = sadd.s32 %s178, %s20
          %s180 = smul.addr %s179, 64
          %s181 = scalar_lea.hbm %s0, %s180
          %s183 = sshll.u32 %s174, 4
          %s184 = int_to_ptr.vmem [resolvable:$true] %s183
          %186 = dma.hbm_to_vmem [thread:$0]  %s181, 64, %s184, %s171
        $region24: #{forward.7} parent=19 // pred_fallthru
          _
        // Predicated region
        $region25: #{forward.7} parent=19 // pred_check
          %p187 = pneg %p83
        $region26: #{forward.7} parent=19 // pred_check_branch
          %189 = sbr.rel (%p187) target = $region28
        $region27: #{forward.7} parent=19 // pred_region
          %s190 = sand.u32 %s73, 1
          %s191 = sand.u32 %s73, 1
          %s192 = smul.addr %s191, 8
          %s193 = scalar_lea.vmem [#allocation5], %s192
          %s194 = smul.u32 2, %s21
          %s195 = smul.addr %s194, 5
          %s196 = sadd.s32 %s20, %s195
          %s197 = smul.addr %s196, 4
          %s198 = scalar_lea.vmem %s1, %s197
          // Predicated region
          $region29: #{forward.7} parent=27 // pred_check
            _
          $region30: #{forward.7} parent=27 // pred_check_branch
            %200 = sbr.rel (0) target = $region32
          $region31: #{forward.7} parent=27 // pred_region
            // Predicated region
            $region33: #{forward.7} parent=31 // pred_check
              _
            $region34: #{forward.7} parent=31 // pred_check_branch
              %202 = sbr.rel target = $region36
            $region35: #{forward.7} parent=31 // pred_region
              // Predicated region
              $region48: #{forward.7} parent=35 // pred_check
                _
              $region49: #{forward.7} parent=35 // pred_check_branch
                %219 = sbr.rel (0) target = $region51
              $region50: #{forward.7} parent=35 // pred_region
                loop: start=0, step=1, limit=1
                $region52: #{forward.7} parent=50 // loop_pre_header
                  _
                $region53: #{forward.7} parent=50 // loop_header
                  %s221 = sphi 0, %s225
                  %p222 = scmp.ge.s32.totalorder %s221, 1
                  %s226 = sphi %s198, %s198
                  %s227 = sphi %s193, %s193
                $region54: #{forward.7} parent=50 // loop_header_branch
                  %224 = sbr.rel (%p222) target = $region58
                $region55: #{forward.7} parent=50 // loop_body
                  _
                $region56: #{forward.7} parent=50 // loop_footer
                  %s225 = sadd.s32 1, %s221
                $region57: #{forward.7} parent=50 // loop_footer_branch
                  %220 = sbr.rel target = $region53
                $region58: #{forward.7} parent=50 // loop_exit
                  _
                loop: start=0, step=1, limit=1
                $region59: #{forward.7} parent=50 // loop_pre_header
                  _
                $region60: #{forward.7} parent=50 // loop_header
                  %s230 = sphi 0, %s234
                  %p231 = scmp.ge.s32.totalorder %s230, 1
                  %s235 = sphi %s198, %s198
                  %s236 = sphi %s193, %s193
                $region61: #{forward.7} parent=50 // loop_header_branch
                  %233 = sbr.rel (%p231) target = $region65
                $region62: #{forward.7} parent=50 // loop_body
                  %v237 = vld [vmem:[%s235] sm:$0xf]
                  %238 = vst [vmem:[%s236] sm:$0xf] %v237
                  %v239 = vld [vmem:[%s235 + $0x14] sm:$0xf]
                  %240 = vst [vmem:[%s236 + $0x4] sm:$0xf] %v239
                $region63: #{forward.7} parent=50 // loop_footer
                  %s234 = sadd.s32 1, %s230
                $region64: #{forward.7} parent=50 // loop_footer_branch
                  %229 = sbr.rel target = $region60
                $region65: #{forward.7} parent=50 // loop_exit
                  _
              $region51: #{forward.7} parent=35 // pred_fallthru
                _
            $region36: #{forward.7} parent=31 // pred_fallthru
              _
            // Predicated region
            $region37: #{forward.7} parent=31 // pred_check
              _
            $region38: #{forward.7} parent=31 // pred_check_branch
              %204 = sbr.rel (0) target = $region40
            $region39: #{forward.7} parent=31 // pred_region
              loop: start=0, step=1, limit=1
              $region41: #{forward.7} parent=39 // loop_pre_header
                _
              $region42: #{forward.7} parent=39 // loop_header
                %s207 = sphi 0, %s211
                %p208 = scmp.ge.s32.totalorder %s207, 1
                %s212 = sphi %s198, %s198
                %s213 = sphi %s193, %s193
              $region43: #{forward.7} parent=39 // loop_header_branch
                %210 = sbr.rel (%p208) target = $region47
              $region44: #{forward.7} parent=39 // loop_body
                %v214 = vld [vmem:[%s212] sm:$0xf]
                %215 = vst [vmem:[%s213] sm:$0xf] %v214
                %v216 = vld [vmem:[%s212 + $0x14] sm:$0xf]
                %217 = vst [vmem:[%s213 + $0x4] sm:$0xf] %v216
              $region45: #{forward.7} parent=39 // loop_footer
                %s211 = sadd.s32 1, %s207
              $region46: #{forward.7} parent=39 // loop_footer_branch
                %206 = sbr.rel target = $region42
              $region47: #{forward.7} parent=39 // loop_exit
                _
            $region40: #{forward.7} parent=31 // pred_fallthru
              _
          $region32: #{forward.7} parent=27 // pred_fallthru
            _
          %241 = vnop
        $region28: #{forward.7} parent=19 // pred_fallthru
          _
      $region20: #{forward.7} parent=5 // pred_fallthru
        _
      %p242 = scmp.le.s32.totalorder 1, %s12
      %p243 = scmp.lt.s32.totalorder %s12, 6
      %p244 = pnand %p242, %p243
      %p245 = pneg %p244
      // Predicated region
      $region66: #{forward.7} parent=5 // pred_check
        _
      $region67: #{forward.7} parent=5 // pred_check_branch
        %247 = sbr.rel (%p244) target = $region69
      $region68: #{forward.7} parent=5 // pred_region
        %s248 = ssub.s32 %s12, 1
        %s249 = sand.u32 %s48, 1
        %s250 = scalar_lea.sflag [#allocation4], %s249
        %s251 = sand.u32 %s48, 1
        %s252 = smul.addr %s251, 4
        %s253 = scalar_lea.vmem [#allocation3], %s252
        // Predicated region
        $region70: #{forward.7} parent=68 // pred_check
          %p254 = pneg %p61
        $region71: #{forward.7} parent=68 // pred_check_branch
          %256 = sbr.rel (%p254) target = $region73
        $region72: #{forward.7} parent=68 // pred_region
          %257 = dma.done %s250, 64
        $region73: #{forward.7} parent=68 // pred_fallthru
          _
        %s258 = sand.u32 %s76, 1
        %s259 = sand.u32 %s76, 1
        %s260 = smul.addr %s259, 8
        %s261 = scalar_lea.vmem [#allocation5], %s260
        // Predicated region
        $region74: #{forward.7} parent=68 // pred_check
          %p262 = pneg %p89
        $region75: #{forward.7} parent=68 // pred_check_branch
          %264 = sbr.rel (%p262) target = $region77
        $region76: #{forward.7} parent=68 // pred_region
          _
        $region77: #{forward.7} parent=68 // pred_fallthru
          _
        %s265 = sand.u32 %s48, 1
        %s266 = scalar_lea.sflag [#allocation4], %s265
        %s267 = sand.u32 %s48, 1
        %s268 = smul.addr %s267, 4
        %s269 = scalar_lea.vmem [#allocation3], %s268
        %p270 = pneg %p61
        %p271 = pneg %p58
        %s272 = sand.u32 %s76, 1
        %s273 = sand.u32 %s76, 1
        %s274 = smul.addr %s273, 8
        %s275 = scalar_lea.vmem [#allocation5], %s274
        %p276 = pneg %p89
        %p277 = pneg %p86
        %p278 = scmp.lt.s32.totalorder %s22, 0
        %s279 = scalar_select %p278, %s22, 0
        %s280 = smul.addr %s279, 8
        %s281 = scalar_lea.vmem %s2, %s280
        %p282 = pneg %p115
        %p283 = pneg %p112
        %p284 = pneg %p141
        %p285 = pneg %p138
        %p286 = scmp.lt.s32.totalorder %s22, 0
        %s287 = scalar_select %p286, %s22, 0
        %s288 = smul.addr %s287, 8
        %s289 = scalar_lea.vmem %s3, %s288
        %s290 = smul.u32 2, %s24
        %p291 = scmp.lt.s32.totalorder %s22, 0
        %s292 = scalar_select %p291, %s22, 0
        %s293 = smul.addr %s292, 8
        %s294 = scalar_lea.vmem %s2, %s293
        %p295 = scmp.lt.s32.totalorder %s22, 0
        %s296 = scalar_select %p295, %s22, 0
        %s297 = smul.addr %s296, 8
        %s298 = scalar_lea.vmem %s3, %s297
        %p300 = scmp.eq.s32.totalorder %s23, 0
        %p301 = scmp.eq.s32.totalorder %s24, 0
        %p302 = pnand %p300, %p301
        %p303 = pneg %p302
        // Predicated region
        $region78: #{forward.7} parent=68 // pred_check
          _
        $region79: #{forward.7} parent=68 // pred_check_branch
          %305 = sbr.rel (%p302) target = $region81
        $region80: #{forward.7} parent=68 // pred_region
          %306 = vst [vmem:[#allocation2] sm:$0xff] 0.0
        $region81: #{forward.7} parent=68 // pred_fallthru
          _
        %v307 = vld [vmem:[#allocation2] sm:$0xff]
        %v308 = vld [vmem:[%s253] sm:$0xf]
        %v309 = vld [vmem:[%s261] sm:$0xf]
        %v310 = vld [vmem:[%s261 + $0x4] sm:$0xf]
        %v313 = vunpack.c.l.b16 %v309
        %v314 = vunpack.c.l.b16 %v310
        %v315 = vpack.c.b16 %v314, %v313
        %vm317 = vcmask 130048
        %v319 = vsel %vm317, %v308, 0
        %321 = vmatprep.subr.bf16.mxu0 0
        %322 = vmatpush1.bf16.msra.mxu0 %v315
        %323 = vmatprep.subr.bf16.mxu0 0
        %324 = vmatpush1.bf16.msra.mxu0 0
        %325 = vmatprep.subr.bf16.mxu0 0
        %326 = vmatpush1.bf16.msra.mxu0 0
        %327 = vmatprep.subr.bf16.mxu0 0
        %328 = vmatpush1.bf16.msra.mxu0 0
        %329 = vmatprep.subr.bf16.mxu0 0
        %330 = vmatpush1.bf16.msra.mxu0 0
        %331 = vmatprep.subr.bf16.mxu0 0
        %332 = vmatpush1.bf16.msra.mxu0 0
        %333 = vmatprep.subr.bf16.mxu0 0
        %334 = vmatpush1.bf16.msra.mxu0 0
        %335 = vmatprep.subr.bf16.mxu0 0
        %336 = vmatpush1.bf16.msra.mxu0 0
        %337 = vmatprep.subr.bf16.mxu0 0
        %338 = vmatpush1.bf16.msra.mxu0 0
        %339 = vmatprep.subr.bf16.mxu0 0
        %340 = vmatpush1.bf16.msra.mxu0 0
        %341 = vmatprep.subr.bf16.mxu0 0
        %342 = vmatpush1.bf16.msra.mxu0 0
        %343 = vmatprep.subr.bf16.mxu0 0
        %344 = vmatpush1.bf16.msra.mxu0 0
        %345 = vmatprep.subr.bf16.mxu0 0
        %346 = vmatpush1.bf16.msra.mxu0 0
        %347 = vmatprep.subr.bf16.mxu0 0
        %348 = vmatpush1.bf16.msra.mxu0 0
        %349 = vmatprep.subr.bf16.mxu0 0
        %350 = vmatpush1.bf16.msra.mxu0 0
        %351 = vmatprep.subr.bf16.mxu0 0
        %352 = vmatpush1.bf16.msra.mxu0 0
        %353 = vmatprep.mubr.bf16.mxu0 0
        %354 = vmatmul.mubr.bf16.gmra.mrb[0].mxu0 %v319
        %v355 = vpop.f32.mrb[0].mxu0
        %v356 = vadd.f32 0.0, %v355
        %v357 = vpop.f32.mrb[0].mxu0
        %v358 = vpop.f32.mrb[0].mxu0
        %v359 = vpop.f32.mrb[0].mxu0
        %360 = vdwg.mxu0
        %v361 = vadd.f32 %v307, %v356
        %362 = vst [vmem:[#allocation2] sm:$0xff] %v361
        %p363 = scmp.eq.s32.totalorder %s23, 4
        %p364 = pnand %p363, %p301
        %p365 = pneg %p364
        // Predicated region
        $region82: #{forward.7} parent=68 // pred_check
          _
        $region83: #{forward.7} parent=68 // pred_check_branch
          %367 = sbr.rel (%p364) target = $region85
        $region84: #{forward.7} parent=68 // pred_region
          %v368 = vld [vmem:[#allocation2] sm:$0xff]
          %v369 = vld [vmem:[%s294] sm:$0xff]
          %371 = vset.pattern.permute.xlu0 0
          %372 = vperm.xlu0 %371, %v369
          %v373 = vpop.permute.xlu0 %372
          %v375 = vmul.f32 %v368, %v373
          %376 = vst [vmem:[%s298] sm:$0xff] %v375
        $region85: #{forward.7} parent=68 // pred_fallthru
          _
        %p377 = scmp.lt.s32.totalorder %s22, 0
        %s378 = scalar_select %p377, %s22, 0
        %s379 = smul.addr %s378, 8
        %s380 = scalar_lea.vmem %s3, %s379
        // Predicated region
        $region86: #{forward.7} parent=68 // pred_check
          %p381 = pneg %p138
        $region87: #{forward.7} parent=68 // pred_check_branch
          %383 = sbr.rel (%p381) target = $region89
        $region88: #{forward.7} parent=68 // pred_region
          _
        $region89: #{forward.7} parent=68 // pred_fallthru
          _
        // Predicated region
        $region90: #{forward.7} parent=68 // pred_check
          %p384 = pneg %p138
        $region91: #{forward.7} parent=68 // pred_check_branch
          %386 = sbr.rel (%p384) target = $region93
        $region92: #{forward.7} parent=68 // pred_region
          %p387 = scmp.lt.s32.totalorder %s22, 0
          %s388 = scalar_select %p387, %s22, 0
          %s389 = smul.addr %s388, 8
          %s390 = scalar_lea.vmem %s3, %s389
        $region93: #{forward.7} parent=68 // pred_fallthru
          _
      $region69: #{forward.7} parent=5 // pred_fallthru
        _
      %p391 = scmp.le.s32.totalorder 2, %s12
      // Predicated region
      $region94: #{forward.7} parent=5 // pred_check
        %p392 = pneg %p391
      $region95: #{forward.7} parent=5 // pred_check_branch
        %394 = sbr.rel (%p392) target = $region97
      $region96: #{forward.7} parent=5 // pred_region
        %s395 = ssub.s32 %s12, 2
      $region97: #{forward.7} parent=5 // pred_fallthru
        _
    $region6: #{forward.7} parent=1 // loop_footer
      %s16 = sadd.s32 1, %s12
    $region7: #{forward.7} parent=1 // loop_footer_branch
      %11 = sbr.rel target = $region3
    $region8: #{forward.7} parent=1 // loop_exit
      _
    %396 = vsyncpa [#allocation4], 1
    %s397 = scalar_lea.sflag [#allocation4], 1
    %398 = vsyncpa %s397, 1

// kernel: forward.8
$region0: #{forward.8}
  #allocation0 [shape = 'u32[]', space=smem, size = 0x4, offset = 0x4, fixed_abs, tag = 'smem constant byte address 0x4 - core index']
  #allocation1 [shape = 'u32[144,128]{1,0:T(1,128)}', space=vmem, size = 0x12000, scoped, tag = 'internal scratch']
  #allocation2 [shape = 'f32[8,128]{1,0:T(8,128)}', space=vmem, size = 0x1000, scoped, tag = 'scratch operand']
  %s0 = inlined_call_operand.vmem [shape: bf16[5,16,8], index: 0, kind: input, shape index: {}]
  %s1 = inlined_call_operand.vmem [shape: bf16[8,640], index: 1, kind: input, shape index: {}]
  %s2 = inlined_call_operand.vmem [shape: f32[16,1], index: 2, kind: input, shape index: {}]
  %s3 = inlined_call_operand.vmem [shape: f32[16,128], index: 3, kind: output, shape index: {}]
  %s4 = sld [smem:[#allocation0]]
  $region53: #{forward.8} parent=0
    _
  %s6 = ssub.s32 1, %s4
  %s7 = scalar_select 0, %s6, %s4
  loop: start=0, step=1, limit=12
  $region2: #{forward.8} parent=0 // loop_pre_header
    _
  $region3: #{forward.8} parent=0 // loop_header
    %s9 = sphi 0, %s13
    %p10 = scmp.ge.s32.totalorder %s9, 12
    %s16 = sphi 0, %s35
    %s17 = sphi 0, %s31
    %s18 = sphi 0, %s27
    %s19 = sphi 0, %s16
    %s20 = sphi 0, %s17
    %s21 = sphi 0, %s18
    %s22 = sphi 0, %s19
    %s23 = sphi 0, %s20
    %s24 = sphi 0, %s21
    %s42 = sphi 0, %s44
    %s45 = sphi 0, %s42
    %s46 = sphi 0, %s45
    %s62 = sphi 0, %s46
    %s70 = sphi 0, %s72
    %s73 = sphi 0, %s70
    %s74 = sphi 0, %s73
    %s90 = sphi 0, %s74
    %s96 = sphi 0, %s98
    %s99 = sphi 0, %s96
    %s100 = sphi 0, %s99
    %s116 = sphi 0, %s100
    %s122 = sphi 0, %s124
    %s125 = sphi 0, %s122
    %s126 = sphi 0, %s125
    %s142 = sphi 0, %s126
  $region4: #{forward.8} parent=0 // loop_header_branch
    %12 = sbr.rel (%p10) target = $region8
  $region5: #{forward.8} parent=0 // loop_body
    %s14 = ssub.s32 %s9, 1
    %s15 = ssub.s32 %s9, 2
    %s25 = sadd.s32 1, %s18
    %p26 = scmp.ge.s32.totalorder %s25, 1
    %s27 = scalar_select %p26, 0, %s25
    %s28 = sadd.s32 1, %s17
    %s29 = scalar_select %p26, %s28, %s17
    %p30 = scmp.ge.s32.totalorder %s29, 5
    %s31 = scalar_select %p30, 0, %s29
    %s32 = sadd.s32 1, %s16
    %s33 = scalar_select %p30, %s32, %s16
    %p34 = scmp.ge.s32.totalorder %s33, 2
    %s35 = scalar_select %p34, 0, %s33
    %s36 = ssub.s32 %s17, %s31
    %s37 = ssub.s32 %s16, %s35
    %s38 = sor.u32 %s36, %s37
    %s39 = ssub.s32 %s18, %s27
    %s40 = sor.u32 %s38, %s39
    %p41 = scmp.eq.s32.totalorder %s40, 0
    %s43 = sadd.s32 %s42, 1
    %s44 = scalar_select %p41, %s42, %s43
    %p47 = pneg %p41
    %p48 = scmp.eq.s32.totalorder %s9, 9
    %p49 = por %p47, %p48
    %p50 = scmp.ne.s32.totalorder %s42, %s45
    %p51 = scmp.eq.s32.totalorder %s9, 0
    %p52 = por %p50, %p51
    %p53 = scmp.ne.s32.totalorder %s42, %s45
    %p54 = scmp.eq.s32.totalorder %s14, 9
    %p55 = por %p53, %p54
    %p56 = scmp.ne.s32.totalorder %s45, %s46
    %p57 = scmp.eq.s32.totalorder %s14, 0
    %p58 = por %p56, %p57
    %p59 = scmp.ne.s32.totalorder %s45, %s46
    %p60 = scmp.eq.s32.totalorder %s15, 9
    %p61 = por %p59, %p60
    %p63 = scmp.ne.s32.totalorder %s46, %s62
    %p64 = scmp.eq.s32.totalorder %s15, 0
    %p65 = por %p63, %p64
    %s66 = ssub.s32 %s18, %s27
    %s67 = ssub.s32 %s17, %s31
    %s68 = sor.u32 %s66, %s67
    %p69 = scmp.eq.s32.totalorder %s68, 0
    %s71 = sadd.s32 %s70, 1
    %s72 = scalar_select %p69, %s70, %s71
    %p75 = pneg %p69
    %p76 = scmp.eq.s32.totalorder %s9, 9
    %p77 = por %p75, %p76
    %p78 = scmp.ne.s32.totalorder %s70, %s73
    %p79 = scmp.eq.s32.totalorder %s9, 0
    %p80 = por %p78, %p79
    %p81 = scmp.ne.s32.totalorder %s70, %s73
    %p82 = scmp.eq.s32.totalorder %s14, 9
    %p83 = por %p81, %p82
    %p84 = scmp.ne.s32.totalorder %s73, %s74
    %p85 = scmp.eq.s32.totalorder %s14, 0
    %p86 = por %p84, %p85
    %p87 = scmp.ne.s32.totalorder %s73, %s74
    %p88 = scmp.eq.s32.totalorder %s15, 9
    %p89 = por %p87, %p88
    %p91 = scmp.ne.s32.totalorder %s74, %s90
    %p92 = scmp.eq.s32.totalorder %s15, 0
    %p93 = por %p91, %p92
    %s94 = ssub.s32 %s16, %s35
    %p95 = scmp.eq.s32.totalorder %s94, 0
    %s97 = sadd.s32 %s96, 1
    %s98 = scalar_select %p95, %s96, %s97
    %p101 = pneg %p95
    %p102 = scmp.eq.s32.totalorder %s9, 9
    %p103 = por %p101, %p102
    %p104 = scmp.ne.s32.totalorder %s96, %s99
    %p105 = scmp.eq.s32.totalorder %s9, 0
    %p106 = por %p104, %p105
    %p107 = scmp.ne.s32.totalorder %s96, %s99
    %p108 = scmp.eq.s32.totalorder %s14, 9
    %p109 = por %p107, %p108
    %p110 = scmp.ne.s32.totalorder %s99, %s100
    %p111 = scmp.eq.s32.totalorder %s14, 0
    %p112 = por %p110, %p111
    %p113 = scmp.ne.s32.totalorder %s99, %s100
    %p114 = scmp.eq.s32.totalorder %s15, 9
    %p115 = por %p113, %p114
    %p117 = scmp.ne.s32.totalorder %s100, %s116
    %p118 = scmp.eq.s32.totalorder %s15, 0
    %p119 = por %p117, %p118
    %s120 = ssub.s32 %s16, %s35
    %p121 = scmp.eq.s32.totalorder %s120, 0
    %s123 = sadd.s32 %s122, 1
    %s124 = scalar_select %p121, %s122, %s123
    %p127 = pneg %p121
    %p128 = scmp.eq.s32.totalorder %s9, 9
    %p129 = por %p127, %p128
    %p130 = scmp.ne.s32.totalorder %s122, %s125
    %p131 = scmp.eq.s32.totalorder %s9, 0
    %p132 = por %p130, %p131
    %p133 = scmp.ne.s32.totalorder %s122, %s125
    %p134 = scmp.eq.s32.totalorder %s14, 9
    %p135 = por %p133, %p134
    %p136 = scmp.ne.s32.totalorder %s125, %s126
    %p137 = scmp.eq.s32.totalorder %s14, 0
    %p138 = por %p136, %p137
    %p139 = scmp.ne.s32.totalorder %s125, %s126
    %p140 = scmp.eq.s32.totalorder %s15, 9
    %p141 = por %p139, %p140
    %p143 = scmp.ne.s32.totalorder %s126, %s142
    %p144 = scmp.eq.s32.totalorder %s15, 0
    %p145 = por %p143, %p144
    %p146 = scmp.le.s32.totalorder 1, %s9
    %p147 = scmp.lt.s32.totalorder %s9, 11
    %p148 = pnand %p146, %p147
    %p149 = pneg %p148
    // Predicated region
    $region9: #{forward.8} parent=5 // pred_check
      _
    $region10: #{forward.8} parent=5 // pred_check_branch
      %151 = sbr.rel (%p148) target = $region12
    $region11: #{forward.8} parent=5 // pred_region
      %s152 = ssub.s32 %s9, 1
    $region12: #{forward.8} parent=5 // pred_fallthru
      _
    %p153 = scmp.lt.s32.totalorder %s9, 10
    // Predicated region
    $region13: #{forward.8} parent=5 // pred_check
      %p154 = pneg %p153
    $region14: #{forward.8} parent=5 // pred_check_branch
      %156 = sbr.rel (%p154) target = $region16
    $region15: #{forward.8} parent=5 // pred_region
      // Predicated region
      $region17: #{forward.8} parent=15 // pred_check
        %p157 = pneg %p52
      $region18: #{forward.8} parent=15 // pred_check_branch
        %159 = sbr.rel (%p157) target = $region20
      $region19: #{forward.8} parent=15 // pred_region
        %p160 = scmp.lt.s32.totalorder %s17, 4
        %s161 = scalar_select %p160, %s17, 4
        %p162 = scmp.lt.s32.totalorder %s16, 1
        %s163 = scalar_select %p162, %s16, 1
        %p164 = scmp.lt.s32.totalorder %s18, 0
        %s165 = scalar_select %p164, %s18, 0
        %s166 = sadd.s32 %s165, %s163
        %s167 = smul.addr %s161, 2
        %s168 = sadd.s32 %s166, %s167
        %s169 = smul.addr %s168, 4
        %s170 = scalar_lea.vmem %s0, %s169
      $region20: #{forward.8} parent=15 // pred_fallthru
        _
      // Predicated region
      $region21: #{forward.8} parent=15 // pred_check
        %p171 = pneg %p80
      $region22: #{forward.8} parent=15 // pred_check_branch
        %173 = sbr.rel (%p171) target = $region24
      $region23: #{forward.8} parent=15 // pred_region
        %p174 = scmp.lt.s32.totalorder %s18, 0
        %s175 = scalar_select %p174, %s18, 0
        %p176 = scmp.lt.s32.totalorder %s17, 4
        %s177 = scalar_select %p176, %s17, 4
        %s178 = smul.addr %s175, 5
        %s179 = sadd.s32 %s177, %s178
        %s180 = smul.addr %s179, 4
        %s181 = scalar_lea.vmem %s1, %s180
      $region24: #{forward.8} parent=15 // pred_fallthru
        _
      // Predicated region
      $region25: #{forward.8} parent=15 // pred_check
        %p182 = pneg %p106
      $region26: #{forward.8} parent=15 // pred_check_branch
        %184 = sbr.rel (%p182) target = $region28
      $region27: #{forward.8} parent=15 // pred_region
        %p185 = scmp.lt.s32.totalorder %s16, 1
        %s186 = scalar_select %p185, %s16, 1
        %s187 = smul.addr %s186, 8
        %s188 = scalar_lea.vmem %s2, %s187
      $region28: #{forward.8} parent=15 // pred_fallthru
        _
    $region16: #{forward.8} parent=5 // pred_fallthru
      _
    %p189 = scmp.le.s32.totalorder 1, %s9
    %p190 = scmp.lt.s32.totalorder %s9, 11
    %p191 = pnand %p189, %p190
    %p192 = pneg %p191
    // Predicated region
    $region29: #{forward.8} parent=5 // pred_check
      _
    $region30: #{forward.8} parent=5 // pred_check_branch
      %194 = sbr.rel (%p191) target = $region32
    $region31: #{forward.8} parent=5 // pred_region
      %s195 = ssub.s32 %s9, 1
      %p196 = scmp.lt.s32.totalorder %s20, 4
      %s197 = scalar_select %p196, %s20, 4
      %p198 = scmp.lt.s32.totalorder %s19, 1
      %s199 = scalar_select %p198, %s19, 1
      %p200 = scmp.lt.s32.totalorder %s21, 0
      %s201 = scalar_select %p200, %s21, 0
      %s202 = sadd.s32 %s201, %s199
      %s203 = smul.addr %s197, 2
      %s204 = sadd.s32 %s202, %s203
      %s205 = smul.addr %s204, 4
      %s206 = scalar_lea.vmem %s0, %s205
      %p207 = pneg %p58
      %p208 = pneg %p55
      %p209 = scmp.lt.s32.totalorder %s21, 0
      %s210 = scalar_select %p209, %s21, 0
      %p211 = scmp.lt.s32.totalorder %s20, 4
      %s212 = scalar_select %p211, %s20, 4
      %s213 = smul.addr %s210, 5
      %s214 = sadd.s32 %s212, %s213
      %s215 = smul.addr %s214, 4
      %s216 = scalar_lea.vmem %s1, %s215
      %p217 = pneg %p86
      %p218 = pneg %p83
      %p219 = scmp.lt.s32.totalorder %s19, 1
      %s220 = scalar_select %p219, %s19, 1
      %s221 = smul.addr %s220, 8
      %s222 = scalar_lea.vmem %s2, %s221
      %p223 = pneg %p112
      %p224 = pneg %p109
      %p225 = pneg %p138
      %p226 = pneg %p135
      %p227 = scmp.lt.s32.totalorder %s19, 1
      %s228 = scalar_select %p227, %s19, 1
      %s229 = smul.addr %s228, 8
      %s230 = scalar_lea.vmem %s3, %s229
      %p231 = scmp.lt.s32.totalorder %s20, 4
      %s232 = scalar_select %p231, %s20, 4
      %p233 = scmp.lt.s32.totalorder %s19, 1
      %s234 = scalar_select %p233, %s19, 1
      %p235 = scmp.lt.s32.totalorder %s21, 0
      %s236 = scalar_select %p235, %s21, 0
      %s237 = sadd.s32 %s236, %s234
      %s238 = smul.addr %s232, 2
      %s239 = sadd.s32 %s237, %s238
      %s240 = smul.addr %s239, 4
      %s241 = scalar_lea.vmem %s0, %s240
      %p242 = scmp.lt.s32.totalorder %s21, 0
      %s243 = scalar_select %p242, %s21, 0
      %p244 = scmp.lt.s32.totalorder %s20, 4
      %s245 = scalar_select %p244, %s20, 4
      %s246 = smul.addr %s243, 5
      %s247 = sadd.s32 %s245, %s246
      %s248 = smul.addr %s247, 4
      %s249 = scalar_lea.vmem %s1, %s248
      %p250 = scmp.lt.s32.totalorder %s19, 1
      %s251 = scalar_select %p250, %s19, 1
      %s252 = smul.addr %s251, 8
      %s253 = scalar_lea.vmem %s2, %s252
      %p254 = scmp.lt.s32.totalorder %s19, 1
      %s255 = scalar_select %p254, %s19, 1
      %s256 = smul.addr %s255, 8
      %s257 = scalar_lea.vmem %s3, %s256
      %p259 = scmp.eq.s32.totalorder %s20, 0
      %p260 = scmp.eq.s32.totalorder %s21, 0
      %p261 = pnand %p259, %p260
      %p262 = pneg %p261
      // Predicated region
      $region33: #{forward.8} parent=31 // pred_check
        _
      $region34: #{forward.8} parent=31 // pred_check_branch
        %264 = sbr.rel (%p261) target = $region36
      $region35: #{forward.8} parent=31 // pred_region
        %265 = vst [vmem:[#allocation2] sm:$0xff] 0.0
      $region36: #{forward.8} parent=31 // pred_fallthru
        _
      %v266 = vld [vmem:[#allocation2] sm:$0xff]
      %v267 = vld [vmem:[%s241] sm:$0xf]
      %v268 = vld [vmem:[%s249] sm:$0xf]
      %vm269 = vcmask 64512
      %v271 = vsel %vm269, %v267, 0
      %vm273 = vcmask 1043456
      %v275 = vsel %vm273, %v268, 0
      %277 = vmatprep.subr.bf16.mxu0 0
      %278 = vmatpush1.bf16.msra.mxu0 %v275
      %279 = vmatprep.subr.bf16.mxu0 0
      %280 = vmatpush1.bf16.msra.mxu0 0
      %281 = vmatprep.subr.bf16.mxu0 0
      %282 = vmatpush1.bf16.msra.mxu0 0
      %283 = vmatprep.subr.bf16.mxu0 0
      %284 = vmatpush1.bf16.msra.mxu0 0
      %285 = vmatprep.subr.bf16.mxu0 0
      %286 = vmatpush1.bf16.msra.mxu0 0
      %287 = vmatprep.subr.bf16.mxu0 0
      %288 = vmatpush1.bf16.msra.mxu0 0
      %289 = vmatprep.subr.bf16.mxu0 0
      %290 = vmatpush1.bf16.msra.mxu0 0
      %291 = vmatprep.subr.bf16.mxu0 0
      %292 = vmatpush1.bf16.msra.mxu0 0
      %293 = vmatprep.subr.bf16.mxu0 0
      %294 = vmatpush1.bf16.msra.mxu0 0
      %295 = vmatprep.subr.bf16.mxu0 0
      %296 = vmatpush1.bf16.msra.mxu0 0
      %297 = vmatprep.subr.bf16.mxu0 0
      %298 = vmatpush1.bf16.msra.mxu0 0
      %299 = vmatprep.subr.bf16.mxu0 0
      %300 = vmatpush1.bf16.msra.mxu0 0
      %301 = vmatprep.subr.bf16.mxu0 0
      %302 = vmatpush1.bf16.msra.mxu0 0
      %303 = vmatprep.subr.bf16.mxu0 0
      %304 = vmatpush1.bf16.msra.mxu0 0
      %305 = vmatprep.subr.bf16.mxu0 0
      %306 = vmatpush1.bf16.msra.mxu0 0
      %307 = vmatprep.subr.bf16.mxu0 0
      %308 = vmatpush1.bf16.msra.mxu0 0
      %309 = vmatprep.mubr.bf16.mxu0 0
      %310 = vmatmul.mubr.bf16.gmra.mrb[0].mxu0 %v271
      %v311 = vpop.f32.mrb[0].mxu0
      %v312 = vadd.f32 0.0, %v311
      %v313 = vpop.f32.mrb[0].mxu0
      %v314 = vpop.f32.mrb[0].mxu0
      %v315 = vpop.f32.mrb[0].mxu0
      %316 = vdwg.mxu0
      %v317 = vadd.f32 %v266, %v312
      %318 = vst [vmem:[#allocation2] sm:$0xff] %v317
      %p319 = scmp.eq.s32.totalorder %s20, 4
      %p320 = pnand %p319, %p260
      %p321 = pneg %p320
      // Predicated region
      $region37: #{forward.8} parent=31 // pred_check
        _
      $region38: #{forward.8} parent=31 // pred_check_branch
        %323 = sbr.rel (%p320) target = $region40
      $region39: #{forward.8} parent=31 // pred_region
        %v324 = vld [vmem:[#allocation2] sm:$0xff]
        %v325 = vld [vmem:[%s253] sm:$0xff]
        %327 = vset.pattern.permute.xlu0 0
        %328 = vperm.xlu0 %327, %v325
        %v329 = vpop.permute.xlu0 %328
        %v331 = vmul.f32 %v324, %v329
        %332 = vst [vmem:[%s257] sm:$0xff] %v331
      $region40: #{forward.8} parent=31 // pred_fallthru
        _
      %p333 = scmp.lt.s32.totalorder %s19, 1
      %s334 = scalar_select %p333, %s19, 1
      %s335 = smul.addr %s334, 8
      %s336 = scalar_lea.vmem %s3, %s335
      // Predicated region
      $region41: #{forward.8} parent=31 // pred_check
        %p337 = pneg %p135
      $region42: #{forward.8} parent=31 // pred_check_branch
        %339 = sbr.rel (%p337) target = $region44
      $region43: #{forward.8} parent=31 // pred_region
        _
      $region44: #{forward.8} parent=31 // pred_fallthru
        _
    $region32: #{forward.8} parent=5 // pred_fallthru
      _
    %p340 = scmp.le.s32.totalorder 2, %s9
    // Predicated region
    $region45: #{forward.8} parent=5 // pred_check
      %p341 = pneg %p340
    $region46: #{forward.8} parent=5 // pred_check_branch
      %343 = sbr.rel (%p341) target = $region48
    $region47: #{forward.8} parent=5 // pred_region
      %s344 = ssub.s32 %s9, 2
      // Predicated region
      $region49: #{forward.8} parent=47 // pred_check
        %p345 = pneg %p141
      $region50: #{forward.8} parent=47 // pred_check_branch
        %347 = sbr.rel (%p345) target = $region52
      $region51: #{forward.8} parent=47 // pred_region
        %p348 = scmp.lt.s32.totalorder %s22, 1
        %s349 = scalar_select %p348, %s22, 1
        %s350 = smul.addr %s349, 8
        %s351 = scalar_lea.vmem %s3, %s350
      $region52: #{forward.8} parent=47 // pred_fallthru
        _
    $region48: #{forward.8} parent=5 // pred_fallthru
      _
  $region6: #{forward.8} parent=0 // loop_footer
    %s13 = sadd.s32 1, %s9
  $region7: #{forward.8} parent=0 // loop_footer_branch
    %8 = sbr.rel target = $region3
  $region8: #{forward.8} parent=0 // loop_exit
    _

// kernel: forward.5
$region0: #{forward.5}
  #allocation0 [shape = 'u32[]', space=smem, size = 0x4, offset = 0x4, fixed_abs, tag = 'smem constant byte address 0x4 - core index']
  #allocation1 [shape = 'u32[144,128]{1,0:T(1,128)}', space=vmem, size = 0x12000, scoped, tag = 'internal scratch']
  #allocation2 [shape = 'f32[8,640]{1,0:T(8,128)}', space=vmem, size = 0x5000, scoped, tag = 'scratch operand']
  %s0 = inlined_call_operand.hbm [shape: f32[16,32], index: 0, kind: input, shape index: {}]
  %s1 = inlined_call_operand.hbm [shape: f32[32,640], index: 1, kind: input, shape index: {}]
  %s2 = inlined_call_operand.vmem [shape: bf16[16,640], index: 2, kind: output, shape index: {}]
  %s3 = sld [smem:[#allocation0]]
  $region57: #{forward.5} parent=0
    _
  %s5 = ssub.s32 1, %s3
  %s6 = scalar_select 0, %s5, %s3
  $region1: #{forward.5} parent=0
    #allocation3 [shape = 'u8[8192]{0}', space=vmem, size = 0x2000, scoped, tag = 'input window, operand 0']
    #allocation4 [shape = 's32[2]{0}', space=sflag, size = 0x8, scoped, tag = 'scoped memory for forward.5']
    #allocation5 [shape = 'u8[81920]{0}', space=vmem, size = 0x14000, scoped, tag = 'input window, operand 1, single buffered']
    #allocation6 [shape = 's32[1]{0}', space=sflag, size = 0x4, scoped, tag = 'scoped memory for forward.5']
    %7 = vsyncpa [#allocation4], 0
    %s8 = scalar_lea.sflag [#allocation4], 1
    %9 = vsyncpa %s8, 0
    %10 = vsyncpa [#allocation6], 0
    loop: start=0, step=1, limit=4
    $region2: #{forward.5} parent=1 // loop_pre_header
      _
    $region3: #{forward.5} parent=1 // loop_header
      %s12 = sphi 0, %s16
      %p13 = scmp.ge.s32.totalorder %s12, 4
      %s19 = sphi 0, %s31
      %s20 = sphi 0, %s27
      %s21 = sphi 0, %s19
      %s22 = sphi 0, %s20
      %s23 = sphi 0, %s21
      %s24 = sphi 0, %s22
      %s36 = sphi 0, %s38
      %s39 = sphi 0, %s36
      %s40 = sphi 0, %s39
      %s56 = sphi 0, %s40
      %s62 = sphi 0, %s64
      %s65 = sphi 0, %s62
      %s66 = sphi 0, %s65
      %s82 = sphi 0, %s66
      %s88 = sphi 0, %s90
      %s91 = sphi 0, %s88
      %s92 = sphi 0, %s91
      %s108 = sphi 0, %s92
    $region4: #{forward.5} parent=1 // loop_header_branch
      %15 = sbr.rel (%p13) target = $region8
    $region5: #{forward.5} parent=1 // loop_body
      %s17 = ssub.s32 %s12, 1
      %s18 = ssub.s32 %s12, 2
      %s25 = sadd.s32 1, %s20
      %p26 = scmp.ge.s32.totalorder %s25, 1
      %s27 = scalar_select %p26, 0, %s25
      %s28 = sadd.s32 1, %s19
      %s29 = scalar_select %p26, %s28, %s19
      %p30 = scmp.ge.s32.totalorder %s29, 2
      %s31 = scalar_select %p30, 0, %s29
      %s32 = ssub.s32 %s19, %s31
      %s33 = ssub.s32 %s20, %s27
      %s34 = sor.u32 %s32, %s33
      %p35 = scmp.eq.s32.totalorder %s34, 0
      %s37 = sadd.s32 %s36, 1
      %s38 = scalar_select %p35, %s36, %s37
      %p41 = pneg %p35
      %p42 = scmp.eq.s32.totalorder %s12, 1
      %p43 = por %p41, %p42
      %p44 = scmp.ne.s32.totalorder %s36, %s39
      %p45 = scmp.eq.s32.totalorder %s12, 0
      %p46 = por %p44, %p45
      %p47 = scmp.ne.s32.totalorder %s36, %s39
      %p48 = scmp.eq.s32.totalorder %s17, 1
      %p49 = por %p47, %p48
      %p50 = scmp.ne.s32.totalorder %s39, %s40
      %p51 = scmp.eq.s32.totalorder %s17, 0
      %p52 = por %p50, %p51
      %p53 = scmp.ne.s32.totalorder %s39, %s40
      %p54 = scmp.eq.s32.totalorder %s18, 1
      %p55 = por %p53, %p54
      %p57 = scmp.ne.s32.totalorder %s40, %s56
      %p58 = scmp.eq.s32.totalorder %s18, 0
      %p59 = por %p57, %p58
      %s60 = ssub.s32 %s20, %s27
      %p61 = scmp.eq.s32.totalorder %s60, 0
      %s63 = sadd.s32 %s62, 1
      %s64 = scalar_select %p61, %s62, %s63
      %p67 = pneg %p61
      %p68 = scmp.eq.s32.totalorder %s12, 1
      %p69 = por %p67, %p68
      %p70 = scmp.ne.s32.totalorder %s62, %s65
      %p71 = scmp.eq.s32.totalorder %s12, 0
      %p72 = por %p70, %p71
      %p73 = scmp.ne.s32.totalorder %s62, %s65
      %p74 = scmp.eq.s32.totalorder %s17, 1
      %p75 = por %p73, %p74
      %p76 = scmp.ne.s32.totalorder %s65, %s66
      %p77 = scmp.eq.s32.totalorder %s17, 0
      %p78 = por %p76, %p77
      %p79 = scmp.ne.s32.totalorder %s65, %s66
      %p80 = scmp.eq.s32.totalorder %s18, 1
      %p81 = por %p79, %p80
      %p83 = scmp.ne.s32.totalorder %s66, %s82
      %p84 = scmp.eq.s32.totalorder %s18, 0
      %p85 = por %p83, %p84
      %s86 = ssub.s32 %s19, %s31
      %p87 = scmp.eq.s32.totalorder %s86, 0
      %s89 = sadd.s32 %s88, 1
      %s90 = scalar_select %p87, %s88, %s89
      %p93 = pneg %p87
      %p94 = scmp.eq.s32.totalorder %s12, 1
      %p95 = por %p93, %p94
      %p96 = scmp.ne.s32.totalorder %s88, %s91
      %p97 = scmp.eq.s32.totalorder %s12, 0
      %p98 = por %p96, %p97
      %p99 = scmp.ne.s32.totalorder %s88, %s91
      %p100 = scmp.eq.s32.totalorder %s17, 1
      %p101 = por %p99, %p100
      %p102 = scmp.ne.s32.totalorder %s91, %s92
      %p103 = scmp.eq.s32.totalorder %s17, 0
      %p104 = por %p102, %p103
      %p105 = scmp.ne.s32.totalorder %s91, %s92
      %p106 = scmp.eq.s32.totalorder %s18, 1
      %p107 = por %p105, %p106
      %p109 = scmp.ne.s32.totalorder %s92, %s108
      %p110 = scmp.eq.s32.totalorder %s18, 0
      %p111 = por %p109, %p110
      %p112 = scmp.le.s32.totalorder 1, %s12
      %p113 = scmp.lt.s32.totalorder %s12, 3
      %p114 = pnand %p112, %p113
      %p115 = pneg %p114
      // Predicated region
      $region9: #{forward.5} parent=5 // pred_check
        _
      $region10: #{forward.5} parent=5 // pred_check_branch
        %117 = sbr.rel (%p114) target = $region12
      $region11: #{forward.5} parent=5 // pred_region
        %s118 = ssub.s32 %s12, 1
        // Predicated region
        $region13: #{forward.5} parent=11 // pred_check
          %p119 = pneg %p78
        $region14: #{forward.5} parent=11 // pred_check_branch
          %121 = sbr.rel (%p119) target = $region16
        $region15: #{forward.5} parent=11 // pred_region
          %s122 = smul.u32 4, %s22
          %s124 = ssub.s32 2560, 2560
          %125 = vsyncadd [#allocation6], %s124
          %s126 = smul.addr %s122, 5
          %s127 = smul.addr %s126, 128
          %s128 = scalar_lea.hbm %s1, %s127
          %s129 = sshll.u32 [#allocation5], 4
          %s130 = int_to_ptr.vmem [resolvable:$true] %s129
          %135 = dma.hbm_to_vmem [thread:$0]  %s128, 2560, %s130, [#allocation6], 640, 640, 40
        $region16: #{forward.5} parent=11 // pred_fallthru
          _
      $region12: #{forward.5} parent=5 // pred_fallthru
        _
      %p136 = scmp.lt.s32.totalorder %s12, 2
      // Predicated region
      $region17: #{forward.5} parent=5 // pred_check
        %p137 = pneg %p136
      $region18: #{forward.5} parent=5 // pred_check_branch
        %139 = sbr.rel (%p137) target = $region20
      $region19: #{forward.5} parent=5 // pred_region
        // Predicated region
        $region21: #{forward.5} parent=19 // pred_check
          %p140 = pneg %p46
        $region22: #{forward.5} parent=19 // pred_check_branch
          %142 = sbr.rel (%p140) target = $region24
        $region23: #{forward.5} parent=19 // pred_region
          %s143 = sand.u32 %s36, 1
          %s144 = scalar_lea.sflag [#allocation4], %s143
          %s145 = sand.u32 %s36, 1
          %s146 = smul.addr %s145, 8
          %s147 = scalar_lea.vmem [#allocation3], %s146
          %s149 = ssub.s32 128, 128
          %150 = vsyncadd %s144, %s149
          %s151 = sadd.s32 %s20, %s19
          %s152 = smul.addr %s151, 128
          %s153 = scalar_lea.hbm %s0, %s152
          %s155 = sshll.u32 %s147, 4
          %s156 = int_to_ptr.vmem [resolvable:$true] %s155
          %158 = dma.hbm_to_vmem [thread:$0]  %s153, 128, %s156, %s144
        $region24: #{forward.5} parent=19 // pred_fallthru
          _
      $region20: #{forward.5} parent=5 // pred_fallthru
        _
      %p159 = scmp.le.s32.totalorder 1, %s12
      %p160 = scmp.lt.s32.totalorder %s12, 3
      %p161 = pnand %p159, %p160
      %p162 = pneg %p161
      // Predicated region
      $region25: #{forward.5} parent=5 // pred_check
        _
      $region26: #{forward.5} parent=5 // pred_check_branch
        %164 = sbr.rel (%p161) target = $region28
      $region27: #{forward.5} parent=5 // pred_region
        %s165 = ssub.s32 %s12, 1
        %s166 = sand.u32 %s39, 1
        %s167 = scalar_lea.sflag [#allocation4], %s166
        %s168 = sand.u32 %s39, 1
        %s169 = smul.addr %s168, 8
        %s170 = scalar_lea.vmem [#allocation3], %s169
        // Predicated region
        $region29: #{forward.5} parent=27 // pred_check
          %p171 = pneg %p52
        $region30: #{forward.5} parent=27 // pred_check_branch
          %173 = sbr.rel (%p171) target = $region32
        $region31: #{forward.5} parent=27 // pred_region
          %174 = dma.done %s167, 128
        $region32: #{forward.5} parent=27 // pred_fallthru
          _
        // Predicated region
        $region33: #{forward.5} parent=27 // pred_check
          %p175 = pneg %p78
        $region34: #{forward.5} parent=27 // pred_check_branch
          %177 = sbr.rel (%p175) target = $region36
        $region35: #{forward.5} parent=27 // pred_region
          %178 = dma.done [#allocation6], 2560
        $region36: #{forward.5} parent=27 // pred_fallthru
          _
        %s179 = sand.u32 %s39, 1
        %s180 = scalar_lea.sflag [#allocation4], %s179
        %s181 = sand.u32 %s39, 1
        %s182 = smul.addr %s181, 8
        %s183 = scalar_lea.vmem [#allocation3], %s182
        %p184 = pneg %p52
        %p185 = pneg %p49
        %p186 = pneg %p78
        %p187 = pneg %p75
        %p188 = pneg %p104
        %p189 = pneg %p101
        %p190 = scmp.lt.s32.totalorder %s21, 1
        %s191 = scalar_select %p190, %s21, 1
        %s192 = smul.addr %s191, 5
        %s193 = smul.addr %s192, 4
        %s194 = scalar_lea.vmem %s2, %s193
        %s195 = smul.u32 4, %s22
        %p196 = scmp.lt.s32.totalorder %s21, 1
        %s197 = scalar_select %p196, %s21, 1
        %s198 = smul.addr %s197, 5
        %s199 = smul.addr %s198, 4
        %s200 = scalar_lea.vmem %s2, %s199
        %p201 = scmp.eq.s32.totalorder %s22, 0
        // Predicated region
        $region37: #{forward.5} parent=27 // pred_check
          %p202 = pneg %p201
        $region38: #{forward.5} parent=27 // pred_check_branch
          %204 = sbr.rel (%p202) target = $region40
        $region39: #{forward.5} parent=27 // pred_region
          %205 = vst [vmem:[#allocation2] sm:$0xff] 0.0
          %206 = vst [vmem:[#allocation2 + $0x8] sm:$0xff] 0.0
          %207 = vst [vmem:[#allocation2 + $0x10] sm:$0xff] 0.0
          %208 = vst [vmem:[#allocation2 + $0x18] sm:$0xff] 0.0
          %209 = vst [vmem:[#allocation2 + $0x20] sm:$0xff] 0.0
        $region40: #{forward.5} parent=27 // pred_fallthru
          _
        %v210 = vld [vmem:[#allocation2] sm:$0xff]
        %v211 = vld [vmem:[#allocation2 + $0x8] sm:$0xff]
        %v212 = vld [vmem:[#allocation2 + $0x10] sm:$0xff]
        %v213 = vld [vmem:[#allocation2 + $0x18] sm:$0xff]
        %v214 = vld [vmem:[#allocation2 + $0x20] sm:$0xff]
        %v215 = vld [vmem:[%s170] sm:$0xff]
        %v216 = vld [vmem:[#allocation5] sm:$0xff]
        %v217 = vld [vmem:[#allocation5 + $0x8] sm:$0xff]
        %v218 = vld [vmem:[#allocation5 + $0x10] sm:$0xff]
        %v219 = vld [vmem:[#allocation5 + $0x18] sm:$0xff]
        %v220 = vld [vmem:[#allocation5 + $0x20] sm:$0xff]
        %v221 = vld [vmem:[#allocation5 + $0x28] sm:$0xff]
        %v222 = vld [vmem:[#allocation5 + $0x30] sm:$0xff]
        %v223 = vld [vmem:[#allocation5 + $0x38] sm:$0xff]
        %v224 = vld [vmem:[#allocation5 + $0x40] sm:$0xff]
        %v225 = vld [vmem:[#allocation5 + $0x48] sm:$0xff]
        %v226 = vld [vmem:[#allocation5 + $0x50] sm:$0xff]
        %v227 = vld [vmem:[#allocation5 + $0x58] sm:$0xff]
        %v228 = vld [vmem:[#allocation5 + $0x60] sm:$0xff]
        %v229 = vld [vmem:[#allocation5 + $0x68] sm:$0xff]
        %v230 = vld [vmem:[#allocation5 + $0x70] sm:$0xff]
        %v231 = vld [vmem:[#allocation5 + $0x78] sm:$0xff]
        %v232 = vld [vmem:[#allocation5 + $0x80] sm:$0xff]
        %v233 = vld [vmem:[#allocation5 + $0x88] sm:$0xff]
        %v234 = vld [vmem:[#allocation5 + $0x90] sm:$0xff]
        %v235 = vld [vmem:[#allocation5 + $0x98] sm:$0xff]
        %vm236 = vcmask 261120
        %v238 = vsel %vm236, %v215, 0
        %240 = vmatprep.subr.mxu0 %v217
        %241 = vmatpush1.msra.mxu0 %v216
        %242 = vmatprep.subr.mxu0 %v222
        %243 = vmatpush1.msra.mxu0 %v221
        %244 = vmatprep.subr.mxu0 %v227
        %245 = vmatpush1.msra.mxu0 %v226
        %246 = vmatprep.subr.mxu0 %v232
        %247 = vmatpush1.msra.mxu0 %v231
        %248 = vmatprep.subr.mxu0 0.0
        %249 = vmatpush1.msra.mxu0 0.0
        %250 = vmatprep.subr.mxu0 0.0
        %251 = vmatpush1.msra.mxu0 0.0
        %252 = vmatprep.subr.mxu0 0.0
        %253 = vmatpush1.msra.mxu0 0.0
        %254 = vmatprep.subr.mxu0 0.0
        %255 = vmatpush1.msra.mxu0 0.0
        %256 = vmatprep.subr.mxu0 0.0
        %257 = vmatpush1.msra.mxu0 0.0
        %258 = vmatprep.subr.mxu0 0.0
        %259 = vmatpush1.msra.mxu0 0.0
        %260 = vmatprep.subr.mxu0 0.0
        %261 = vmatpush1.msra.mxu0 0.0
        %262 = vmatprep.subr.mxu0 0.0
        %263 = vmatpush1.msra.mxu0 0.0
        %264 = vmatprep.subr.mxu0 0.0
        %265 = vmatpush1.msra.mxu0 0.0
        %266 = vmatprep.subr.mxu0 0.0
        %267 = vmatpush1.msra.mxu0 0.0
        %268 = vmatprep.subr.mxu0 0.0
        %269 = vmatpush1.msra.mxu0 0.0
        %270 = vmatprep.subr.mxu0 0.0
        %271 = vmatpush1.msra.mxu0 0.0
        %272 = vmatprep.subr.mxu0 0.0
        %273 = vmatpush1.msra.mxu0 0.0
        %274 = vmatprep.subr.mxu0 0.0
        %275 = vmatpush1.msra.mxu0 0.0
        %276 = vmatprep.subr.mxu0 0.0
        %277 = vmatpush1.msra.mxu0 0.0
        %278 = vmatprep.subr.mxu0 0.0
        %279 = vmatpush1.msra.mxu0 0.0
        %280 = vmatprep.subr.mxu0 0.0
        %281 = vmatpush1.msra.mxu0 0.0
        %282 = vmatprep.subr.mxu0 0.0
        %283 = vmatpush1.msra.mxu0 0.0
        %284 = vmatprep.subr.mxu0 0.0
        %285 = vmatpush1.msra.mxu0 0.0
        %286 = vmatprep.subr.mxu0 0.0
        %287 = vmatpush1.msra.mxu0 0.0
        %288 = vmatprep.subr.mxu0 0.0
        %289 = vmatpush1.msra.mxu0 0.0
        %290 = vmatprep.subr.mxu0 0.0
        %291 = vmatpush1.msra.mxu0 0.0
        %292 = vmatprep.subr.mxu0 0.0
        %293 = vmatpush1.msra.mxu0 0.0
        %294 = vmatprep.subr.mxu0 0.0
        %295 = vmatpush1.msra.mxu0 0.0
        %296 = vmatprep.subr.mxu0 0.0
        %297 = vmatpush1.msra.mxu0 0.0
        %298 = vmatprep.subr.mxu0 0.0
        %299 = vmatpush1.msra.mxu0 0.0
        %300 = vmatprep.subr.mxu0 0.0
        %301 = vmatpush1.msra.mxu0 0.0
        %302 = vmatprep.subr.mxu0 0.0
        %303 = vmatpush1.msra.mxu0 0.0
        %304 = vmatprep.mubr.f32.mxu0 0.0
        %305 = vmatmul.mubr.f32.gmra.mrb[0].mxu0 %v238
        %v306 = vpop.f32.mrb[0].mxu0
        %v307 = vadd.f32 0.0, %v306
        %v308 = vpop.f32.mrb[0].mxu0
        %v309 = vadd.f32 0.0, %v308
        %310 = vdwg.mxu0
        %311 = vmatprep.subr.mxu0 %v219
        %312 = vmatpush1.msra.mxu0 %v218
        %313 = vmatprep.subr.mxu0 %v224
        %314 = vmatpush1.msra.mxu0 %v223
        %315 = vmatprep.subr.mxu0 %v229
        %316 = vmatpush1.msra.mxu0 %v228
        %317 = vmatprep.subr.mxu0 %v234
        %318 = vmatpush1.msra.mxu0 %v233
        %319 = vmatprep.subr.mxu0 0.0
        %320 = vmatpush1.msra.mxu0 0.0
        %321 = vmatprep.subr.mxu0 0.0
        %322 = vmatpush1.msra.mxu0 0.0
        %323 = vmatprep.subr.mxu0 0.0
        %324 = vmatpush1.msra.mxu0 0.0
        %325 = vmatprep.subr.mxu0 0.0
        %326 = vmatpush1.msra.mxu0 0.0
        %327 = vmatprep.subr.mxu0 0.0
        %328 = vmatpush1.msra.mxu0 0.0
        %329 = vmatprep.subr.mxu0 0.0
        %330 = vmatpush1.msra.mxu0 0.0
        %331 = vmatprep.subr.mxu0 0.0
        %332 = vmatpush1.msra.mxu0 0.0
        %333 = vmatprep.subr.mxu0 0.0
        %334 = vmatpush1.msra.mxu0 0.0
        %335 = vmatprep.subr.mxu0 0.0
        %336 = vmatpush1.msra.mxu0 0.0
        %337 = vmatprep.subr.mxu0 0.0
        %338 = vmatpush1.msra.mxu0 0.0
        %339 = vmatprep.subr.mxu0 0.0
        %340 = vmatpush1.msra.mxu0 0.0
        %341 = vmatprep.subr.mxu0 0.0
        %342 = vmatpush1.msra.mxu0 0.0
        %343 = vmatprep.subr.mxu0 0.0
        %344 = vmatpush1.msra.mxu0 0.0
        %345 = vmatprep.subr.mxu0 0.0
        %346 = vmatpush1.msra.mxu0 0.0
        %347 = vmatprep.subr.mxu0 0.0
        %348 = vmatpush1.msra.mxu0 0.0
        %349 = vmatprep.subr.mxu0 0.0
        %350 = vmatpush1.msra.mxu0 0.0
        %351 = vmatprep.subr.mxu0 0.0
        %352 = vmatpush1.msra.mxu0 0.0
        %353 = vmatprep.subr.mxu0 0.0
        %354 = vmatpush1.msra.mxu0 0.0
        %355 = vmatprep.subr.mxu0 0.0
        %356 = vmatpush1.msra.mxu0 0.0
        %357 = vmatprep.subr.mxu0 0.0
        %358 = vmatpush1.msra.mxu0 0.0
        %359 = vmatprep.subr.mxu0 0.0
        %360 = vmatpush1.msra.mxu0 0.0
        %361 = vmatprep.subr.mxu0 0.0
        %362 = vmatpush1.msra.mxu0 0.0
        %363 = vmatprep.subr.mxu0 0.0
        %364 = vmatpush1.msra.mxu0 0.0
        %365 = vmatprep.subr.mxu0 0.0
        %366 = vmatpush1.msra.mxu0 0.0
        %367 = vmatprep.subr.mxu0 0.0
        %368 = vmatpush1.msra.mxu0 0.0
        %369 = vmatprep.subr.mxu0 0.0
        %370 = vmatpush1.msra.mxu0 0.0
        %371 = vmatprep.subr.mxu0 0.0
        %372 = vmatpush1.msra.mxu0 0.0
        %373 = vmatprep.subr.mxu0 0.0
        %374 = vmatpush1.msra.mxu0 0.0
        %375 = vmatprep.mubr.f32.mxu0 0.0
        %376 = vmatmul.mubr.f32.gmra.mrb[0].mxu0 %v238
        %v377 = vpop.f32.mrb[0].mxu0
        %v378 = vadd.f32 0.0, %v377
        %v379 = vpop.f32.mrb[0].mxu0
        %v380 = vadd.f32 0.0, %v379
        %381 = vdwg.mxu0
        %382 = vmatprep.subr.mxu0 0.0
        %383 = vmatpush1.msra.mxu0 %v220
        %384 = vmatprep.subr.mxu0 0.0
        %385 = vmatpush1.msra.mxu0 %v225
        %386 = vmatprep.subr.mxu0 0.0
        %387 = vmatpush1.msra.mxu0 %v230
        %388 = vmatprep.subr.mxu0 0.0
        %389 = vmatpush1.msra.mxu0 %v235
        %390 = vmatprep.subr.mxu0 0.0
        %391 = vmatpush1.msra.mxu0 0.0
        %392 = vmatprep.subr.mxu0 0.0
        %393 = vmatpush1.msra.mxu0 0.0
        %394 = vmatprep.subr.mxu0 0.0
        %395 = vmatpush1.msra.mxu0 0.0
        %396 = vmatprep.subr.mxu0 0.0
        %397 = vmatpush1.msra.mxu0 0.0
        %398 = vmatprep.subr.mxu0 0.0
        %399 = vmatpush1.msra.mxu0 0.0
        %400 = vmatprep.subr.mxu0 0.0
        %401 = vmatpush1.msra.mxu0 0.0
        %402 = vmatprep.subr.mxu0 0.0
        %403 = vmatpush1.msra.mxu0 0.0
        %404 = vmatprep.subr.mxu0 0.0
        %405 = vmatpush1.msra.mxu0 0.0
        %406 = vmatprep.subr.mxu0 0.0
        %407 = vmatpush1.msra.mxu0 0.0
        %408 = vmatprep.subr.mxu0 0.0
        %409 = vmatpush1.msra.mxu0 0.0
        %410 = vmatprep.subr.mxu0 0.0
        %411 = vmatpush1.msra.mxu0 0.0
        %412 = vmatprep.subr.mxu0 0.0
        %413 = vmatpush1.msra.mxu0 0.0
        %414 = vmatprep.subr.mxu0 0.0
        %415 = vmatpush1.msra.mxu0 0.0
        %416 = vmatprep.subr.mxu0 0.0
        %417 = vmatpush1.msra.mxu0 0.0
        %418 = vmatprep.subr.mxu0 0.0
        %419 = vmatpush1.msra.mxu0 0.0
        %420 = vmatprep.subr.mxu0 0.0
        %421 = vmatpush1.msra.mxu0 0.0
        %422 = vmatprep.subr.mxu0 0.0
        %423 = vmatpush1.msra.mxu0 0.0
        %424 = vmatprep.subr.mxu0 0.0
        %425 = vmatpush1.msra.mxu0 0.0
        %426 = vmatprep.subr.mxu0 0.0
        %427 = vmatpush1.msra.mxu0 0.0
        %428 = vmatprep.subr.mxu0 0.0
        %429 = vmatpush1.msra.mxu0 0.0
        %430 = vmatprep.subr.mxu0 0.0
        %431 = vmatpush1.msra.mxu0 0.0
        %432 = vmatprep.subr.mxu0 0.0
        %433 = vmatpush1.msra.mxu0 0.0
        %434 = vmatprep.subr.mxu0 0.0
        %435 = vmatpush1.msra.mxu0 0.0
        %436 = vmatprep.subr.mxu0 0.0
        %437 = vmatpush1.msra.mxu0 0.0
        %438 = vmatprep.subr.mxu0 0.0
        %439 = vmatpush1.msra.mxu0 0.0
        %440 = vmatprep.subr.mxu0 0.0
        %441 = vmatpush1.msra.mxu0 0.0
        %442 = vmatprep.subr.mxu0 0.0
        %443 = vmatpush1.msra.mxu0 0.0
        %444 = vmatprep.subr.mxu0 0.0
        %445 = vmatpush1.msra.mxu0 0.0
        %446 = vmatprep.mubr.f32.mxu0 0.0
        %447 = vmatmul.mubr.f32.gmra.mrb[0].mxu0 %v238
        %v448 = vpop.f32.mrb[0].mxu0
        %v449 = vadd.f32 0.0, %v448
        %v450 = vpop.f32.mrb[0].mxu0
        %451 = vdwg.mxu0
        %v452 = vadd.f32 %v210, %v307
        %v453 = vadd.f32 %v211, %v309
        %v454 = vadd.f32 %v212, %v378
        %v455 = vadd.f32 %v213, %v380
        %v456 = vadd.f32 %v214, %v449
        %457 = vst [vmem:[#allocation2] sm:$0xff] %v452
        %458 = vst [vmem:[#allocation2 + $0x8] sm:$0xff] %v453
        %459 = vst [vmem:[#allocation2 + $0x10] sm:$0xff] %v454
        %460 = vst [vmem:[#allocation2 + $0x18] sm:$0xff] %v455
        %461 = vst [vmem:[#allocation2 + $0x20] sm:$0xff] %v456
        // Predicated region
        $region41: #{forward.5} parent=27 // pred_check
          %p462 = pneg %p201
        $region42: #{forward.5} parent=27 // pred_check_branch
          %464 = sbr.rel (%p462) target = $region44
        $region43: #{forward.5} parent=27 // pred_region
          %v465 = vld [vmem:[#allocation2] sm:$0xff]
          %v466 = vld [vmem:[#allocation2 + $0x8] sm:$0xff]
          %v467 = vld [vmem:[#allocation2 + $0x10] sm:$0xff]
          %v468 = vld [vmem:[#allocation2 + $0x18] sm:$0xff]
          %v469 = vld [vmem:[#allocation2 + $0x20] sm:$0xff]
          %v470 = vpack.c.bf16 %v465, %v465
          %v471 = vpack.c.bf16 %v466, %v466
          %v472 = vpack.c.bf16 %v467, %v467
          %v473 = vpack.c.bf16 %v468, %v468
          %v474 = vpack.c.bf16 %v469, %v469
          %v480 = vunpack.c.l.b16 %v470
          %v481 = vunpack.c.l.b16 %v471
          %v482 = vunpack.c.l.b16 %v472
          %v483 = vunpack.c.l.b16 %v473
          %v484 = vunpack.c.l.b16 %v474
          %v485 = vpack.c.b16 %v481, %v480
          %v486 = vpack.c.b16 %v483, %v482
          %v487 = vpack.c.b16 %v484, %v484
          %491 = vst [vmem:[%s200] sm:$0xff] %v485
          %492 = vst [vmem:[%s200 + $0x8] sm:$0xff] %v486
          %493 = vst [vmem:[%s200 + $0x10] sm:$0xf] %v487
        $region44: #{forward.5} parent=27 // pred_fallthru
          _
        %p494 = scmp.lt.s32.totalorder %s21, 1
        %s495 = scalar_select %p494, %s21, 1
        %s496 = smul.addr %s495, 5
        %s497 = smul.addr %s496, 4
        %s498 = scalar_lea.vmem %s2, %s497
        // Predicated region
        $region45: #{forward.5} parent=27 // pred_check
          %p499 = pneg %p101
        $region46: #{forward.5} parent=27 // pred_check_branch
          %501 = sbr.rel (%p499) target = $region48
        $region47: #{forward.5} parent=27 // pred_region
          _
        $region48: #{forward.5} parent=27 // pred_fallthru
          _
      $region28: #{forward.5} parent=5 // pred_fallthru
        _
      %p502 = scmp.le.s32.totalorder 2, %s12
      // Predicated region
      $region49: #{forward.5} parent=5 // pred_check
        %p503 = pneg %p502
      $region50: #{forward.5} parent=5 // pred_check_branch
        %505 = sbr.rel (%p503) target = $region52
      $region51: #{forward.5} parent=5 // pred_region
        %s506 = ssub.s32 %s12, 2
        // Predicated region
        $region53: #{forward.5} parent=51 // pred_check
          %p507 = pneg %p107
        $region54: #{forward.5} parent=51 // pred_check_branch
          %509 = sbr.rel (%p507) target = $region56
        $region55: #{forward.5} parent=51 // pred_region
          %p510 = scmp.lt.s32.totalorder %s23, 1
          %s511 = scalar_select %p510, %s23, 1
          %s512 = smul.addr %s511, 5
          %s513 = smul.addr %s512, 4
          %s514 = scalar_lea.vmem %s2, %s513
        $region56: #{forward.5} parent=51 // pred_fallthru
          _
      $region52: #{forward.5} parent=5 // pred_fallthru
        _
    $region6: #{forward.5} parent=1 // loop_footer
      %s16 = sadd.s32 1, %s12
    $region7: #{forward.5} parent=1 // loop_footer_branch
      %11 = sbr.rel target = $region3
    $region8: #{forward.5} parent=1 // loop_exit
      _
    %515 = vsyncpa [#allocation4], 1
    %s516 = scalar_lea.sflag [#allocation4], 1
    %517 = vsyncpa %s516, 1
    %518 = vsyncpa [#allocation6], 1

// kernel: forward.6
$region0: #{forward.6}
  #allocation0 [shape = 'u32[]', space=smem, size = 0x4, offset = 0x4, fixed_abs, tag = 'smem constant byte address 0x4 - core index']
  #allocation1 [shape = 'u32[144,128]{1,0:T(1,128)}', space=vmem, size = 0x12000, scoped, tag = 'internal scratch']
  #allocation2 [shape = 'f32[8,640]{1,0:T(8,128)}', space=vmem, size = 0x5000, scoped, tag = 'scratch operand']
  %s0 = inlined_call_operand.hbm [shape: f32[8,32], index: 0, kind: input, shape index: {}]
  %s1 = inlined_call_operand.hbm [shape: f32[32,640], index: 1, kind: input, shape index: {}]
  %s2 = inlined_call_operand.vmem [shape: bf16[8,640], index: 2, kind: output, shape index: {}]
  %s3 = sld [smem:[#allocation0]]
  $region34: #{forward.6} parent=0
    _
  %s5 = ssub.s32 1, %s3
  %s6 = scalar_select 0, %s5, %s3
  $region1: #{forward.6} parent=0
    #allocation3 [shape = 'u8[4096]{0}', space=vmem, size = 0x1000, scoped, tag = 'input window, operand 0, single buffered']
    #allocation4 [shape = 's32[1]{0}', space=sflag, size = 0x4, scoped, tag = 'scoped memory for forward.6']
    #allocation5 [shape = 'u8[81920]{0}', space=vmem, size = 0x14000, scoped, tag = 'input window, operand 1, single buffered']
    #allocation6 [shape = 's32[1]{0}', space=sflag, size = 0x4, scoped, tag = 'scoped memory for forward.6']
    %7 = vsyncpa [#allocation4], 0
    %8 = vsyncpa [#allocation6], 0
    // Predicated region
    $region2: #{forward.6} parent=1 // pred_check
      _
    $region3: #{forward.6} parent=1 // pred_check_branch
      %10 = sbr.rel (0) target = $region5
    $region4: #{forward.6} parent=1 // pred_region
      %s12 = ssub.s32 128, 128
      %13 = vsyncadd [#allocation4], %s12
      %s15 = sshll.u32 [#allocation3], 4
      %s16 = int_to_ptr.vmem [resolvable:$true] %s15
      %18 = dma.hbm_to_vmem [thread:$0]  %s0, 128, %s16, [#allocation4]
    $region5: #{forward.6} parent=1 // pred_fallthru
      _
    // Predicated region
    $region6: #{forward.6} parent=1 // pred_check
      _
    $region7: #{forward.6} parent=1 // pred_check_branch
      %20 = sbr.rel (0) target = $region9
    $region8: #{forward.6} parent=1 // pred_region
      %s22 = ssub.s32 2560, 2560
      %23 = vsyncadd [#allocation6], %s22
      %s24 = sshll.u32 [#allocation5], 4
      %s25 = int_to_ptr.vmem [resolvable:$true] %s24
      %30 = dma.hbm_to_vmem [thread:$0]  %s1, 2560, %s25, [#allocation6], 640, 640, 40
    $region9: #{forward.6} parent=1 // pred_fallthru
      _
    // Predicated region
    $region10: #{forward.6} parent=1 // pred_check
      _
    $region11: #{forward.6} parent=1 // pred_check_branch
      %32 = sbr.rel (0) target = $region13
    $region12: #{forward.6} parent=1 // pred_region
      %33 = dma.done [#allocation4], 128
    $region13: #{forward.6} parent=1 // pred_fallthru
      _
    // Predicated region
    $region14: #{forward.6} parent=1 // pred_check
      _
    $region15: #{forward.6} parent=1 // pred_check_branch
      %35 = sbr.rel (0) target = $region17
    $region16: #{forward.6} parent=1 // pred_region
      %36 = dma.done [#allocation6], 2560
    $region17: #{forward.6} parent=1 // pred_fallthru
      _
    %p37 = scmp.eq.s32.totalorder 0, 0
    // Predicated region
    $region18: #{forward.6} parent=1 // pred_check
      %p38 = pneg %p37
    $region19: #{forward.6} parent=1 // pred_check_branch
      %40 = sbr.rel (%p38) target = $region21
    $region20: #{forward.6} parent=1 // pred_region
      %41 = vst [vmem:[#allocation2] sm:$0xff] 0.0
      %42 = vst [vmem:[#allocation2 + $0x8] sm:$0xff] 0.0
      %43 = vst [vmem:[#allocation2 + $0x10] sm:$0xff] 0.0
      %44 = vst [vmem:[#allocation2 + $0x18] sm:$0xff] 0.0
      %45 = vst [vmem:[#allocation2 + $0x20] sm:$0xff] 0.0
    $region21: #{forward.6} parent=1 // pred_fallthru
      _
    %v46 = vld [vmem:[#allocation2] sm:$0xff]
    %v47 = vld [vmem:[#allocation2 + $0x8] sm:$0xff]
    %v48 = vld [vmem:[#allocation2 + $0x10] sm:$0xff]
    %v49 = vld [vmem:[#allocation2 + $0x18] sm:$0xff]
    %v50 = vld [vmem:[#allocation2 + $0x20] sm:$0xff]
    %v51 = vld [vmem:[#allocation3] sm:$0xff]
    %v52 = vld [vmem:[#allocation5] sm:$0xff]
    %v53 = vld [vmem:[#allocation5 + $0x8] sm:$0xff]
    %v54 = vld [vmem:[#allocation5 + $0x10] sm:$0xff]
    %v55 = vld [vmem:[#allocation5 + $0x18] sm:$0xff]
    %v56 = vld [vmem:[#allocation5 + $0x20] sm:$0xff]
    %v57 = vld [vmem:[#allocation5 + $0x28] sm:$0xff]
    %v58 = vld [vmem:[#allocation5 + $0x30] sm:$0xff]
    %v59 = vld [vmem:[#allocation5 + $0x38] sm:$0xff]
    %v60 = vld [vmem:[#allocation5 + $0x40] sm:$0xff]
    %v61 = vld [vmem:[#allocation5 + $0x48] sm:$0xff]
    %v62 = vld [vmem:[#allocation5 + $0x50] sm:$0xff]
    %v63 = vld [vmem:[#allocation5 + $0x58] sm:$0xff]
    %v64 = vld [vmem:[#allocation5 + $0x60] sm:$0xff]
    %v65 = vld [vmem:[#allocation5 + $0x68] sm:$0xff]
    %v66 = vld [vmem:[#allocation5 + $0x70] sm:$0xff]
    %v67 = vld [vmem:[#allocation5 + $0x78] sm:$0xff]
    %v68 = vld [vmem:[#allocation5 + $0x80] sm:$0xff]
    %v69 = vld [vmem:[#allocation5 + $0x88] sm:$0xff]
    %v70 = vld [vmem:[#allocation5 + $0x90] sm:$0xff]
    %v71 = vld [vmem:[#allocation5 + $0x98] sm:$0xff]
    %vm72 = vcmask 261120
    %v74 = vsel %vm72, %v51, 0
    %76 = vmatprep.subr.mxu0 %v53
    %77 = vmatpush1.msra.mxu0 %v52
    %78 = vmatprep.subr.mxu0 %v58
    %79 = vmatpush1.msra.mxu0 %v57
    %80 = vmatprep.subr.mxu0 %v63
    %81 = vmatpush1.msra.mxu0 %v62
    %82 = vmatprep.subr.mxu0 %v68
    %83 = vmatpush1.msra.mxu0 %v67
    %84 = vmatprep.subr.mxu0 0.0
    %85 = vmatpush1.msra.mxu0 0.0
    %86 = vmatprep.subr.mxu0 0.0
    %87 = vmatpush1.msra.mxu0 0.0
    %88 = vmatprep.subr.mxu0 0.0
    %89 = vmatpush1.msra.mxu0 0.0
    %90 = vmatprep.subr.mxu0 0.0
    %91 = vmatpush1.msra.mxu0 0.0
    %92 = vmatprep.subr.mxu0 0.0
    %93 = vmatpush1.msra.mxu0 0.0
    %94 = vmatprep.subr.mxu0 0.0
    %95 = vmatpush1.msra.mxu0 0.0
    %96 = vmatprep.subr.mxu0 0.0
    %97 = vmatpush1.msra.mxu0 0.0
    %98 = vmatprep.subr.mxu0 0.0
    %99 = vmatpush1.msra.mxu0 0.0
    %100 = vmatprep.subr.mxu0 0.0
    %101 = vmatpush1.msra.mxu0 0.0
    %102 = vmatprep.subr.mxu0 0.0
    %103 = vmatpush1.msra.mxu0 0.0
    %104 = vmatprep.subr.mxu0 0.0
    %105 = vmatpush1.msra.mxu0 0.0
    %106 = vmatprep.subr.mxu0 0.0
    %107 = vmatpush1.msra.mxu0 0.0
    %108 = vmatprep.subr.mxu0 0.0
    %109 = vmatpush1.msra.mxu0 0.0
    %110 = vmatprep.subr.mxu0 0.0
    %111 = vmatpush1.msra.mxu0 0.0
    %112 = vmatprep.subr.mxu0 0.0
    %113 = vmatpush1.msra.mxu0 0.0
    %114 = vmatprep.subr.mxu0 0.0
    %115 = vmatpush1.msra.mxu0 0.0
    %116 = vmatprep.subr.mxu0 0.0
    %117 = vmatpush1.msra.mxu0 0.0
    %118 = vmatprep.subr.mxu0 0.0
    %119 = vmatpush1.msra.mxu0 0.0
    %120 = vmatprep.subr.mxu0 0.0
    %121 = vmatpush1.msra.mxu0 0.0
    %122 = vmatprep.subr.mxu0 0.0
    %123 = vmatpush1.msra.mxu0 0.0
    %124 = vmatprep.subr.mxu0 0.0
    %125 = vmatpush1.msra.mxu0 0.0
    %126 = vmatprep.subr.mxu0 0.0
    %127 = vmatpush1.msra.mxu0 0.0
    %128 = vmatprep.subr.mxu0 0.0
    %129 = vmatpush1.msra.mxu0 0.0
    %130 = vmatprep.subr.mxu0 0.0
    %131 = vmatpush1.msra.mxu0 0.0
    %132 = vmatprep.subr.mxu0 0.0
    %133 = vmatpush1.msra.mxu0 0.0
    %134 = vmatprep.subr.mxu0 0.0
    %135 = vmatpush1.msra.mxu0 0.0
    %136 = vmatprep.subr.mxu0 0.0
    %137 = vmatpush1.msra.mxu0 0.0
    %138 = vmatprep.subr.mxu0 0.0
    %139 = vmatpush1.msra.mxu0 0.0
    %140 = vmatprep.mubr.f32.mxu0 0.0
    %141 = vmatmul.mubr.f32.gmra.mrb[0].mxu0 %v74
    %v142 = vpop.f32.mrb[0].mxu0
    %v143 = vadd.f32 0.0, %v142
    %v144 = vpop.f32.mrb[0].mxu0
    %v145 = vadd.f32 0.0, %v144
    %146 = vdwg.mxu0
    %147 = vmatprep.subr.mxu0 %v55
    %148 = vmatpush1.msra.mxu0 %v54
    %149 = vmatprep.subr.mxu0 %v60
    %150 = vmatpush1.msra.mxu0 %v59
    %151 = vmatprep.subr.mxu0 %v65
    %152 = vmatpush1.msra.mxu0 %v64
    %153 = vmatprep.subr.mxu0 %v70
    %154 = vmatpush1.msra.mxu0 %v69
    %155 = vmatprep.subr.mxu0 0.0
    %156 = vmatpush1.msra.mxu0 0.0
    %157 = vmatprep.subr.mxu0 0.0
    %158 = vmatpush1.msra.mxu0 0.0
    %159 = vmatprep.subr.mxu0 0.0
    %160 = vmatpush1.msra.mxu0 0.0
    %161 = vmatprep.subr.mxu0 0.0
    %162 = vmatpush1.msra.mxu0 0.0
    %163 = vmatprep.subr.mxu0 0.0
    %164 = vmatpush1.msra.mxu0 0.0
    %165 = vmatprep.subr.mxu0 0.0
    %166 = vmatpush1.msra.mxu0 0.0
    %167 = vmatprep.subr.mxu0 0.0
    %168 = vmatpush1.msra.mxu0 0.0
    %169 = vmatprep.subr.mxu0 0.0
    %170 = vmatpush1.msra.mxu0 0.0
    %171 = vmatprep.subr.mxu0 0.0
    %172 = vmatpush1.msra.mxu0 0.0
    %173 = vmatprep.subr.mxu0 0.0
    %174 = vmatpush1.msra.mxu0 0.0
    %175 = vmatprep.subr.mxu0 0.0
    %176 = vmatpush1.msra.mxu0 0.0
    %177 = vmatprep.subr.mxu0 0.0
    %178 = vmatpush1.msra.mxu0 0.0
    %179 = vmatprep.subr.mxu0 0.0
    %180 = vmatpush1.msra.mxu0 0.0
    %181 = vmatprep.subr.mxu0 0.0
    %182 = vmatpush1.msra.mxu0 0.0
    %183 = vmatprep.subr.mxu0 0.0
    %184 = vmatpush1.msra.mxu0 0.0
    %185 = vmatprep.subr.mxu0 0.0
    %186 = vmatpush1.msra.mxu0 0.0
    %187 = vmatprep.subr.mxu0 0.0
    %188 = vmatpush1.msra.mxu0 0.0
    %189 = vmatprep.subr.mxu0 0.0
    %190 = vmatpush1.msra.mxu0 0.0
    %191 = vmatprep.subr.mxu0 0.0
    %192 = vmatpush1.msra.mxu0 0.0
    %193 = vmatprep.subr.mxu0 0.0
    %194 = vmatpush1.msra.mxu0 0.0
    %195 = vmatprep.subr.mxu0 0.0
    %196 = vmatpush1.msra.mxu0 0.0
    %197 = vmatprep.subr.mxu0 0.0
    %198 = vmatpush1.msra.mxu0 0.0
    %199 = vmatprep.subr.mxu0 0.0
    %200 = vmatpush1.msra.mxu0 0.0
    %201 = vmatprep.subr.mxu0 0.0
    %202 = vmatpush1.msra.mxu0 0.0
    %203 = vmatprep.subr.mxu0 0.0
    %204 = vmatpush1.msra.mxu0 0.0
    %205 = vmatprep.subr.mxu0 0.0
    %206 = vmatpush1.msra.mxu0 0.0
    %207 = vmatprep.subr.mxu0 0.0
    %208 = vmatpush1.msra.mxu0 0.0
    %209 = vmatprep.subr.mxu0 0.0
    %210 = vmatpush1.msra.mxu0 0.0
    %211 = vmatprep.mubr.f32.mxu0 0.0
    %212 = vmatmul.mubr.f32.gmra.mrb[0].mxu0 %v74
    %v213 = vpop.f32.mrb[0].mxu0
    %v214 = vadd.f32 0.0, %v213
    %v215 = vpop.f32.mrb[0].mxu0
    %v216 = vadd.f32 0.0, %v215
    %217 = vdwg.mxu0
    %218 = vmatprep.subr.mxu0 0.0
    %219 = vmatpush1.msra.mxu0 %v56
    %220 = vmatprep.subr.mxu0 0.0
    %221 = vmatpush1.msra.mxu0 %v61
    %222 = vmatprep.subr.mxu0 0.0
    %223 = vmatpush1.msra.mxu0 %v66
    %224 = vmatprep.subr.mxu0 0.0
    %225 = vmatpush1.msra.mxu0 %v71
    %226 = vmatprep.subr.mxu0 0.0
    %227 = vmatpush1.msra.mxu0 0.0
    %228 = vmatprep.subr.mxu0 0.0
    %229 = vmatpush1.msra.mxu0 0.0
    %230 = vmatprep.subr.mxu0 0.0
    %231 = vmatpush1.msra.mxu0 0.0
    %232 = vmatprep.subr.mxu0 0.0
    %233 = vmatpush1.msra.mxu0 0.0
    %234 = vmatprep.subr.mxu0 0.0
    %235 = vmatpush1.msra.mxu0 0.0
    %236 = vmatprep.subr.mxu0 0.0
    %237 = vmatpush1.msra.mxu0 0.0
    %238 = vmatprep.subr.mxu0 0.0
    %239 = vmatpush1.msra.mxu0 0.0
    %240 = vmatprep.subr.mxu0 0.0
    %241 = vmatpush1.msra.mxu0 0.0
    %242 = vmatprep.subr.mxu0 0.0
    %243 = vmatpush1.msra.mxu0 0.0
    %244 = vmatprep.subr.mxu0 0.0
    %245 = vmatpush1.msra.mxu0 0.0
    %246 = vmatprep.subr.mxu0 0.0
    %247 = vmatpush1.msra.mxu0 0.0
    %248 = vmatprep.subr.mxu0 0.0
    %249 = vmatpush1.msra.mxu0 0.0
    %250 = vmatprep.subr.mxu0 0.0
    %251 = vmatpush1.msra.mxu0 0.0
    %252 = vmatprep.subr.mxu0 0.0
    %253 = vmatpush1.msra.mxu0 0.0
    %254 = vmatprep.subr.mxu0 0.0
    %255 = vmatpush1.msra.mxu0 0.0
    %256 = vmatprep.subr.mxu0 0.0
    %257 = vmatpush1.msra.mxu0 0.0
    %258 = vmatprep.subr.mxu0 0.0
    %259 = vmatpush1.msra.mxu0 0.0
    %260 = vmatprep.subr.mxu0 0.0
    %261 = vmatpush1.msra.mxu0 0.0
    %262 = vmatprep.subr.mxu0 0.0
    %263 = vmatpush1.msra.mxu0 0.0
    %264 = vmatprep.subr.mxu0 0.0
    %265 = vmatpush1.msra.mxu0 0.0
    %266 = vmatprep.subr.mxu0 0.0
    %267 = vmatpush1.msra.mxu0 0.0
    %268 = vmatprep.subr.mxu0 0.0
    %269 = vmatpush1.msra.mxu0 0.0
    %270 = vmatprep.subr.mxu0 0.0
    %271 = vmatpush1.msra.mxu0 0.0
    %272 = vmatprep.subr.mxu0 0.0
    %273 = vmatpush1.msra.mxu0 0.0
    %274 = vmatprep.subr.mxu0 0.0
    %275 = vmatpush1.msra.mxu0 0.0
    %276 = vmatprep.subr.mxu0 0.0
    %277 = vmatpush1.msra.mxu0 0.0
    %278 = vmatprep.subr.mxu0 0.0
    %279 = vmatpush1.msra.mxu0 0.0
    %280 = vmatprep.subr.mxu0 0.0
    %281 = vmatpush1.msra.mxu0 0.0
    %282 = vmatprep.mubr.f32.mxu0 0.0
    %283 = vmatmul.mubr.f32.gmra.mrb[0].mxu0 %v74
    %v284 = vpop.f32.mrb[0].mxu0
    %v285 = vadd.f32 0.0, %v284
    %v286 = vpop.f32.mrb[0].mxu0
    %287 = vdwg.mxu0
    %v288 = vadd.f32 %v46, %v143
    %v289 = vadd.f32 %v47, %v145
    %v290 = vadd.f32 %v48, %v214
    %v291 = vadd.f32 %v49, %v216
    %v292 = vadd.f32 %v50, %v285
    %293 = vst [vmem:[#allocation2] sm:$0xff] %v288
    %294 = vst [vmem:[#allocation2 + $0x8] sm:$0xff] %v289
    %295 = vst [vmem:[#allocation2 + $0x10] sm:$0xff] %v290
    %296 = vst [vmem:[#allocation2 + $0x18] sm:$0xff] %v291
    %297 = vst [vmem:[#allocation2 + $0x20] sm:$0xff] %v292
    // Predicated region
    $region22: #{forward.6} parent=1 // pred_check
      %p298 = pneg %p37
    $region23: #{forward.6} parent=1 // pred_check_branch
      %300 = sbr.rel (%p298) target = $region25
    $region24: #{forward.6} parent=1 // pred_region
      %v301 = vld [vmem:[#allocation2] sm:$0xff]
      %v302 = vld [vmem:[#allocation2 + $0x8] sm:$0xff]
      %v303 = vld [vmem:[#allocation2 + $0x10] sm:$0xff]
      %v304 = vld [vmem:[#allocation2 + $0x18] sm:$0xff]
      %v305 = vld [vmem:[#allocation2 + $0x20] sm:$0xff]
      %v306 = vpack.c.bf16 %v301, %v301
      %v307 = vpack.c.bf16 %v302, %v302
      %v308 = vpack.c.bf16 %v303, %v303
      %v309 = vpack.c.bf16 %v304, %v304
      %v310 = vpack.c.bf16 %v305, %v305
      %v316 = vunpack.c.l.b16 %v306
      %v317 = vunpack.c.l.b16 %v307
      %v318 = vunpack.c.l.b16 %v308
      %v319 = vunpack.c.l.b16 %v309
      %v320 = vunpack.c.l.b16 %v310
      %v321 = vpack.c.b16 %v317, %v316
      %v322 = vpack.c.b16 %v319, %v318
      %v323 = vpack.c.b16 %v320, %v320
      %327 = vst [vmem:[%s2] sm:$0xff] %v321
      %328 = vst [vmem:[%s2 + $0x8] sm:$0xff] %v322
      %329 = vst [vmem:[%s2 + $0x10] sm:$0xf] %v323
    $region25: #{forward.6} parent=1 // pred_fallthru
      _
    // Predicated region
    $region26: #{forward.6} parent=1 // pred_check
      _
    $region27: #{forward.6} parent=1 // pred_check_branch
      %331 = sbr.rel (0) target = $region29
    $region28: #{forward.6} parent=1 // pred_region
      _
    $region29: #{forward.6} parent=1 // pred_fallthru
      _
    // Predicated region
    $region30: #{forward.6} parent=1 // pred_check
      _
    $region31: #{forward.6} parent=1 // pred_check_branch
      %333 = sbr.rel (0) target = $region33
    $region32: #{forward.6} parent=1 // pred_region
      _
    $region33: #{forward.6} parent=1 // pred_fallthru
      _
    %334 = vsyncpa [#allocation4], 1
    %335 = vsyncpa [#allocation6], 1

// kernel: forward.9
$region0: #{forward.9}
  #allocation0 [shape = 'u32[]', space=smem, size = 0x4, offset = 0x4, fixed_abs, tag = 'smem constant byte address 0x4 - core index']
  #allocation1 [shape = 'u32[144,128]{1,0:T(1,128)}', space=vmem, size = 0x12000, scoped, tag = 'internal scratch']
  #allocation2 [shape = 'f32[5,8,128]{2,1,0:T(8,128)}', space=vmem, size = 0x5000, scoped, tag = 'scratch operand']
  %s0 = inlined_call_operand.vmem [shape: f32[8,128], index: 0, kind: input, shape index: {}]
  %s1 = inlined_call_operand.vmem [shape: f32[16,128], index: 1, kind: input, shape index: {}]
  %s2 = inlined_call_operand.vmem [shape: f32[5,128,128], index: 2, kind: input, shape index: {}]
  %s3 = inlined_call_operand.hbm [shape: f32[5,8,16], index: 3, kind: output, shape index: {0}]
  %s4 = inlined_call_operand.hbm [shape: f32[5,8,16], index: 4, kind: output, shape index: {1}]
  %5 = xla_tuple %s3, %s4
  %s6 = sld [smem:[#allocation0]]
  $region34: #{forward.9} parent=0
    _
  %s8 = ssub.s32 1, %s6
  %s9 = scalar_select 0, %s8, %s6
  $region1: #{forward.9} parent=0
    #allocation3 [shape = 'u8[20480]{0}', space=vmem, size = 0x5000, scoped, tag = 'output window, operand 0, single buffered']
    #allocation4 [shape = 's32[1]{0}', space=sflag, size = 0x4, scoped, tag = 'scoped memory for forward.9']
    #allocation5 [shape = 'u8[20480]{0}', space=vmem, size = 0x5000, scoped, tag = 'output window, operand 1, single buffered']
    #allocation6 [shape = 's32[1]{0}', space=sflag, size = 0x4, scoped, tag = 'scoped memory for forward.9']
    %10 = vsyncpa [#allocation4], 0
    %11 = vsyncpa [#allocation6], 0
    // Predicated region
    $region2: #{forward.9} parent=1 // pred_check
      _
    $region3: #{forward.9} parent=1 // pred_check_branch
      %13 = sbr.rel (0) target = $region5
    $region4: #{forward.9} parent=1 // pred_region
      _
    $region5: #{forward.9} parent=1 // pred_fallthru
      _
    // Predicated region
    $region6: #{forward.9} parent=1 // pred_check
      _
    $region7: #{forward.9} parent=1 // pred_check_branch
      %15 = sbr.rel (0) target = $region9
    $region8: #{forward.9} parent=1 // pred_region
      _
    $region9: #{forward.9} parent=1 // pred_fallthru
      _
    // Predicated region
    $region10: #{forward.9} parent=1 // pred_check
      _
    $region11: #{forward.9} parent=1 // pred_check_branch
      %17 = sbr.rel (0) target = $region13
    $region12: #{forward.9} parent=1 // pred_region
      _
    $region13: #{forward.9} parent=1 // pred_fallthru
      _
    %p18 = scmp.eq.s32.totalorder 0, 0
    // Predicated region
    $region14: #{forward.9} parent=1 // pred_check
      %p19 = pneg %p18
    $region15: #{forward.9} parent=1 // pred_check_branch
      %21 = sbr.rel (%p19) target = $region17
    $region16: #{forward.9} parent=1 // pred_region
      %v22 = vld [vmem:[%s0] sm:$0xff]
      %v23 = vld [vmem:[%s2] sm:$0xff]
      %v24 = vld [vmem:[%s2 + $0x8] sm:$0xff]
      %v25 = vld [vmem:[%s2 + $0x10] sm:$0xff]
      %v26 = vld [vmem:[%s2 + $0x18] sm:$0xff]
      %v27 = vld [vmem:[%s2 + $0x20] sm:$0xff]
      %v28 = vld [vmem:[%s2 + $0x28] sm:$0xff]
      %v29 = vld [vmem:[%s2 + $0x30] sm:$0xff]
      %v30 = vld [vmem:[%s2 + $0x38] sm:$0xff]
      %v31 = vld [vmem:[%s2 + $0x40] sm:$0xff]
      %v32 = vld [vmem:[%s2 + $0x48] sm:$0xff]
      %v33 = vld [vmem:[%s2 + $0x50] sm:$0xff]
      %v34 = vld [vmem:[%s2 + $0x58] sm:$0xff]
      %v35 = vld [vmem:[%s2 + $0x60] sm:$0xff]
      %v36 = vld [vmem:[%s2 + $0x68] sm:$0xff]
      %v37 = vld [vmem:[%s2 + $0x70] sm:$0xff]
      %v38 = vld [vmem:[%s2 + $0x78] sm:$0xff]
      %39 = vmatprep.subr.mxu0 0.0
      %40 = vmatpush1.msra.mxu0 %v23
      %41 = vmatprep.subr.mxu0 0.0
      %42 = vmatpush1.msra.mxu0 %v24
      %43 = vmatprep.subr.mxu0 0.0
      %44 = vmatpush1.msra.mxu0 %v25
      %45 = vmatprep.subr.mxu0 0.0
      %46 = vmatpush1.msra.mxu0 %v26
      %47 = vmatprep.subr.mxu0 0.0
      %48 = vmatpush1.msra.mxu0 %v27
      %49 = vmatprep.subr.mxu0 0.0
      %50 = vmatpush1.msra.mxu0 %v28
      %51 = vmatprep.subr.mxu0 0.0
      %52 = vmatpush1.msra.mxu0 %v29
      %53 = vmatprep.subr.mxu0 0.0
      %54 = vmatpush1.msra.mxu0 %v30
      %55 = vmatprep.subr.mxu0 0.0
      %56 = vmatpush1.msra.mxu0 %v31
      %57 = vmatprep.subr.mxu0 0.0
      %58 = vmatpush1.msra.mxu0 %v32
      %59 = vmatprep.subr.mxu0 0.0
      %60 = vmatpush1.msra.mxu0 %v33
      %61 = vmatprep.subr.mxu0 0.0
      %62 = vmatpush1.msra.mxu0 %v34
      %63 = vmatprep.subr.mxu0 0.0
      %64 = vmatpush1.msra.mxu0 %v35
      %65 = vmatprep.subr.mxu0 0.0
      %66 = vmatpush1.msra.mxu0 %v36
      %67 = vmatprep.subr.mxu0 0.0
      %68 = vmatpush1.msra.mxu0 %v37
      %69 = vmatprep.subr.mxu0 0.0
      %70 = vmatpush1.msra.mxu0 %v38
      %71 = vmatprep.subr.mxu0 0.0
      %72 = vmatpush1.msra.mxu0 0.0
      %73 = vmatprep.subr.mxu0 0.0
      %74 = vmatpush1.msra.mxu0 0.0
      %75 = vmatprep.subr.mxu0 0.0
      %76 = vmatpush1.msra.mxu0 0.0
      %77 = vmatprep.subr.mxu0 0.0
      %78 = vmatpush1.msra.mxu0 0.0
      %79 = vmatprep.subr.mxu0 0.0
      %80 = vmatpush1.msra.mxu0 0.0
      %81 = vmatprep.subr.mxu0 0.0
      %82 = vmatpush1.msra.mxu0 0.0
      %83 = vmatprep.subr.mxu0 0.0
      %84 = vmatpush1.msra.mxu0 0.0
      %85 = vmatprep.subr.mxu0 0.0
      %86 = vmatpush1.msra.mxu0 0.0
      %87 = vmatprep.subr.mxu0 0.0
      %88 = vmatpush1.msra.mxu0 0.0
      %89 = vmatprep.subr.mxu0 0.0
      %90 = vmatpush1.msra.mxu0 0.0
      %91 = vmatprep.subr.mxu0 0.0
      %92 = vmatpush1.msra.mxu0 0.0
      %93 = vmatprep.subr.mxu0 0.0
      %94 = vmatpush1.msra.mxu0 0.0
      %95 = vmatprep.subr.mxu0 0.0
      %96 = vmatpush1.msra.mxu0 0.0
      %97 = vmatprep.subr.mxu0 0.0
      %98 = vmatpush1.msra.mxu0 0.0
      %99 = vmatprep.subr.mxu0 0.0
      %100 = vmatpush1.msra.mxu0 0.0
      %101 = vmatprep.subr.mxu0 0.0
      %102 = vmatpush1.msra.mxu0 0.0
      %103 = vmatprep.mubr.f32.mxu0 0.0
      %104 = vmatmul.mubr.f32.gmra.mrb[0].mxu0 %v22
      %v105 = vpop.f32.mrb[0].mxu0
      %v106 = vadd.f32 0.0, %v105
      %v107 = vpop.f32.mrb[0].mxu0
      %108 = vdwg.mxu0
      %109 = vst [vmem:[#allocation2] sm:$0xff] %v106
      %s110 = scalar_lea.vmem %s2, 128
      %v111 = vld [vmem:[%s110] sm:$0xff]
      %v112 = vld [vmem:[%s110 + $0x8] sm:$0xff]
      %v113 = vld [vmem:[%s110 + $0x10] sm:$0xff]
      %v114 = vld [vmem:[%s110 + $0x18] sm:$0xff]
      %v115 = vld [vmem:[%s110 + $0x20] sm:$0xff]
      %v116 = vld [vmem:[%s110 + $0x28] sm:$0xff]
      %v117 = vld [vmem:[%s110 + $0x30] sm:$0xff]
      %v118 = vld [vmem:[%s110 + $0x38] sm:$0xff]
      %v119 = vld [vmem:[%s110 + $0x40] sm:$0xff]
      %v120 = vld [vmem:[%s110 + $0x48] sm:$0xff]
      %v121 = vld [vmem:[%s110 + $0x50] sm:$0xff]
      %v122 = vld [vmem:[%s110 + $0x58] sm:$0xff]
      %v123 = vld [vmem:[%s110 + $0x60] sm:$0xff]
      %v124 = vld [vmem:[%s110 + $0x68] sm:$0xff]
      %v125 = vld [vmem:[%s110 + $0x70] sm:$0xff]
      %v126 = vld [vmem:[%s110 + $0x78] sm:$0xff]
      %127 = vmatprep.subr.mxu0 0.0
      %128 = vmatpush1.msra.mxu0 %v111
      %129 = vmatprep.subr.mxu0 0.0
      %130 = vmatpush1.msra.mxu0 %v112
      %131 = vmatprep.subr.mxu0 0.0
      %132 = vmatpush1.msra.mxu0 %v113
      %133 = vmatprep.subr.mxu0 0.0
      %134 = vmatpush1.msra.mxu0 %v114
      %135 = vmatprep.subr.mxu0 0.0
      %136 = vmatpush1.msra.mxu0 %v115
      %137 = vmatprep.subr.mxu0 0.0
      %138 = vmatpush1.msra.mxu0 %v116
      %139 = vmatprep.subr.mxu0 0.0
      %140 = vmatpush1.msra.mxu0 %v117
      %141 = vmatprep.subr.mxu0 0.0
      %142 = vmatpush1.msra.mxu0 %v118
      %143 = vmatprep.subr.mxu0 0.0
      %144 = vmatpush1.msra.mxu0 %v119
      %145 = vmatprep.subr.mxu0 0.0
      %146 = vmatpush1.msra.mxu0 %v120
      %147 = vmatprep.subr.mxu0 0.0
      %148 = vmatpush1.msra.mxu0 %v121
      %149 = vmatprep.subr.mxu0 0.0
      %150 = vmatpush1.msra.mxu0 %v122
      %151 = vmatprep.subr.mxu0 0.0
      %152 = vmatpush1.msra.mxu0 %v123
      %153 = vmatprep.subr.mxu0 0.0
      %154 = vmatpush1.msra.mxu0 %v124
      %155 = vmatprep.subr.mxu0 0.0
      %156 = vmatpush1.msra.mxu0 %v125
      %157 = vmatprep.subr.mxu0 0.0
      %158 = vmatpush1.msra.mxu0 %v126
      %159 = vmatprep.subr.mxu0 0.0
      %160 = vmatpush1.msra.mxu0 0.0
      %161 = vmatprep.subr.mxu0 0.0
      %162 = vmatpush1.msra.mxu0 0.0
      %163 = vmatprep.subr.mxu0 0.0
      %164 = vmatpush1.msra.mxu0 0.0
      %165 = vmatprep.subr.mxu0 0.0
      %166 = vmatpush1.msra.mxu0 0.0
      %167 = vmatprep.subr.mxu0 0.0
      %168 = vmatpush1.msra.mxu0 0.0
      %169 = vmatprep.subr.mxu0 0.0
      %170 = vmatpush1.msra.mxu0 0.0
      %171 = vmatprep.subr.mxu0 0.0
      %172 = vmatpush1.msra.mxu0 0.0
      %173 = vmatprep.subr.mxu0 0.0
      %174 = vmatpush1.msra.mxu0 0.0
      %175 = vmatprep.subr.mxu0 0.0
      %176 = vmatpush1.msra.mxu0 0.0
      %177 = vmatprep.subr.mxu0 0.0
      %178 = vmatpush1.msra.mxu0 0.0
      %179 = vmatprep.subr.mxu0 0.0
      %180 = vmatpush1.msra.mxu0 0.0
      %181 = vmatprep.subr.mxu0 0.0
      %182 = vmatpush1.msra.mxu0 0.0
      %183 = vmatprep.subr.mxu0 0.0
      %184 = vmatpush1.msra.mxu0 0.0
      %185 = vmatprep.subr.mxu0 0.0
      %186 = vmatpush1.msra.mxu0 0.0
      %187 = vmatprep.subr.mxu0 0.0
      %188 = vmatpush1.msra.mxu0 0.0
      %189 = vmatprep.subr.mxu0 0.0
      %190 = vmatpush1.msra.mxu0 0.0
      %191 = vmatprep.mubr.f32.mxu0 0.0
      %192 = vmatmul.mubr.f32.gmra.mrb[0].mxu0 %v22
      %v193 = vpop.f32.mrb[0].mxu0
      %v194 = vadd.f32 0.0, %v193
      %v195 = vpop.f32.mrb[0].mxu0
      %196 = vdwg.mxu0
      %s197 = scalar_lea.vmem [#allocation2], 8
      %198 = vst [vmem:[%s197] sm:$0xff] %v194
      %s199 = scalar_lea.vmem %s2, 256
      %v200 = vld [vmem:[%s199] sm:$0xff]
      %v201 = vld [vmem:[%s199 + $0x8] sm:$0xff]
      %v202 = vld [vmem:[%s199 + $0x10] sm:$0xff]
      %v203 = vld [vmem:[%s199 + $0x18] sm:$0xff]
      %v204 = vld [vmem:[%s199 + $0x20] sm:$0xff]
      %v205 = vld [vmem:[%s199 + $0x28] sm:$0xff]
      %v206 = vld [vmem:[%s199 + $0x30] sm:$0xff]
      %v207 = vld [vmem:[%s199 + $0x38] sm:$0xff]
      %v208 = vld [vmem:[%s199 + $0x40] sm:$0xff]
      %v209 = vld [vmem:[%s199 + $0x48] sm:$0xff]
      %v210 = vld [vmem:[%s199 + $0x50] sm:$0xff]
      %v211 = vld [vmem:[%s199 + $0x58] sm:$0xff]
      %v212 = vld [vmem:[%s199 + $0x60] sm:$0xff]
      %v213 = vld [vmem:[%s199 + $0x68] sm:$0xff]
      %v214 = vld [vmem:[%s199 + $0x70] sm:$0xff]
      %v215 = vld [vmem:[%s199 + $0x78] sm:$0xff]
      %216 = vmatprep.subr.mxu0 0.0
      %217 = vmatpush1.msra.mxu0 %v200
      %218 = vmatprep.subr.mxu0 0.0
      %219 = vmatpush1.msra.mxu0 %v201
      %220 = vmatprep.subr.mxu0 0.0
      %221 = vmatpush1.msra.mxu0 %v202
      %222 = vmatprep.subr.mxu0 0.0
      %223 = vmatpush1.msra.mxu0 %v203
      %224 = vmatprep.subr.mxu0 0.0
      %225 = vmatpush1.msra.mxu0 %v204
      %226 = vmatprep.subr.mxu0 0.0
      %227 = vmatpush1.msra.mxu0 %v205
      %228 = vmatprep.subr.mxu0 0.0
      %229 = vmatpush1.msra.mxu0 %v206
      %230 = vmatprep.subr.mxu0 0.0
      %231 = vmatpush1.msra.mxu0 %v207
      %232 = vmatprep.subr.mxu0 0.0
      %233 = vmatpush1.msra.mxu0 %v208
      %234 = vmatprep.subr.mxu0 0.0
      %235 = vmatpush1.msra.mxu0 %v209
      %236 = vmatprep.subr.mxu0 0.0
      %237 = vmatpush1.msra.mxu0 %v210
      %238 = vmatprep.subr.mxu0 0.0
      %239 = vmatpush1.msra.mxu0 %v211
      %240 = vmatprep.subr.mxu0 0.0
      %241 = vmatpush1.msra.mxu0 %v212
      %242 = vmatprep.subr.mxu0 0.0
      %243 = vmatpush1.msra.mxu0 %v213
      %244 = vmatprep.subr.mxu0 0.0
      %245 = vmatpush1.msra.mxu0 %v214
      %246 = vmatprep.subr.mxu0 0.0
      %247 = vmatpush1.msra.mxu0 %v215
      %248 = vmatprep.subr.mxu0 0.0
      %249 = vmatpush1.msra.mxu0 0.0
      %250 = vmatprep.subr.mxu0 0.0
      %251 = vmatpush1.msra.mxu0 0.0
      %252 = vmatprep.subr.mxu0 0.0
      %253 = vmatpush1.msra.mxu0 0.0
      %254 = vmatprep.subr.mxu0 0.0
      %255 = vmatpush1.msra.mxu0 0.0
      %256 = vmatprep.subr.mxu0 0.0
      %257 = vmatpush1.msra.mxu0 0.0
      %258 = vmatprep.subr.mxu0 0.0
      %259 = vmatpush1.msra.mxu0 0.0
      %260 = vmatprep.subr.mxu0 0.0
      %261 = vmatpush1.msra.mxu0 0.0
      %262 = vmatprep.subr.mxu0 0.0
      %263 = vmatpush1.msra.mxu0 0.0
      %264 = vmatprep.subr.mxu0 0.0
      %265 = vmatpush1.msra.mxu0 0.0
      %266 = vmatprep.subr.mxu0 0.0
      %267 = vmatpush1.msra.mxu0 0.0
      %268 = vmatprep.subr.mxu0 0.0
      %269 = vmatpush1.msra.mxu0 0.0
      %270 = vmatprep.subr.mxu0 0.0
      %271 = vmatpush1.msra.mxu0 0.0
      %272 = vmatprep.subr.mxu0 0.0
      %273 = vmatpush1.msra.mxu0 0.0
      %274 = vmatprep.subr.mxu0 0.0
      %275 = vmatpush1.msra.mxu0 0.0
      %276 = vmatprep.subr.mxu0 0.0
      %277 = vmatpush1.msra.mxu0 0.0
      %278 = vmatprep.subr.mxu0 0.0
      %279 = vmatpush1.msra.mxu0 0.0
      %280 = vmatprep.mubr.f32.mxu0 0.0
      %281 = vmatmul.mubr.f32.gmra.mrb[0].mxu0 %v22
      %v282 = vpop.f32.mrb[0].mxu0
      %v283 = vadd.f32 0.0, %v282
      %v284 = vpop.f32.mrb[0].mxu0
      %285 = vdwg.mxu0
      %s286 = scalar_lea.vmem [#allocation2], 16
      %287 = vst [vmem:[%s286] sm:$0xff] %v283
      %s288 = scalar_lea.vmem %s2, 384
      %v289 = vld [vmem:[%s288] sm:$0xff]
      %v290 = vld [vmem:[%s288 + $0x8] sm:$0xff]
      %v291 = vld [vmem:[%s288 + $0x10] sm:$0xff]
      %v292 = vld [vmem:[%s288 + $0x18] sm:$0xff]
      %v293 = vld [vmem:[%s288 + $0x20] sm:$0xff]
      %v294 = vld [vmem:[%s288 + $0x28] sm:$0xff]
      %v295 = vld [vmem:[%s288 + $0x30] sm:$0xff]
      %v296 = vld [vmem:[%s288 + $0x38] sm:$0xff]
      %v297 = vld [vmem:[%s288 + $0x40] sm:$0xff]
      %v298 = vld [vmem:[%s288 + $0x48] sm:$0xff]
      %v299 = vld [vmem:[%s288 + $0x50] sm:$0xff]
      %v300 = vld [vmem:[%s288 + $0x58] sm:$0xff]
      %v301 = vld [vmem:[%s288 + $0x60] sm:$0xff]
      %v302 = vld [vmem:[%s288 + $0x68] sm:$0xff]
      %v303 = vld [vmem:[%s288 + $0x70] sm:$0xff]
      %v304 = vld [vmem:[%s288 + $0x78] sm:$0xff]
      %305 = vmatprep.subr.mxu0 0.0
      %306 = vmatpush1.msra.mxu0 %v289
      %307 = vmatprep.subr.mxu0 0.0
      %308 = vmatpush1.msra.mxu0 %v290
      %309 = vmatprep.subr.mxu0 0.0
      %310 = vmatpush1.msra.mxu0 %v291
      %311 = vmatprep.subr.mxu0 0.0
      %312 = vmatpush1.msra.mxu0 %v292
      %313 = vmatprep.subr.mxu0 0.0
      %314 = vmatpush1.msra.mxu0 %v293
      %315 = vmatprep.subr.mxu0 0.0
      %316 = vmatpush1.msra.mxu0 %v294
      %317 = vmatprep.subr.mxu0 0.0
      %318 = vmatpush1.msra.mxu0 %v295
      %319 = vmatprep.subr.mxu0 0.0
      %320 = vmatpush1.msra.mxu0 %v296
      %321 = vmatprep.subr.mxu0 0.0
      %322 = vmatpush1.msra.mxu0 %v297
      %323 = vmatprep.subr.mxu0 0.0
      %324 = vmatpush1.msra.mxu0 %v298
      %325 = vmatprep.subr.mxu0 0.0
      %326 = vmatpush1.msra.mxu0 %v299
      %327 = vmatprep.subr.mxu0 0.0
      %328 = vmatpush1.msra.mxu0 %v300
      %329 = vmatprep.subr.mxu0 0.0
      %330 = vmatpush1.msra.mxu0 %v301
      %331 = vmatprep.subr.mxu0 0.0
      %332 = vmatpush1.msra.mxu0 %v302
      %333 = vmatprep.subr.mxu0 0.0
      %334 = vmatpush1.msra.mxu0 %v303
      %335 = vmatprep.subr.mxu0 0.0
      %336 = vmatpush1.msra.mxu0 %v304
      %337 = vmatprep.subr.mxu0 0.0
      %338 = vmatpush1.msra.mxu0 0.0
      %339 = vmatprep.subr.mxu0 0.0
      %340 = vmatpush1.msra.mxu0 0.0
      %341 = vmatprep.subr.mxu0 0.0
      %342 = vmatpush1.msra.mxu0 0.0
      %343 = vmatprep.subr.mxu0 0.0
      %344 = vmatpush1.msra.mxu0 0.0
      %345 = vmatprep.subr.mxu0 0.0
      %346 = vmatpush1.msra.mxu0 0.0
      %347 = vmatprep.subr.mxu0 0.0
      %348 = vmatpush1.msra.mxu0 0.0
      %349 = vmatprep.subr.mxu0 0.0
      %350 = vmatpush1.msra.mxu0 0.0
      %351 = vmatprep.subr.mxu0 0.0
      %352 = vmatpush1.msra.mxu0 0.0
      %353 = vmatprep.subr.mxu0 0.0
      %354 = vmatpush1.msra.mxu0 0.0
      %355 = vmatprep.subr.mxu0 0.0
      %356 = vmatpush1.msra.mxu0 0.0
      %357 = vmatprep.subr.mxu0 0.0
      %358 = vmatpush1.msra.mxu0 0.0
      %359 = vmatprep.subr.mxu0 0.0
      %360 = vmatpush1.msra.mxu0 0.0
      %361 = vmatprep.subr.mxu0 0.0
      %362 = vmatpush1.msra.mxu0 0.0
      %363 = vmatprep.subr.mxu0 0.0
      %364 = vmatpush1.msra.mxu0 0.0
      %365 = vmatprep.subr.mxu0 0.0
      %366 = vmatpush1.msra.mxu0 0.0
      %367 = vmatprep.subr.mxu0 0.0
      %368 = vmatpush1.msra.mxu0 0.0
      %369 = vmatprep.mubr.f32.mxu0 0.0
      %370 = vmatmul.mubr.f32.gmra.mrb[0].mxu0 %v22
      %v371 = vpop.f32.mrb[0].mxu0
      %v372 = vadd.f32 0.0, %v371
      %v373 = vpop.f32.mrb[0].mxu0
      %374 = vdwg.mxu0
      %s375 = scalar_lea.vmem [#allocation2], 24
      %376 = vst [vmem:[%s375] sm:$0xff] %v372
      %s377 = scalar_lea.vmem %s2, 512
      %v378 = vld [vmem:[%s377] sm:$0xff]
      %v379 = vld [vmem:[%s377 + $0x8] sm:$0xff]
      %v380 = vld [vmem:[%s377 + $0x10] sm:$0xff]
      %v381 = vld [vmem:[%s377 + $0x18] sm:$0xff]
      %v382 = vld [vmem:[%s377 + $0x20] sm:$0xff]
      %v383 = vld [vmem:[%s377 + $0x28] sm:$0xff]
      %v384 = vld [vmem:[%s377 + $0x30] sm:$0xff]
      %v385 = vld [vmem:[%s377 + $0x38] sm:$0xff]
      %v386 = vld [vmem:[%s377 + $0x40] sm:$0xff]
      %v387 = vld [vmem:[%s377 + $0x48] sm:$0xff]
      %v388 = vld [vmem:[%s377 + $0x50] sm:$0xff]
      %v389 = vld [vmem:[%s377 + $0x58] sm:$0xff]
      %v390 = vld [vmem:[%s377 + $0x60] sm:$0xff]
      %v391 = vld [vmem:[%s377 + $0x68] sm:$0xff]
      %v392 = vld [vmem:[%s377 + $0x70] sm:$0xff]
      %v393 = vld [vmem:[%s377 + $0x78] sm:$0xff]
      %394 = vmatprep.subr.mxu0 0.0
      %395 = vmatpush1.msra.mxu0 %v378
      %396 = vmatprep.subr.mxu0 0.0
      %397 = vmatpush1.msra.mxu0 %v379
      %398 = vmatprep.subr.mxu0 0.0
      %399 = vmatpush1.msra.mxu0 %v380
      %400 = vmatprep.subr.mxu0 0.0
      %401 = vmatpush1.msra.mxu0 %v381
      %402 = vmatprep.subr.mxu0 0.0
      %403 = vmatpush1.msra.mxu0 %v382
      %404 = vmatprep.subr.mxu0 0.0
      %405 = vmatpush1.msra.mxu0 %v383
      %406 = vmatprep.subr.mxu0 0.0
      %407 = vmatpush1.msra.mxu0 %v384
      %408 = vmatprep.subr.mxu0 0.0
      %409 = vmatpush1.msra.mxu0 %v385
      %410 = vmatprep.subr.mxu0 0.0
      %411 = vmatpush1.msra.mxu0 %v386
      %412 = vmatprep.subr.mxu0 0.0
      %413 = vmatpush1.msra.mxu0 %v387
      %414 = vmatprep.subr.mxu0 0.0
      %415 = vmatpush1.msra.mxu0 %v388
      %416 = vmatprep.subr.mxu0 0.0
      %417 = vmatpush1.msra.mxu0 %v389
      %418 = vmatprep.subr.mxu0 0.0
      %419 = vmatpush1.msra.mxu0 %v390
      %420 = vmatprep.subr.mxu0 0.0
      %421 = vmatpush1.msra.mxu0 %v391
      %422 = vmatprep.subr.mxu0 0.0
      %423 = vmatpush1.msra.mxu0 %v392
      %424 = vmatprep.subr.mxu0 0.0
      %425 = vmatpush1.msra.mxu0 %v393
      %426 = vmatprep.subr.mxu0 0.0
      %427 = vmatpush1.msra.mxu0 0.0
      %428 = vmatprep.subr.mxu0 0.0
      %429 = vmatpush1.msra.mxu0 0.0
      %430 = vmatprep.subr.mxu0 0.0
      %431 = vmatpush1.msra.mxu0 0.0
      %432 = vmatprep.subr.mxu0 0.0
      %433 = vmatpush1.msra.mxu0 0.0
      %434 = vmatprep.subr.mxu0 0.0
      %435 = vmatpush1.msra.mxu0 0.0
      %436 = vmatprep.subr.mxu0 0.0
      %437 = vmatpush1.msra.mxu0 0.0
      %438 = vmatprep.subr.mxu0 0.0
      %439 = vmatpush1.msra.mxu0 0.0
      %440 = vmatprep.subr.mxu0 0.0
      %441 = vmatpush1.msra.mxu0 0.0
      %442 = vmatprep.subr.mxu0 0.0
      %443 = vmatpush1.msra.mxu0 0.0
      %444 = vmatprep.subr.mxu0 0.0
      %445 = vmatpush1.msra.mxu0 0.0
      %446 = vmatprep.subr.mxu0 0.0
      %447 = vmatpush1.msra.mxu0 0.0
      %448 = vmatprep.subr.mxu0 0.0
      %449 = vmatpush1.msra.mxu0 0.0
      %450 = vmatprep.subr.mxu0 0.0
      %451 = vmatpush1.msra.mxu0 0.0
      %452 = vmatprep.subr.mxu0 0.0
      %453 = vmatpush1.msra.mxu0 0.0
      %454 = vmatprep.subr.mxu0 0.0
      %455 = vmatpush1.msra.mxu0 0.0
      %456 = vmatprep.subr.mxu0 0.0
      %457 = vmatpush1.msra.mxu0 0.0
      %458 = vmatprep.mubr.f32.mxu0 0.0
      %459 = vmatmul.mubr.f32.gmra.mrb[0].mxu0 %v22
      %v460 = vpop.f32.mrb[0].mxu0
      %v461 = vadd.f32 0.0, %v460
      %v462 = vpop.f32.mrb[0].mxu0
      %463 = vdwg.mxu0
      %s464 = scalar_lea.vmem [#allocation2], 32
      %465 = vst [vmem:[%s464] sm:$0xff] %v461
    $region17: #{forward.9} parent=1 // pred_fallthru
      _
    %v466 = vld [vmem:[%s1] sm:$0xff]
    %v467 = vld [vmem:[%s1 + $0x8] sm:$0xff]
    %v468 = vld [vmem:[#allocation2] sm:$0xff]
    %469 = vmatprep.subr.mxu0 0.0
    %470 = vmatpush1.xpose.msra.mxu0 %v466
    %471 = vmatprep.subr.mxu0 0.0
    %472 = vmatpush1.xpose.msra.mxu0 %v467
    %473 = vmatprep.subr.mxu0 0.0
    %474 = vmatpush1.xpose.msra.mxu0 0.0
    %475 = vmatprep.subr.mxu0 0.0
    %476 = vmatpush1.xpose.msra.mxu0 0.0
    %477 = vmatprep.subr.mxu0 0.0
    %478 = vmatpush1.xpose.msra.mxu0 0.0
    %479 = vmatprep.subr.mxu0 0.0
    %480 = vmatpush1.xpose.msra.mxu0 0.0
    %481 = vmatprep.subr.mxu0 0.0
    %482 = vmatpush1.xpose.msra.mxu0 0.0
    %483 = vmatprep.subr.mxu0 0.0
    %484 = vmatpush1.xpose.msra.mxu0 0.0
    %485 = vmatprep.subr.mxu0 0.0
    %486 = vmatpush1.xpose.msra.mxu0 0.0
    %487 = vmatprep.subr.mxu0 0.0
    %488 = vmatpush1.xpose.msra.mxu0 0.0
    %489 = vmatprep.subr.mxu0 0.0
    %490 = vmatpush1.xpose.msra.mxu0 0.0
    %491 = vmatprep.subr.mxu0 0.0
    %492 = vmatpush1.xpose.msra.mxu0 0.0
    %493 = vmatprep.subr.mxu0 0.0
    %494 = vmatpush1.xpose.msra.mxu0 0.0
    %495 = vmatprep.subr.mxu0 0.0
    %496 = vmatpush1.xpose.msra.mxu0 0.0
    %497 = vmatprep.subr.mxu0 0.0
    %498 = vmatpush1.xpose.msra.mxu0 0.0
    %499 = vmatprep.subr.mxu0 0.0
    %500 = vmatpush1.xpose.msra.mxu0 0.0
    %501 = vmatprep.subr.mxu0 0.0
    %502 = vmatpush1.xpose.msra.mxu0 0.0
    %503 = vmatprep.subr.mxu0 0.0
    %504 = vmatpush1.xpose.msra.mxu0 0.0
    %505 = vmatprep.subr.mxu0 0.0
    %506 = vmatpush1.xpose.msra.mxu0 0.0
    %507 = vmatprep.subr.mxu0 0.0
    %508 = vmatpush1.xpose.msra.mxu0 0.0
    %509 = vmatprep.subr.mxu0 0.0
    %510 = vmatpush1.xpose.msra.mxu0 0.0
    %511 = vmatprep.subr.mxu0 0.0
    %512 = vmatpush1.xpose.msra.mxu0 0.0
    %513 = vmatprep.subr.mxu0 0.0
    %514 = vmatpush1.xpose.msra.mxu0 0.0
    %515 = vmatprep.subr.mxu0 0.0
    %516 = vmatpush1.xpose.msra.mxu0 0.0
    %517 = vmatprep.subr.mxu0 0.0
    %518 = vmatpush1.xpose.msra.mxu0 0.0
    %519 = vmatprep.subr.mxu0 0.0
    %520 = vmatpush1.xpose.msra.mxu0 0.0
    %521 = vmatprep.subr.mxu0 0.0
    %522 = vmatpush1.xpose.msra.mxu0 0.0
    %523 = vmatprep.subr.mxu0 0.0
    %524 = vmatpush1.xpose.msra.mxu0 0.0
    %525 = vmatprep.subr.mxu0 0.0
    %526 = vmatpush1.xpose.msra.mxu0 0.0
    %527 = vmatprep.subr.mxu0 0.0
    %528 = vmatpush1.xpose.msra.mxu0 0.0
    %529 = vmatprep.subr.mxu0 0.0
    %530 = vmatpush1.xpose.msra.mxu0 0.0
    %531 = vmatprep.subr.mxu0 0.0
    %532 = vmatpush1.xpose.msra.mxu0 0.0
    %533 = vmatprep.mubr.f32.mxu0 0.0
    %534 = vmatmul.mubr.f32.gmra.mrb[0].mxu0 %v468
    %v535 = vpop.f32.mrb[0].mxu0
    %v536 = vadd.f32 0.0, %v535
    %v537 = vpop.f32.mrb[0].mxu0
    %538 = vdwg.mxu0
    %vm539 = vcmask 130048
    %540 = vst.msk [vmem:[#allocation3] sm:$0xff] %vm539, %v536
    %s541 = scalar_lea.vmem [#allocation2], 8
    %v542 = vld [vmem:[%s541] sm:$0xff]
    %543 = vmatprep.subr.mxu0 0.0
    %544 = vmatpush1.xpose.msra.mxu0 %v466
    %545 = vmatprep.subr.mxu0 0.0
    %546 = vmatpush1.xpose.msra.mxu0 %v467
    %547 = vmatprep.subr.mxu0 0.0
    %548 = vmatpush1.xpose.msra.mxu0 0.0
    %549 = vmatprep.subr.mxu0 0.0
    %550 = vmatpush1.xpose.msra.mxu0 0.0
    %551 = vmatprep.subr.mxu0 0.0
    %552 = vmatpush1.xpose.msra.mxu0 0.0
    %553 = vmatprep.subr.mxu0 0.0
    %554 = vmatpush1.xpose.msra.mxu0 0.0
    %555 = vmatprep.subr.mxu0 0.0
    %556 = vmatpush1.xpose.msra.mxu0 0.0
    %557 = vmatprep.subr.mxu0 0.0
    %558 = vmatpush1.xpose.msra.mxu0 0.0
    %559 = vmatprep.subr.mxu0 0.0
    %560 = vmatpush1.xpose.msra.mxu0 0.0
    %561 = vmatprep.subr.mxu0 0.0
    %562 = vmatpush1.xpose.msra.mxu0 0.0
    %563 = vmatprep.subr.mxu0 0.0
    %564 = vmatpush1.xpose.msra.mxu0 0.0
    %565 = vmatprep.subr.mxu0 0.0
    %566 = vmatpush1.xpose.msra.mxu0 0.0
    %567 = vmatprep.subr.mxu0 0.0
    %568 = vmatpush1.xpose.msra.mxu0 0.0
    %569 = vmatprep.subr.mxu0 0.0
    %570 = vmatpush1.xpose.msra.mxu0 0.0
    %571 = vmatprep.subr.mxu0 0.0
    %572 = vmatpush1.xpose.msra.mxu0 0.0
    %573 = vmatprep.subr.mxu0 0.0
    %574 = vmatpush1.xpose.msra.mxu0 0.0
    %575 = vmatprep.subr.mxu0 0.0
    %576 = vmatpush1.xpose.msra.mxu0 0.0
    %577 = vmatprep.subr.mxu0 0.0
    %578 = vmatpush1.xpose.msra.mxu0 0.0
    %579 = vmatprep.subr.mxu0 0.0
    %580 = vmatpush1.xpose.msra.mxu0 0.0
    %581 = vmatprep.subr.mxu0 0.0
    %582 = vmatpush1.xpose.msra.mxu0 0.0
    %583 = vmatprep.subr.mxu0 0.0
    %584 = vmatpush1.xpose.msra.mxu0 0.0
    %585 = vmatprep.subr.mxu0 0.0
    %586 = vmatpush1.xpose.msra.mxu0 0.0
    %587 = vmatprep.subr.mxu0 0.0
    %588 = vmatpush1.xpose.msra.mxu0 0.0
    %589 = vmatprep.subr.mxu0 0.0
    %590 = vmatpush1.xpose.msra.mxu0 0.0
    %591 = vmatprep.subr.mxu0 0.0
    %592 = vmatpush1.xpose.msra.mxu0 0.0
    %593 = vmatprep.subr.mxu0 0.0
    %594 = vmatpush1.xpose.msra.mxu0 0.0
    %595 = vmatprep.subr.mxu0 0.0
    %596 = vmatpush1.xpose.msra.mxu0 0.0
    %597 = vmatprep.subr.mxu0 0.0
    %598 = vmatpush1.xpose.msra.mxu0 0.0
    %599 = vmatprep.subr.mxu0 0.0
    %600 = vmatpush1.xpose.msra.mxu0 0.0
    %601 = vmatprep.subr.mxu0 0.0
    %602 = vmatpush1.xpose.msra.mxu0 0.0
    %603 = vmatprep.subr.mxu0 0.0
    %604 = vmatpush1.xpose.msra.mxu0 0.0
    %605 = vmatprep.subr.mxu0 0.0
    %606 = vmatpush1.xpose.msra.mxu0 0.0
    %607 = vmatprep.mubr.f32.mxu0 0.0
    %608 = vmatmul.mubr.f32.gmra.mrb[0].mxu0 %v542
    %v609 = vpop.f32.mrb[0].mxu0
    %v610 = vadd.f32 0.0, %v609
    %v611 = vpop.f32.mrb[0].mxu0
    %612 = vdwg.mxu0
    %s613 = scalar_lea.vmem [#allocation3], 8
    %614 = vst.msk [vmem:[%s613] sm:$0xff] %vm539, %v610
    %v615 = vmax.f32 %v536, %v610
    %s616 = scalar_lea.vmem [#allocation2], 16
    %v617 = vld [vmem:[%s616] sm:$0xff]
    %618 = vmatprep.subr.mxu0 0.0
    %619 = vmatpush1.xpose.msra.mxu0 %v466
    %620 = vmatprep.subr.mxu0 0.0
    %621 = vmatpush1.xpose.msra.mxu0 %v467
    %622 = vmatprep.subr.mxu0 0.0
    %623 = vmatpush1.xpose.msra.mxu0 0.0
    %624 = vmatprep.subr.mxu0 0.0
    %625 = vmatpush1.xpose.msra.mxu0 0.0
    %626 = vmatprep.subr.mxu0 0.0
    %627 = vmatpush1.xpose.msra.mxu0 0.0
    %628 = vmatprep.subr.mxu0 0.0
    %629 = vmatpush1.xpose.msra.mxu0 0.0
    %630 = vmatprep.subr.mxu0 0.0
    %631 = vmatpush1.xpose.msra.mxu0 0.0
    %632 = vmatprep.subr.mxu0 0.0
    %633 = vmatpush1.xpose.msra.mxu0 0.0
    %634 = vmatprep.subr.mxu0 0.0
    %635 = vmatpush1.xpose.msra.mxu0 0.0
    %636 = vmatprep.subr.mxu0 0.0
    %637 = vmatpush1.xpose.msra.mxu0 0.0
    %638 = vmatprep.subr.mxu0 0.0
    %639 = vmatpush1.xpose.msra.mxu0 0.0
    %640 = vmatprep.subr.mxu0 0.0
    %641 = vmatpush1.xpose.msra.mxu0 0.0
    %642 = vmatprep.subr.mxu0 0.0
    %643 = vmatpush1.xpose.msra.mxu0 0.0
    %644 = vmatprep.subr.mxu0 0.0
    %645 = vmatpush1.xpose.msra.mxu0 0.0
    %646 = vmatprep.subr.mxu0 0.0
    %647 = vmatpush1.xpose.msra.mxu0 0.0
    %648 = vmatprep.subr.mxu0 0.0
    %649 = vmatpush1.xpose.msra.mxu0 0.0
    %650 = vmatprep.subr.mxu0 0.0
    %651 = vmatpush1.xpose.msra.mxu0 0.0
    %652 = vmatprep.subr.mxu0 0.0
    %653 = vmatpush1.xpose.msra.mxu0 0.0
    %654 = vmatprep.subr.mxu0 0.0
    %655 = vmatpush1.xpose.msra.mxu0 0.0
    %656 = vmatprep.subr.mxu0 0.0
    %657 = vmatpush1.xpose.msra.mxu0 0.0
    %658 = vmatprep.subr.mxu0 0.0
    %659 = vmatpush1.xpose.msra.mxu0 0.0
    %660 = vmatprep.subr.mxu0 0.0
    %661 = vmatpush1.xpose.msra.mxu0 0.0
    %662 = vmatprep.subr.mxu0 0.0
    %663 = vmatpush1.xpose.msra.mxu0 0.0
    %664 = vmatprep.subr.mxu0 0.0
    %665 = vmatpush1.xpose.msra.mxu0 0.0
    %666 = vmatprep.subr.mxu0 0.0
    %667 = vmatpush1.xpose.msra.mxu0 0.0
    %668 = vmatprep.subr.mxu0 0.0
    %669 = vmatpush1.xpose.msra.mxu0 0.0
    %670 = vmatprep.subr.mxu0 0.0
    %671 = vmatpush1.xpose.msra.mxu0 0.0
    %672 = vmatprep.subr.mxu0 0.0
    %673 = vmatpush1.xpose.msra.mxu0 0.0
    %674 = vmatprep.subr.mxu0 0.0
    %675 = vmatpush1.xpose.msra.mxu0 0.0
    %676 = vmatprep.subr.mxu0 0.0
    %677 = vmatpush1.xpose.msra.mxu0 0.0
    %678 = vmatprep.subr.mxu0 0.0
    %679 = vmatpush1.xpose.msra.mxu0 0.0
    %680 = vmatprep.subr.mxu0 0.0
    %681 = vmatpush1.xpose.msra.mxu0 0.0
    %682 = vmatprep.mubr.f32.mxu0 0.0
    %683 = vmatmul.mubr.f32.gmra.mrb[0].mxu0 %v617
    %v684 = vpop.f32.mrb[0].mxu0
    %v685 = vadd.f32 0.0, %v684
    %v686 = vpop.f32.mrb[0].mxu0
    %687 = vdwg.mxu0
    %s688 = scalar_lea.vmem [#allocation3], 16
    %689 = vst.msk [vmem:[%s688] sm:$0xff] %vm539, %v685
    %v690 = vmax.f32 %v615, %v685
    %s691 = scalar_lea.vmem [#allocation2], 24
    %v692 = vld [vmem:[%s691] sm:$0xff]
    %693 = vmatprep.subr.mxu0 0.0
    %694 = vmatpush1.xpose.msra.mxu0 %v466
    %695 = vmatprep.subr.mxu0 0.0
    %696 = vmatpush1.xpose.msra.mxu0 %v467
    %697 = vmatprep.subr.mxu0 0.0
    %698 = vmatpush1.xpose.msra.mxu0 0.0
    %699 = vmatprep.subr.mxu0 0.0
    %700 = vmatpush1.xpose.msra.mxu0 0.0
    %701 = vmatprep.subr.mxu0 0.0
    %702 = vmatpush1.xpose.msra.mxu0 0.0
    %703 = vmatprep.subr.mxu0 0.0
    %704 = vmatpush1.xpose.msra.mxu0 0.0
    %705 = vmatprep.subr.mxu0 0.0
    %706 = vmatpush1.xpose.msra.mxu0 0.0
    %707 = vmatprep.subr.mxu0 0.0
    %708 = vmatpush1.xpose.msra.mxu0 0.0
    %709 = vmatprep.subr.mxu0 0.0
    %710 = vmatpush1.xpose.msra.mxu0 0.0
    %711 = vmatprep.subr.mxu0 0.0
    %712 = vmatpush1.xpose.msra.mxu0 0.0
    %713 = vmatprep.subr.mxu0 0.0
    %714 = vmatpush1.xpose.msra.mxu0 0.0
    %715 = vmatprep.subr.mxu0 0.0
    %716 = vmatpush1.xpose.msra.mxu0 0.0
    %717 = vmatprep.subr.mxu0 0.0
    %718 = vmatpush1.xpose.msra.mxu0 0.0
    %719 = vmatprep.subr.mxu0 0.0
    %720 = vmatpush1.xpose.msra.mxu0 0.0
    %721 = vmatprep.subr.mxu0 0.0
    %722 = vmatpush1.xpose.msra.mxu0 0.0
    %723 = vmatprep.subr.mxu0 0.0
    %724 = vmatpush1.xpose.msra.mxu0 0.0
    %725 = vmatprep.subr.mxu0 0.0
    %726 = vmatpush1.xpose.msra.mxu0 0.0
    %727 = vmatprep.subr.mxu0 0.0
    %728 = vmatpush1.xpose.msra.mxu0 0.0
    %729 = vmatprep.subr.mxu0 0.0
    %730 = vmatpush1.xpose.msra.mxu0 0.0
    %731 = vmatprep.subr.mxu0 0.0
    %732 = vmatpush1.xpose.msra.mxu0 0.0
    %733 = vmatprep.subr.mxu0 0.0
    %734 = vmatpush1.xpose.msra.mxu0 0.0
    %735 = vmatprep.subr.mxu0 0.0
    %736 = vmatpush1.xpose.msra.mxu0 0.0
    %737 = vmatprep.subr.mxu0 0.0
    %738 = vmatpush1.xpose.msra.mxu0 0.0
    %739 = vmatprep.subr.mxu0 0.0
    %740 = vmatpush1.xpose.msra.mxu0 0.0
    %741 = vmatprep.subr.mxu0 0.0
    %742 = vmatpush1.xpose.msra.mxu0 0.0
    %743 = vmatprep.subr.mxu0 0.0
    %744 = vmatpush1.xpose.msra.mxu0 0.0
    %745 = vmatprep.subr.mxu0 0.0
    %746 = vmatpush1.xpose.msra.mxu0 0.0
    %747 = vmatprep.subr.mxu0 0.0
    %748 = vmatpush1.xpose.msra.mxu0 0.0
    %749 = vmatprep.subr.mxu0 0.0
    %750 = vmatpush1.xpose.msra.mxu0 0.0
    %751 = vmatprep.subr.mxu0 0.0
    %752 = vmatpush1.xpose.msra.mxu0 0.0
    %753 = vmatprep.subr.mxu0 0.0
    %754 = vmatpush1.xpose.msra.mxu0 0.0
    %755 = vmatprep.subr.mxu0 0.0
    %756 = vmatpush1.xpose.msra.mxu0 0.0
    %757 = vmatprep.mubr.f32.mxu0 0.0
    %758 = vmatmul.mubr.f32.gmra.mrb[0].mxu0 %v692
    %v759 = vpop.f32.mrb[0].mxu0
    %v760 = vadd.f32 0.0, %v759
    %v761 = vpop.f32.mrb[0].mxu0
    %762 = vdwg.mxu0
    %s763 = scalar_lea.vmem [#allocation3], 24
    %764 = vst.msk [vmem:[%s763] sm:$0xff] %vm539, %v760
    %v765 = vmax.f32 %v690, %v760
    %s766 = scalar_lea.vmem [#allocation2], 32
    %v767 = vld [vmem:[%s766] sm:$0xff]
    %768 = vmatprep.subr.mxu0 0.0
    %769 = vmatpush1.xpose.msra.mxu0 %v466
    %770 = vmatprep.subr.mxu0 0.0
    %771 = vmatpush1.xpose.msra.mxu0 %v467
    %772 = vmatprep.subr.mxu0 0.0
    %773 = vmatpush1.xpose.msra.mxu0 0.0
    %774 = vmatprep.subr.mxu0 0.0
    %775 = vmatpush1.xpose.msra.mxu0 0.0
    %776 = vmatprep.subr.mxu0 0.0
    %777 = vmatpush1.xpose.msra.mxu0 0.0
    %778 = vmatprep.subr.mxu0 0.0
    %779 = vmatpush1.xpose.msra.mxu0 0.0
    %780 = vmatprep.subr.mxu0 0.0
    %781 = vmatpush1.xpose.msra.mxu0 0.0
    %782 = vmatprep.subr.mxu0 0.0
    %783 = vmatpush1.xpose.msra.mxu0 0.0
    %784 = vmatprep.subr.mxu0 0.0
    %785 = vmatpush1.xpose.msra.mxu0 0.0
    %786 = vmatprep.subr.mxu0 0.0
    %787 = vmatpush1.xpose.msra.mxu0 0.0
    %788 = vmatprep.subr.mxu0 0.0
    %789 = vmatpush1.xpose.msra.mxu0 0.0
    %790 = vmatprep.subr.mxu0 0.0
    %791 = vmatpush1.xpose.msra.mxu0 0.0
    %792 = vmatprep.subr.mxu0 0.0
    %793 = vmatpush1.xpose.msra.mxu0 0.0
    %794 = vmatprep.subr.mxu0 0.0
    %795 = vmatpush1.xpose.msra.mxu0 0.0
    %796 = vmatprep.subr.mxu0 0.0
    %797 = vmatpush1.xpose.msra.mxu0 0.0
    %798 = vmatprep.subr.mxu0 0.0
    %799 = vmatpush1.xpose.msra.mxu0 0.0
    %800 = vmatprep.subr.mxu0 0.0
    %801 = vmatpush1.xpose.msra.mxu0 0.0
    %802 = vmatprep.subr.mxu0 0.0
    %803 = vmatpush1.xpose.msra.mxu0 0.0
    %804 = vmatprep.subr.mxu0 0.0
    %805 = vmatpush1.xpose.msra.mxu0 0.0
    %806 = vmatprep.subr.mxu0 0.0
    %807 = vmatpush1.xpose.msra.mxu0 0.0
    %808 = vmatprep.subr.mxu0 0.0
    %809 = vmatpush1.xpose.msra.mxu0 0.0
    %810 = vmatprep.subr.mxu0 0.0
    %811 = vmatpush1.xpose.msra.mxu0 0.0
    %812 = vmatprep.subr.mxu0 0.0
    %813 = vmatpush1.xpose.msra.mxu0 0.0
    %814 = vmatprep.subr.mxu0 0.0
    %815 = vmatpush1.xpose.msra.mxu0 0.0
    %816 = vmatprep.subr.mxu0 0.0
    %817 = vmatpush1.xpose.msra.mxu0 0.0
    %818 = vmatprep.subr.mxu0 0.0
    %819 = vmatpush1.xpose.msra.mxu0 0.0
    %820 = vmatprep.subr.mxu0 0.0
    %821 = vmatpush1.xpose.msra.mxu0 0.0
    %822 = vmatprep.subr.mxu0 0.0
    %823 = vmatpush1.xpose.msra.mxu0 0.0
    %824 = vmatprep.subr.mxu0 0.0
    %825 = vmatpush1.xpose.msra.mxu0 0.0
    %826 = vmatprep.subr.mxu0 0.0
    %827 = vmatpush1.xpose.msra.mxu0 0.0
    %828 = vmatprep.subr.mxu0 0.0
    %829 = vmatpush1.xpose.msra.mxu0 0.0
    %830 = vmatprep.subr.mxu0 0.0
    %831 = vmatpush1.xpose.msra.mxu0 0.0
    %832 = vmatprep.mubr.f32.mxu0 0.0
    %833 = vmatmul.mubr.f32.gmra.mrb[0].mxu0 %v767
    %v834 = vpop.f32.mrb[0].mxu0
    %v835 = vadd.f32 0.0, %v834
    %v836 = vpop.f32.mrb[0].mxu0
    %837 = vdwg.mxu0
    %s838 = scalar_lea.vmem [#allocation3], 32
    %839 = vst.msk [vmem:[%s838] sm:$0xff] %vm539, %v835
    %v840 = vmax.f32 %v765, %v835
    %v841 = vld [vmem:[#allocation3] sm:$0xff]
    %v842 = vsub.f32 %v841, %v840
    %v843 = vmul.f32 %v842, 1.442695
    %v844 = vpow.pop %v843
    %845 = vst.msk [vmem:[#allocation5] sm:$0xff] %vm539, %v844
    %v846 = vld [vmem:[%s613] sm:$0xff]
    %v847 = vsub.f32 %v846, %v840
    %v848 = vmul.f32 %v847, 1.442695
    %v849 = vpow.pop %v848
    %s850 = scalar_lea.vmem [#allocation5], 8
    %851 = vst.msk [vmem:[%s850] sm:$0xff] %vm539, %v849
    %v852 = vadd.f32 %v844, %v849
    %v853 = vld [vmem:[%s688] sm:$0xff]
    %v854 = vsub.f32 %v853, %v840
    %v855 = vmul.f32 %v854, 1.442695
    %v856 = vpow.pop %v855
    %s857 = scalar_lea.vmem [#allocation5], 16
    %858 = vst.msk [vmem:[%s857] sm:$0xff] %vm539, %v856
    %v859 = vadd.f32 %v852, %v856
    %v860 = vld [vmem:[%s763] sm:$0xff]
    %v861 = vsub.f32 %v860, %v840
    %v862 = vmul.f32 %v861, 1.442695
    %v863 = vpow.pop %v862
    %s864 = scalar_lea.vmem [#allocation5], 24
    %865 = vst.msk [vmem:[%s864] sm:$0xff] %vm539, %v863
    %v866 = vadd.f32 %v859, %v863
    %v867 = vld [vmem:[%s838] sm:$0xff]
    %v868 = vsub.f32 %v867, %v840
    %v869 = vmul.f32 %v868, 1.442695
    %v870 = vpow.pop %v869
    %s871 = scalar_lea.vmem [#allocation5], 32
    %872 = vst.msk [vmem:[%s871] sm:$0xff] %vm539, %v870
    %v873 = vadd.f32 %v866, %v870
    %v874 = vrcp.pop %v873
    %v875 = vld [vmem:[#allocation5] sm:$0xff]
    %v876 = vmul.f32 %v875, %v874
    %877 = vst.msk [vmem:[#allocation5] sm:$0xff] %vm539, %v876
    %v878 = vld [vmem:[%s850] sm:$0xff]
    %v879 = vmul.f32 %v878, %v874
    %880 = vst.msk [vmem:[%s850] sm:$0xff] %vm539, %v879
    %v881 = vld [vmem:[%s857] sm:$0xff]
    %v882 = vmul.f32 %v881, %v874
    %883 = vst.msk [vmem:[%s857] sm:$0xff] %vm539, %v882
    %v884 = vld [vmem:[%s864] sm:$0xff]
    %v885 = vmul.f32 %v884, %v874
    %886 = vst.msk [vmem:[%s864] sm:$0xff] %vm539, %v885
    %v887 = vld [vmem:[%s871] sm:$0xff]
    %v888 = vmul.f32 %v887, %v874
    %889 = vst.msk [vmem:[%s871] sm:$0xff] %vm539, %v888
    // Predicated region
    $region18: #{forward.9} parent=1 // pred_check
      _
    $region19: #{forward.9} parent=1 // pred_check_branch
      %891 = sbr.rel (0) target = $region21
    $region20: #{forward.9} parent=1 // pred_region
      %s893 = ssub.s32 640, 640
      %894 = vsyncadd [#allocation4], %s893
      %s895 = sshll.u32 [#allocation3], 4
      %s896 = int_to_ptr.vmem [resolvable:$true] %s895
      %901 = dma.vmem_to_hbm [thread:$0]  %s896, 640, %s3, [#allocation4], 128, 128, 8
    $region21: #{forward.9} parent=1 // pred_fallthru
      _
    // Predicated region
    $region22: #{forward.9} parent=1 // pred_check
      _
    $region23: #{forward.9} parent=1 // pred_check_branch
      %903 = sbr.rel (0) target = $region25
    $region24: #{forward.9} parent=1 // pred_region
      %s905 = ssub.s32 640, 640
      %906 = vsyncadd [#allocation6], %s905
      %s907 = sshll.u32 [#allocation5], 4
      %s908 = int_to_ptr.vmem [resolvable:$true] %s907
      %913 = dma.vmem_to_hbm [thread:$0]  %s908, 640, %s4, [#allocation6], 128, 128, 8
    $region25: #{forward.9} parent=1 // pred_fallthru
      _
    // Predicated region
    $region26: #{forward.9} parent=1 // pred_check
      _
    $region27: #{forward.9} parent=1 // pred_check_branch
      %915 = sbr.rel (0) target = $region29
    $region28: #{forward.9} parent=1 // pred_region
      %916 = dma.done [#allocation4], 640
    $region29: #{forward.9} parent=1 // pred_fallthru
      _
    // Predicated region
    $region30: #{forward.9} parent=1 // pred_check
      _
    $region31: #{forward.9} parent=1 // pred_check_branch
      %918 = sbr.rel (0) target = $region33
    $region32: #{forward.9} parent=1 // pred_region
      %919 = dma.done [#allocation6], 640
    $region33: #{forward.9} parent=1 // pred_fallthru
      _
    %920 = vsyncpa [#allocation4], 1
    %921 = vsyncpa [#allocation6], 1

</llo_original>
